<compile_context>
chip_gen: v7x
topology: tpu7x:2x2x1
jax: 0.10.0
libtpu: 0.0.40
codegen_flags: <defaults>
</compile_context>

<pallas_src>
import functools

import jax
import jax.numpy as jnp
import numpy as np
from jax import lax
from jax.experimental import pallas as pl
from jax.experimental.pallas import tpu as pltpu


def _round_up(a, m):
    return ((a + m - 1) // m) * m


# ----------------------------------------------------------------------------
# Fused Bottleneck kernel (one grid step == B images)
# ----------------------------------------------------------------------------
def _bottleneck_kernel(*refs, B, H, W, P, Cin, stride, has_downsample, pad):
    s = stride
    M = H * W
    Ho, Wo = H // s, W // s

    if s > 1:
        (x_ref, w1_ref, b1_ref, w2_ref, b2_ref, w3d_ref, bt_ref, o_ref,
         stage_scr, cat_scr, pool_scr) = refs
    elif has_downsample:
        (x_ref, w1_ref, b1_ref, w2_ref, b2_ref, w3_ref, wd_ref, bt_ref, o_ref,
         stage_scr) = refs
    else:
        (x_ref, w1_ref, b1_ref, w2_ref, b2_ref, w3_ref, bt_ref, o_ref,
         stage_scr) = refs

    # Horizontal edge masks built in-kernel (no DMA'd index array).  Hoisted
    # broadcasts: JAX does not CSE broadcast_in_dim inside the image loop.
    col = lax.broadcasted_iota(jnp.int32, (M, 1), 0) % W
    m_l = jnp.broadcast_to(col >= 1, (M, P))          # valid left neighbour
    m_r = jnp.broadcast_to(col < (W - 1), (M, P))     # valid right neighbour
    zeros_ht = jnp.zeros((pad, 3 * P), jnp.bfloat16)

    # Zero halo rows (vertical padding for the dy=+-1 taps).  Re-written every
    # grid step: safe under megacore "parallel" partitioning, and only 2*pad
    # rows of stores.  The per-image body only ever writes rows [pad, pad+M).
    stage_scr[pl.ds(0, pad), :] = zeros_ht
    stage_scr[pl.ds(pad + M, pad), :] = zeros_ht

    for b in range(B):
        x = x_ref[b]                                   # (M, Cin) bf16

        # ---- conv1 (1x1) + bn1 (folded) + relu1 ------------------------------
        out1 = jnp.dot(x, w1_ref[...], preferred_element_type=jnp.float32)
        out1 = jnp.maximum(out1 + b1_ref[...], 0.0)    # (M, P) f32

        # ---- stage for conv2: lanes = [dx=-1 | dx=0 | dx=+1] -----------------
        stage_scr[pl.ds(pad, M), pl.ds(P, P)] = out1.astype(jnp.bfloat16)
        left = stage_scr[pl.ds(pad - 1, M), pl.ds(P, P)]      # out1[m-1]
        right = stage_scr[pl.ds(pad + 1, M), pl.ds(P, P)]     # out1[m+1]
        stage_scr[pl.ds(pad, M), pl.ds(0, P)] = jnp.where(
            m_l, left, jnp.zeros_like(left))
        stage_scr[pl.ds(pad, M), pl.ds(2 * P, P)] = jnp.where(
            m_r, right, jnp.zeros_like(right))

        # ---- conv2 (3x3, pad=1) + bn2 (folded) + relu2: 3 dots with K=3P -----
        acc = jnp.dot(stage_scr[pl.ds(pad - W, M), :], w2_ref[0],
                      preferred_element_type=jnp.float32)
        acc = acc + jnp.dot(stage_scr[pl.ds(pad, M), :], w2_ref[1],
                            preferred_element_type=jnp.float32)
        acc = acc + jnp.dot(stage_scr[pl.ds(pad + W, M), :], w2_ref[2],
                            preferred_element_type=jnp.float32)
        out2 = jnp.maximum(acc + b2_ref[...], 0.0)     # (M, P) f32

        # ---- avgpool(stride) -> conv3+bn3 (+ downsample) + add + relu3 -------
        if s > 1:
            # Combined (out2 | identity) f32 scratch: one strided read per
            # (dy, dx) feeds both the main and the downsample branch.  The
            # avgpool's 1/s^2 is folded into w3d, so these are plain sums.
            cat_scr[pl.ds(0, M), pl.ds(0, P)] = out2
            cat_scr[pl.ds(0, M), pl.ds(P, Cin)] = x.astype(jnp.float32)
            for ho in range(Ho):
                band = jnp.zeros((Wo, P + Cin), jnp.float32)
                for dy in range(s):
                    for dx in range(s):
                        start = (ho * s + dy) * W + dx
                        band = band + cat_scr[pl.ds(start, Wo, stride=s), :]
                pool_scr[pl.ds(ho * Wo, Wo), :] = band.astype(jnp.bfloat16)
            # One merged K = P + Cin matmul (w3 | wd concatenated in wrapper).
            y = jnp.dot(pool_scr[...], w3d_ref[...],
                        preferred_element_type=jnp.float32)
        else:
            y = jnp.dot(out2.astype(jnp.bfloat16), w3_ref[...],
                        preferred_element_type=jnp.float32)
            if has_downsample:
                y = y + jnp.dot(x, wd_ref[...],
                                preferred_element_type=jnp.float32)
            else:
                y = y + x.astype(jnp.float32)          # identity (Cin == C4)

        # Single lane-dense final store per image.
        o_ref[b] = jnp.maximum(y + bt_ref[...], 0.0)


# ----------------------------------------------------------------------------
# Wrapper: fold BN/avgpool into weights, build specs, call the fused kernel
# ----------------------------------------------------------------------------
def _pick_batch_block(N, M, Mo, Cin, C4, budget=6 << 20):
    best = 1
    for b in range(1, min(N, 8) + 1):
        if N % b:
            continue
        blk_bytes = 2 * b * M * Cin * 2 + 2 * b * Mo * C4 * 4
        if blk_bytes <= budget:
            best = b
    return best


def bottleneck_forward(x_nhwc, params, *, stride, has_downsample):
    N, H, W, Cin = x_nhwc.shape
    P = params["w1"].shape[1]
    C4 = 4 * P
    s = stride
    assert H % s == 0 and W % s == 0
    if not has_downsample:
        assert s == 1 and Cin == C4
    Ho, Wo = H // s, W // s
    M, Mo = H * W, Ho * Wo
    pad = _round_up(max(W, 8), 8)         # zero halo (>= W, sublane aligned)

    # Fold BatchNorm (inference) into the conv weights, and the avgpool's 1/s^2
    # into the conv3 / downsample weights; cast weights to bf16 for the MXU.
    inv_ss = 1.0 / float(s * s)
    w1e = (params["w1"] * params["s1"]).astype(jnp.bfloat16)            # (Cin,P)
    # (ky, kx, cin, cout) -> (ky, kx*P + cin, cout): matches the staged lanes.
    w2e = (params["w2_hwio"] * params["s2"].reshape(1, 1, 1, P)
           ).reshape(3, 3 * P, P).astype(jnp.bfloat16)                  # (3,3P,P)
    w3e = (params["w3"] * params["s3"] * inv_ss).astype(jnp.bfloat16)   # (P,C4)
    bt = params["b3"]

    x_flat = x_nhwc.reshape(N, M, Cin).astype(jnp.bfloat16)
    B = _pick_batch_block(N, M, Mo, Cin, C4)

    inputs = [x_flat, w1e, params["b1"], w2e, params["b2"]]
    in_specs = [
        pl.BlockSpec((B, M, Cin), lambda n: (n, 0, 0)),
        pl.BlockSpec((Cin, P), lambda n: (0, 0)),
        pl.BlockSpec((1, P), lambda n: (0, 0)),
        pl.BlockSpec((3, 3 * P, P), lambda n: (0, 0, 0)),
        pl.BlockSpec((1, P), lambda n: (0, 0)),
    ]

    scratch_shapes = [pltpu.VMEM((M + 2 * pad, 3 * P), jnp.bfloat16)]
    weight_bytes = (Cin * P + 9 * P * P) * 2

    if s > 1:
        # stride>1 always has a downsample branch in this module.
        wde = (params["wd"] * params["sd"] * inv_ss).astype(jnp.bfloat16)
        w3d = jnp.concatenate([w3e, wde], axis=0)                       # (P+Cin,C4)
        bt = bt + params["bd"]
        inputs += [w3d, bt]
        in_specs += [pl.BlockSpec((P + Cin, C4), lambda n: (0, 0)),
                     pl.BlockSpec((1, C4), lambda n: (0, 0))]
        scratch_shapes += [pltpu.VMEM((M, P + Cin), jnp.float32),
                           pltpu.VMEM((Mo, P + Cin), jnp.bfloat16)]
        weight_bytes += (P + Cin) * C4 * 2
    else:
        inputs.append(w3e)
        in_specs.append(pl.BlockSpec((P, C4), lambda n: (0, 0)))
        weight_bytes += P * C4 * 2
        if has_downsample:
            wde = (params["wd"] * params["sd"]).astype(jnp.bfloat16)
            bt = bt + params["bd"]
            inputs.append(wde)
            in_specs.append(pl.BlockSpec((Cin, C4), lambda n: (0, 0)))
            weight_bytes += Cin * C4 * 2
        inputs.append(bt)
        in_specs.append(pl.BlockSpec((1, C4), lambda n: (0, 0)))

    # VMEM budget: scratches + double-buffered blocks + weights, with headroom.
    scratch_bytes = (M + 2 * pad) * 3 * P * 2
    if s > 1:
        scratch_bytes += M * (P + Cin) * 4 + Mo * (P + Cin) * 2
    block_bytes = 2 * B * M * Cin * 2 + 2 * B * Mo * C4 * 4
    needed = scratch_bytes + block_bytes + 2 * weight_bytes + 2 * (2 * P + C4) * 4
    vmem_limit = int(max(32 << 20, min(100 << 20, 2 * needed + (2 << 20))))

    kernel = functools.partial(
        _bottleneck_kernel, B=B, H=H, W=W, P=P, Cin=Cin, stride=s,
        has_downsample=has_downsample, pad=pad)

    out = pl.pallas_call(
        kernel,
        out_shape=jax.ShapeDtypeStruct((N, Mo, C4), jnp.float32),
        grid=(N // B,),
        in_specs=in_specs,
        out_specs=pl.BlockSpec((B, Mo, C4), lambda n: (n, 0, 0)),
        scratch_shapes=scratch_shapes,
        compiler_params=pltpu.CompilerParams(
            dimension_semantics=("parallel",),
            vmem_limit_bytes=vmem_limit),
    )(*inputs)
    return out.reshape(N, Ho, Wo, C4)


# ----------------------------------------------------------------------------
# Deterministic parameter init (BN folded to scale/bias, inference semantics)
# ----------------------------------------------------------------------------
def _fold_bn(key, c, eps=1e-5):
    k1, k2, k3, k4 = jax.random.split(key, 4)
    gamma = jax.random.uniform(k1, (c,), jnp.float32, 0.5, 1.5)
    beta = jax.random.normal(k2, (c,), jnp.float32) * 0.1
    mean = jax.random.normal(k3, (c,), jnp.float32) * 0.1
    var = jax.random.uniform(k4, (c,), jnp.float32, 0.5, 1.5)
    scale = gamma / jnp.sqrt(var + eps)
    bias = beta - mean * scale
    return scale.reshape(1, c), bias.reshape(1, c)


def init_params(key, inplanes, planes, stride):
    C4 = 4 * planes
    ks = jax.random.split(key, 8)
    w1 = jax.random.normal(ks[0], (inplanes, planes), jnp.float32) * 0.1
    w2_hwio = jax.random.normal(ks[1], (3, 3, planes, planes), jnp.float32) * 0.1
    w3 = jax.random.normal(ks[2], (planes, C4), jnp.float32) * 0.1
    s1, b1 = _fold_bn(ks[3], planes)
    s2, b2 = _fold_bn(ks[4], planes)
    s3, b3 = _fold_bn(ks[5], C4)
    params = dict(w1=w1, w2_hwio=w2_hwio, w3=w3,
                  s1=s1, b1=b1, s2=s2, b2=b2, s3=s3, b3=b3)
    if stride > 1 or inplanes != C4:
        params["wd"] = jax.random.normal(ks[6], (inplanes, C4), jnp.float32) * 0.1
        params["sd"], params["bd"] = _fold_bn(ks[7], C4)
    return params


# ----------------------------------------------------------------------------
# Pure-JAX reference for correctness check
# ----------------------------------------------------------------------------
def reference_forward(x, params, *, stride, has_downsample):
    def conv1x1(t, w):
        return lax.conv_general_dilated(
            t, w.reshape(1, 1, *w.shape), (1, 1), "VALID",
            dimension_numbers=("NHWC", "HWIO", "NHWC"))

    def bn(t, sc, b):
        return t * sc.reshape(1, 1, 1, -1) + b.reshape(1, 1, 1, -1)

    def pool(t, s):
        if s == 1:
            return t
        N, H, W, C = t.shape
        return t.reshape(N, H // s, s, W // s, s, C).mean(axis=(2, 4))

    out = jax.nn.relu(bn(conv1x1(x, params["w1"]), params["s1"], params["b1"]))
    out = lax.conv_general_dilated(
        out, params["w2_hwio"], (1, 1), ((1, 1), (1, 1)),
        dimension_numbers=("NHWC", "HWIO", "NHWC"))
    out = jax.nn.relu(bn(out, params["s2"], params["b2"]))
    out = pool(out, stride)
    out = bn(conv1x1(out, params["w3"]), params["s3"], params["b3"])
    if has_downsample:
        ident = pool(x, stride)
        ident = bn(conv1x1(ident, params["wd"]), params["sd"], params["bd"])
    else:
        ident = x
    return jax.nn.relu(out + ident)


def _run_case(key, *, N, inplanes, planes, stride, H, W):
    C4 = 4 * planes
    has_ds = stride > 1 or inplanes != C4
    kx, kp = jax.random.split(key)
    x_nchw = jax.random.normal(kx, (N, inplanes, H, W), jnp.float32)
    x_nhwc = jnp.transpose(x_nchw, (0, 2, 3, 1))     # NCHW (PyTorch) -> NHWC
    params = init_params(kp, inplanes, planes, stride)

    fwd = jax.jit(functools.partial(bottleneck_forward, stride=stride,
                                    has_downsample=has_ds))
    out = jax.block_until_ready(fwd(x_nhwc, params))

    ref = reference_forward(x_nhwc, params, stride=stride, has_downsample=has_ds)
    np.testing.assert_allclose(np.asarray(out), np.asarray(ref),
                               rtol=2e-2, atol=1e-2)


if __name__ == "__main__":
    key = jax.random.PRNGKey(0)
    k1, k2, k3 = jax.random.split(key, 3)
    # stride-2 Bottleneck with avgpool + downsample branch (PyTorch x: (2,16,16,16))
    _run_case(k1, N=2, inplanes=16, planes=8, stride=2, H=16, W=16)
    # stride-1 identity Bottleneck (inplanes == 4*planes, no downsample branch)
    _run_case(k2, N=2, inplanes=32, planes=8, stride=1, H=16, W=16)
    # stride-1 Bottleneck with a downsample branch (inplanes != 4*planes)
    _run_case(k3, N=2, inplanes=16, planes=8, stride=1, H=16, W=16)
    print("KERNEL_OK")
</pallas_src>

<mosaic_0001>
module attributes {stable_mosaic.version = 11 : i64} {
  func.func @_bottleneck_kernel(%arg0: i32, %arg1: memref<2x256x16xbf16, #tpu.memory_space<vmem>>, %arg2: memref<16x8xbf16, #tpu.memory_space<vmem>>, %arg3: memref<1x8xf32, #tpu.memory_space<vmem>>, %arg4: memref<3x24x8xbf16, #tpu.memory_space<vmem>>, %arg5: memref<1x8xf32, #tpu.memory_space<vmem>>, %arg6: memref<24x32xbf16, #tpu.memory_space<vmem>>, %arg7: memref<1x32xf32, #tpu.memory_space<vmem>>, %arg8: memref<2x64x32xf32, #tpu.memory_space<vmem>>, %arg9: memref<288x24xbf16, #tpu.memory_space<vmem>>, %arg10: memref<256x24xf32, #tpu.memory_space<vmem>>, %arg11: memref<64x24xbf16, #tpu.memory_space<vmem>>) attributes {dimension_semantics = [#tpu.dimension_semantics<parallel>], iteration_bounds = array<i64: 1>, scalar_prefetch = 0 : i64, scratch_operands = 3 : i64, tpu.core_type = #tpu.core_type<tc>, window_params = [{transform_indices = @transform_0, window_bounds = array<i64: 2, 256, 16>}, {pipeline_mode = #tpu.pipeline_mode<synchronous>, transform_indices = @transform_1, window_bounds = array<i64: 16, 8>}, {pipeline_mode = #tpu.pipeline_mode<synchronous>, transform_indices = @transform_2, window_bounds = array<i64: 1, 8>}, {pipeline_mode = #tpu.pipeline_mode<synchronous>, transform_indices = @transform_3, window_bounds = array<i64: 3, 24, 8>}, {pipeline_mode = #tpu.pipeline_mode<synchronous>, transform_indices = @transform_4, window_bounds = array<i64: 1, 8>}, {pipeline_mode = #tpu.pipeline_mode<synchronous>, transform_indices = @transform_5, window_bounds = array<i64: 24, 32>}, {pipeline_mode = #tpu.pipeline_mode<synchronous>, transform_indices = @transform_6, window_bounds = array<i64: 1, 32>}, {transform_indices = @transform_7, window_bounds = array<i64: 2, 64, 32>}]} {
    %0 = tpu.iota {dimensions = array<i32: 0>} : vector<256x1xi32>
    %c16_i32 = arith.constant 16 : i32
    %c0_i32 = arith.constant 0 : i32
    %1 = arith.cmpi eq, %c16_i32, %c0_i32 : i32
    %c1_i32 = arith.constant 1 : i32
    %2 = arith.select %1, %c1_i32, %c16_i32 : i32
    %3 = vector.broadcast %2 : i32 to vector<256x1xi32>
    %4 = arith.remsi %0, %3 : vector<256x1xi32>
    %c0_i32_0 = arith.constant 0 : i32
    %5 = vector.broadcast %c0_i32_0 : i32 to vector<256x1xi32>
    %6 = arith.cmpi ne, %4, %5 : vector<256x1xi32>
    %c0_i32_1 = arith.constant 0 : i32
    %7 = vector.broadcast %c0_i32_1 : i32 to vector<256x1xi32>
    %8 = arith.cmpi slt, %4, %7 : vector<256x1xi32>
    %c0_i32_2 = arith.constant 0 : i32
    %9 = arith.cmpi slt, %2, %c0_i32_2 : i32
    %10 = vector.broadcast %9 : i1 to vector<256x1xi1>
    %11 = vector.broadcast %10 : vector<256x1xi1> to vector<256x1xi1>
    %12 = arith.xori %8, %11 : vector<256x1xi1>
    %13 = arith.andi %12, %6 : vector<256x1xi1>
    %14 = vector.broadcast %2 : i32 to vector<256x1xi32>
    %15 = arith.addi %4, %14 : vector<256x1xi32>
    %16 = arith.select %13, %15, %4 : vector<256x1xi1>, vector<256x1xi32>
    %c1_i32_3 = arith.constant 1 : i32
    %17 = vector.broadcast %c1_i32_3 : i32 to vector<256x1xi32>
    %18 = arith.cmpi sge, %16, %17 : vector<256x1xi32>
    %19 = vector.shape_cast %18 : vector<256x1xi1> to vector<256x1xi1>
    %20 = vector.broadcast %19 : vector<256x1xi1> to vector<256x8xi1>
    %c15_i32 = arith.constant 15 : i32
    %21 = vector.broadcast %c15_i32 : i32 to vector<256x1xi32>
    %22 = arith.cmpi slt, %16, %21 : vector<256x1xi32>
    %23 = vector.shape_cast %22 : vector<256x1xi1> to vector<256x1xi1>
    %24 = vector.broadcast %23 : vector<256x1xi1> to vector<256x8xi1>
    %cst = arith.constant 0.000000e+00 : bf16
    %25 = vector.broadcast %cst : bf16 to vector<16x24xbf16>
    %c0 = arith.constant 0 : index
    %c0_4 = arith.constant 0 : index
    %26 = vector.load %arg9[%c0, %c0_4] : memref<288x24xbf16, #tpu.memory_space<vmem>>, vector<16x24xbf16>
    tpu.vector_store %arg9[%c0, %c0_4], %25 {strides = array<i32>} : memref<288x24xbf16, #tpu.memory_space<vmem>>, vector<16x24xbf16>,
    %c272 = arith.constant 272 : index
    %c0_5 = arith.constant 0 : index
    %27 = vector.load %arg9[%c272, %c0_5] : memref<288x24xbf16, #tpu.memory_space<vmem>>, vector<16x24xbf16>
    tpu.vector_store %arg9[%c272, %c0_5], %25 {strides = array<i32>} : memref<288x24xbf16, #tpu.memory_space<vmem>>, vector<16x24xbf16>,
    %c0_6 = arith.constant 0 : index
    %c0_7 = arith.constant 0 : index
    %c0_8 = arith.constant 0 : index
    %28 = vector.load %arg1[%c0_6, %c0_7, %c0_8] : memref<2x256x16xbf16, #tpu.memory_space<vmem>>, vector<1x256x16xbf16>
    %29 = vector.shape_cast %28 : vector<1x256x16xbf16> to vector<256x16xbf16>
    %c0_9 = arith.constant 0 : index
    %c0_10 = arith.constant 0 : index
    %30 = vector.load %arg2[%c0_9, %c0_10] : memref<16x8xbf16, #tpu.memory_space<vmem>>, vector<16x8xbf16>
    %cst_11 = arith.constant dense<0.000000e+00> : vector<256x8xf32>
    %31 = tpu.matmul %29, %30, %cst_11 {dimension_numbers = #tpu.dot_dimension_numbers<[1], [0], [0], [1], [0, 0, 1, 1], [], []>} : vector<256x16xbf16>, vector<16x8xbf16>, vector<256x8xf32> -> vector<256x8xf32>
    %c0_12 = arith.constant 0 : index
    %c0_13 = arith.constant 0 : index
    %32 = vector.load %arg3[%c0_12, %c0_13] : memref<1x8xf32, #tpu.memory_space<vmem>>, vector<1x8xf32>
    %33 = vector.broadcast %32 : vector<1x8xf32> to vector<256x8xf32>
    %34 = arith.addf %31, %33 : vector<256x8xf32>
    %cst_14 = arith.constant 0.000000e+00 : f32
    %35 = vector.broadcast %cst_14 : f32 to vector<256x8xf32>
    %36 = arith.maximumf %34, %35 : vector<256x8xf32>
    %37 = arith.truncf %36 : vector<256x8xf32> to vector<256x8xbf16>
    %c16 = arith.constant 16 : index
    %c8 = arith.constant 8 : index
    %38 = vector.load %arg9[%c16, %c8] : memref<288x24xbf16, #tpu.memory_space<vmem>>, vector<256x8xbf16>
    tpu.vector_store %arg9[%c16, %c8], %37 {strides = array<i32>} : memref<288x24xbf16, #tpu.memory_space<vmem>>, vector<256x8xbf16>,
    %c15 = arith.constant 15 : index
    %c8_15 = arith.constant 8 : index
    %39 = vector.load %arg9[%c15, %c8_15] : memref<288x24xbf16, #tpu.memory_space<vmem>>, vector<256x8xbf16>
    %c17 = arith.constant 17 : index
    %c8_16 = arith.constant 8 : index
    %40 = vector.load %arg9[%c17, %c8_16] : memref<288x24xbf16, #tpu.memory_space<vmem>>, vector<256x8xbf16>
    %cst_17 = arith.constant 0.000000e+00 : bf16
    %41 = vector.broadcast %cst_17 : bf16 to vector<256x8xbf16>
    %42 = arith.select %20, %39, %41 : vector<256x8xi1>, vector<256x8xbf16>
    %c16_18 = arith.constant 16 : index
    %c0_19 = arith.constant 0 : index
    %43 = vector.load %arg9[%c16_18, %c0_19] : memref<288x24xbf16, #tpu.memory_space<vmem>>, vector<256x8xbf16>
    tpu.vector_store %arg9[%c16_18, %c0_19], %42 {strides = array<i32>} : memref<288x24xbf16, #tpu.memory_space<vmem>>, vector<256x8xbf16>,
    %cst_20 = arith.constant 0.000000e+00 : bf16
    %44 = vector.broadcast %cst_20 : bf16 to vector<256x8xbf16>
    %45 = arith.select %24, %40, %44 : vector<256x8xi1>, vector<256x8xbf16>
    %c16_21 = arith.constant 16 : index
    %c16_22 = arith.constant 16 : index
    %46 = vector.load %arg9[%c16_21, %c16_22] : memref<288x24xbf16, #tpu.memory_space<vmem>>, vector<256x8xbf16>
    tpu.vector_store %arg9[%c16_21, %c16_22], %45 {strides = array<i32>} : memref<288x24xbf16, #tpu.memory_space<vmem>>, vector<256x8xbf16>,
    %c0_23 = arith.constant 0 : index
    %c0_24 = arith.constant 0 : index
    %47 = vector.load %arg9[%c0_23, %c0_24] : memref<288x24xbf16, #tpu.memory_space<vmem>>, vector<256x24xbf16>
    %c0_25 = arith.constant 0 : index
    %c0_26 = arith.constant 0 : index
    %c0_27 = arith.constant 0 : index
    %48 = vector.load %arg4[%c0_25, %c0_26, %c0_27] : memref<3x24x8xbf16, #tpu.memory_space<vmem>>, vector<1x24x8xbf16>
    %49 = vector.shape_cast %48 : vector<1x24x8xbf16> to vector<24x8xbf16>
    %cst_28 = arith.constant dense<0.000000e+00> : vector<256x8xf32>
    %50 = tpu.matmul %47, %49, %cst_28 {dimension_numbers = #tpu.dot_dimension_numbers<[1], [0], [0], [1], [0, 0, 1, 1], [], []>} : vector<256x24xbf16>, vector<24x8xbf16>, vector<256x8xf32> -> vector<256x8xf32>
    %c16_29 = arith.constant 16 : index
    %c0_30 = arith.constant 0 : index
    %51 = vector.load %arg9[%c16_29, %c0_30] : memref<288x24xbf16, #tpu.memory_space<vmem>>, vector<256x24xbf16>
    %c1 = arith.constant 1 : index
    %c0_31 = arith.constant 0 : index
    %c0_32 = arith.constant 0 : index
    %52 = vector.load %arg4[%c1, %c0_31, %c0_32] : memref<3x24x8xbf16, #tpu.memory_space<vmem>>, vector<1x24x8xbf16>
    %53 = vector.shape_cast %52 : vector<1x24x8xbf16> to vector<24x8xbf16>
    %cst_33 = arith.constant dense<0.000000e+00> : vector<256x8xf32>
    %54 = tpu.matmul %51, %53, %cst_33 {dimension_numbers = #tpu.dot_dimension_numbers<[1], [0], [0], [1], [0, 0, 1, 1], [], []>} : vector<256x24xbf16>, vector<24x8xbf16>, vector<256x8xf32> -> vector<256x8xf32>
    %55 = arith.addf %50, %54 : vector<256x8xf32>
    %c32 = arith.constant 32 : index
    %c0_34 = arith.constant 0 : index
    %56 = vector.load %arg9[%c32, %c0_34] : memref<288x24xbf16, #tpu.memory_space<vmem>>, vector<256x24xbf16>
    %c2 = arith.constant 2 : index
    %c0_35 = arith.constant 0 : index
    %c0_36 = arith.constant 0 : index
    %57 = vector.load %arg4[%c2, %c0_35, %c0_36] : memref<3x24x8xbf16, #tpu.memory_space<vmem>>, vector<1x24x8xbf16>
    %58 = vector.shape_cast %57 : vector<1x24x8xbf16> to vector<24x8xbf16>
    %cst_37 = arith.constant dense<0.000000e+00> : vector<256x8xf32>
    %59 = tpu.matmul %56, %58, %cst_37 {dimension_numbers = #tpu.dot_dimension_numbers<[1], [0], [0], [1], [0, 0, 1, 1], [], []>} : vector<256x24xbf16>, vector<24x8xbf16>, vector<256x8xf32> -> vector<256x8xf32>
    %60 = arith.addf %55, %59 : vector<256x8xf32>
    %c0_38 = arith.constant 0 : index
    %c0_39 = arith.constant 0 : index
    %61 = vector.load %arg5[%c0_38, %c0_39] : memref<1x8xf32, #tpu.memory_space<vmem>>, vector<1x8xf32>
    %62 = vector.broadcast %61 : vector<1x8xf32> to vector<256x8xf32>
    %63 = arith.addf %60, %62 : vector<256x8xf32>
    %cst_40 = arith.constant 0.000000e+00 : f32
    %64 = vector.broadcast %cst_40 : f32 to vector<256x8xf32>
    %65 = arith.maximumf %63, %64 : vector<256x8xf32>
    %c0_41 = arith.constant 0 : index
    %c0_42 = arith.constant 0 : index
    %66 = vector.load %arg10[%c0_41, %c0_42] : memref<256x24xf32, #tpu.memory_space<vmem>>, vector<256x8xf32>
    tpu.vector_store %arg10[%c0_41, %c0_42], %65 {strides = array<i32>} : memref<256x24xf32, #tpu.memory_space<vmem>>, vector<256x8xf32>,
    %67 = arith.extf %29 : vector<256x16xbf16> to vector<256x16xf32>
    %c0_43 = arith.constant 0 : index
    %c8_44 = arith.constant 8 : index
    %68 = vector.load %arg10[%c0_43, %c8_44] : memref<256x24xf32, #tpu.memory_space<vmem>>, vector<256x16xf32>
    tpu.vector_store %arg10[%c0_43, %c8_44], %67 {strides = array<i32>} : memref<256x24xf32, #tpu.memory_space<vmem>>, vector<256x16xf32>,
    %cst_45 = arith.constant 0.000000e+00 : f32
    %69 = vector.broadcast %cst_45 : f32 to vector<8x24xf32>
    %c0_46 = arith.constant 0 : index
    %c0_47 = arith.constant 0 : index
    %70 = tpu.strided_load %arg10[%c0_46, %c0_47] {strides = array<i32: 2, 1>} : memref<256x24xf32, #tpu.memory_space<vmem>>, vector<8x24xf32>
    %71 = arith.addf %69, %70 : vector<8x24xf32>
    %c1_48 = arith.constant 1 : index
    %c0_49 = arith.constant 0 : index
    %72 = tpu.strided_load %arg10[%c1_48, %c0_49] {strides = array<i32: 2, 1>} : memref<256x24xf32, #tpu.memory_space<vmem>>, vector<8x24xf32>
    %73 = arith.addf %71, %72 : vector<8x24xf32>
    %c16_50 = arith.constant 16 : index
    %c0_51 = arith.constant 0 : index
    %74 = tpu.strided_load %arg10[%c16_50, %c0_51] {strides = array<i32: 2, 1>} : memref<256x24xf32, #tpu.memory_space<vmem>>, vector<8x24xf32>
    %75 = arith.addf %73, %74 : vector<8x24xf32>
    %c17_52 = arith.constant 17 : index
    %c0_53 = arith.constant 0 : index
    %76 = tpu.strided_load %arg10[%c17_52, %c0_53] {strides = array<i32: 2, 1>} : memref<256x24xf32, #tpu.memory_space<vmem>>, vector<8x24xf32>
    %77 = arith.addf %75, %76 : vector<8x24xf32>
    %78 = arith.truncf %77 : vector<8x24xf32> to vector<8x24xbf16>
    %c0_54 = arith.constant 0 : index
    %c0_55 = arith.constant 0 : index
    %79 = vector.load %arg11[%c0_54, %c0_55] : memref<64x24xbf16, #tpu.memory_space<vmem>>, vector<8x24xbf16>
    tpu.vector_store %arg11[%c0_54, %c0_55], %78 {strides = array<i32>} : memref<64x24xbf16, #tpu.memory_space<vmem>>, vector<8x24xbf16>,
    %cst_56 = arith.constant 0.000000e+00 : f32
    %80 = vector.broadcast %cst_56 : f32 to vector<8x24xf32>
    %c32_57 = arith.constant 32 : index
    %c0_58 = arith.constant 0 : index
    %81 = tpu.strided_load %arg10[%c32_57, %c0_58] {strides = array<i32: 2, 1>} : memref<256x24xf32, #tpu.memory_space<vmem>>, vector<8x24xf32>
    %82 = arith.addf %80, %81 : vector<8x24xf32>
    %c33 = arith.constant 33 : index
    %c0_59 = arith.constant 0 : index
    %83 = tpu.strided_load %arg10[%c33, %c0_59] {strides = array<i32: 2, 1>} : memref<256x24xf32, #tpu.memory_space<vmem>>, vector<8x24xf32>
    %84 = arith.addf %82, %83 : vector<8x24xf32>
    %c48 = arith.constant 48 : index
    %c0_60 = arith.constant 0 : index
    %85 = tpu.strided_load %arg10[%c48, %c0_60] {strides = array<i32: 2, 1>} : memref<256x24xf32, #tpu.memory_space<vmem>>, vector<8x24xf32>
    %86 = arith.addf %84, %85 : vector<8x24xf32>
    %c49 = arith.constant 49 : index
    %c0_61 = arith.constant 0 : index
    %87 = tpu.strided_load %arg10[%c49, %c0_61] {strides = array<i32: 2, 1>} : memref<256x24xf32, #tpu.memory_space<vmem>>, vector<8x24xf32>
    %88 = arith.addf %86, %87 : vector<8x24xf32>
    %89 = arith.truncf %88 : vector<8x24xf32> to vector<8x24xbf16>
    %c8_62 = arith.constant 8 : index
    %c0_63 = arith.constant 0 : index
    %90 = vector.load %arg11[%c8_62, %c0_63] : memref<64x24xbf16, #tpu.memory_space<vmem>>, vector<8x24xbf16>
    tpu.vector_store %arg11[%c8_62, %c0_63], %89 {strides = array<i32>} : memref<64x24xbf16, #tpu.memory_space<vmem>>, vector<8x24xbf16>,
    %cst_64 = arith.constant 0.000000e+00 : f32
    %91 = vector.broadcast %cst_64 : f32 to vector<8x24xf32>
    %c64 = arith.constant 64 : index
    %c0_65 = arith.constant 0 : index
    %92 = tpu.strided_load %arg10[%c64, %c0_65] {strides = array<i32: 2, 1>} : memref<256x24xf32, #tpu.memory_space<vmem>>, vector<8x24xf32>
    %93 = arith.addf %91, %92 : vector<8x24xf32>
    %c65 = arith.constant 65 : index
    %c0_66 = arith.constant 0 : index
    %94 = tpu.strided_load %arg10[%c65, %c0_66] {strides = array<i32: 2, 1>} : memref<256x24xf32, #tpu.memory_space<vmem>>, vector<8x24xf32>
    %95 = arith.addf %93, %94 : vector<8x24xf32>
    %c80 = arith.constant 80 : index
    %c0_67 = arith.constant 0 : index
    %96 = tpu.strided_load %arg10[%c80, %c0_67] {strides = array<i32: 2, 1>} : memref<256x24xf32, #tpu.memory_space<vmem>>, vector<8x24xf32>
    %97 = arith.addf %95, %96 : vector<8x24xf32>
    %c81 = arith.constant 81 : index
    %c0_68 = arith.constant 0 : index
    %98 = tpu.strided_load %arg10[%c81, %c0_68] {strides = array<i32: 2, 1>} : memref<256x24xf32, #tpu.memory_space<vmem>>, vector<8x24xf32>
    %99 = arith.addf %97, %98 : vector<8x24xf32>
    %100 = arith.truncf %99 : vector<8x24xf32> to vector<8x24xbf16>
    %c16_69 = arith.constant 16 : index
    %c0_70 = arith.constant 0 : index
    %101 = vector.load %arg11[%c16_69, %c0_70] : memref<64x24xbf16, #tpu.memory_space<vmem>>, vector<8x24xbf16>
    tpu.vector_store %arg11[%c16_69, %c0_70], %100 {strides = array<i32>} : memref<64x24xbf16, #tpu.memory_space<vmem>>, vector<8x24xbf16>,
    %cst_71 = arith.constant 0.000000e+00 : f32
    %102 = vector.broadcast %cst_71 : f32 to vector<8x24xf32>
    %c96 = arith.constant 96 : index
    %c0_72 = arith.constant 0 : index
    %103 = tpu.strided_load %arg10[%c96, %c0_72] {strides = array<i32: 2, 1>} : memref<256x24xf32, #tpu.memory_space<vmem>>, vector<8x24xf32>
    %104 = arith.addf %102, %103 : vector<8x24xf32>
    %c97 = arith.constant 97 : index
    %c0_73 = arith.constant 0 : index
    %105 = tpu.strided_load %arg10[%c97, %c0_73] {strides = array<i32: 2, 1>} : memref<256x24xf32, #tpu.memory_space<vmem>>, vector<8x24xf32>
    %106 = arith.addf %104, %105 : vector<8x24xf32>
    %c112 = arith.constant 112 : index
    %c0_74 = arith.constant 0 : index
    %107 = tpu.strided_load %arg10[%c112, %c0_74] {strides = array<i32: 2, 1>} : memref<256x24xf32, #tpu.memory_space<vmem>>, vector<8x24xf32>
    %108 = arith.addf %106, %107 : vector<8x24xf32>
    %c113 = arith.constant 113 : index
    %c0_75 = arith.constant 0 : index
    %109 = tpu.strided_load %arg10[%c113, %c0_75] {strides = array<i32: 2, 1>} : memref<256x24xf32, #tpu.memory_space<vmem>>, vector<8x24xf32>
    %110 = arith.addf %108, %109 : vector<8x24xf32>
    %111 = arith.truncf %110 : vector<8x24xf32> to vector<8x24xbf16>
    %c24 = arith.constant 24 : index
    %c0_76 = arith.constant 0 : index
    %112 = vector.load %arg11[%c24, %c0_76] : memref<64x24xbf16, #tpu.memory_space<vmem>>, vector<8x24xbf16>
    tpu.vector_store %arg11[%c24, %c0_76], %111 {strides = array<i32>} : memref<64x24xbf16, #tpu.memory_space<vmem>>, vector<8x24xbf16>,
    %cst_77 = arith.constant 0.000000e+00 : f32
    %113 = vector.broadcast %cst_77 : f32 to vector<8x24xf32>
    %c128 = arith.constant 128 : index
    %c0_78 = arith.constant 0 : index
    %114 = tpu.strided_load %arg10[%c128, %c0_78] {strides = array<i32: 2, 1>} : memref<256x24xf32, #tpu.memory_space<vmem>>, vector<8x24xf32>
    %115 = arith.addf %113, %114 : vector<8x24xf32>
    %c129 = arith.constant 129 : index
    %c0_79 = arith.constant 0 : index
    %116 = tpu.strided_load %arg10[%c129, %c0_79] {strides = array<i32: 2, 1>} : memref<256x24xf32, #tpu.memory_space<vmem>>, vector<8x24xf32>
    %117 = arith.addf %115, %116 : vector<8x24xf32>
    %c144 = arith.constant 144 : index
    %c0_80 = arith.constant 0 : index
    %118 = tpu.strided_load %arg10[%c144, %c0_80] {strides = array<i32: 2, 1>} : memref<256x24xf32, #tpu.memory_space<vmem>>, vector<8x24xf32>
    %119 = arith.addf %117, %118 : vector<8x24xf32>
    %c145 = arith.constant 145 : index
    %c0_81 = arith.constant 0 : index
    %120 = tpu.strided_load %arg10[%c145, %c0_81] {strides = array<i32: 2, 1>} : memref<256x24xf32, #tpu.memory_space<vmem>>, vector<8x24xf32>
    %121 = arith.addf %119, %120 : vector<8x24xf32>
    %122 = arith.truncf %121 : vector<8x24xf32> to vector<8x24xbf16>
    %c32_82 = arith.constant 32 : index
    %c0_83 = arith.constant 0 : index
    %123 = vector.load %arg11[%c32_82, %c0_83] : memref<64x24xbf16, #tpu.memory_space<vmem>>, vector<8x24xbf16>
    tpu.vector_store %arg11[%c32_82, %c0_83], %122 {strides = array<i32>} : memref<64x24xbf16, #tpu.memory_space<vmem>>, vector<8x24xbf16>,
    %cst_84 = arith.constant 0.000000e+00 : f32
    %124 = vector.broadcast %cst_84 : f32 to vector<8x24xf32>
    %c160 = arith.constant 160 : index
    %c0_85 = arith.constant 0 : index
    %125 = tpu.strided_load %arg10[%c160, %c0_85] {strides = array<i32: 2, 1>} : memref<256x24xf32, #tpu.memory_space<vmem>>, vector<8x24xf32>
    %126 = arith.addf %124, %125 : vector<8x24xf32>
    %c161 = arith.constant 161 : index
    %c0_86 = arith.constant 0 : index
    %127 = tpu.strided_load %arg10[%c161, %c0_86] {strides = array<i32: 2, 1>} : memref<256x24xf32, #tpu.memory_space<vmem>>, vector<8x24xf32>
    %128 = arith.addf %126, %127 : vector<8x24xf32>
    %c176 = arith.constant 176 : index
    %c0_87 = arith.constant 0 : index
    %129 = tpu.strided_load %arg10[%c176, %c0_87] {strides = array<i32: 2, 1>} : memref<256x24xf32, #tpu.memory_space<vmem>>, vector<8x24xf32>
    %130 = arith.addf %128, %129 : vector<8x24xf32>
    %c177 = arith.constant 177 : index
    %c0_88 = arith.constant 0 : index
    %131 = tpu.strided_load %arg10[%c177, %c0_88] {strides = array<i32: 2, 1>} : memref<256x24xf32, #tpu.memory_space<vmem>>, vector<8x24xf32>
    %132 = arith.addf %130, %131 : vector<8x24xf32>
    %133 = arith.truncf %132 : vector<8x24xf32> to vector<8x24xbf16>
    %c40 = arith.constant 40 : index
    %c0_89 = arith.constant 0 : index
    %134 = vector.load %arg11[%c40, %c0_89] : memref<64x24xbf16, #tpu.memory_space<vmem>>, vector<8x24xbf16>
    tpu.vector_store %arg11[%c40, %c0_89], %133 {strides = array<i32>} : memref<64x24xbf16, #tpu.memory_space<vmem>>, vector<8x24xbf16>,
    %cst_90 = arith.constant 0.000000e+00 : f32
    %135 = vector.broadcast %cst_90 : f32 to vector<8x24xf32>
    %c192 = arith.constant 192 : index
    %c0_91 = arith.constant 0 : index
    %136 = tpu.strided_load %arg10[%c192, %c0_91] {strides = array<i32: 2, 1>} : memref<256x24xf32, #tpu.memory_space<vmem>>, vector<8x24xf32>
    %137 = arith.addf %135, %136 : vector<8x24xf32>
    %c193 = arith.constant 193 : index
    %c0_92 = arith.constant 0 : index
    %138 = tpu.strided_load %arg10[%c193, %c0_92] {strides = array<i32: 2, 1>} : memref<256x24xf32, #tpu.memory_space<vmem>>, vector<8x24xf32>
    %139 = arith.addf %137, %138 : vector<8x24xf32>
    %c208 = arith.constant 208 : index
    %c0_93 = arith.constant 0 : index
    %140 = tpu.strided_load %arg10[%c208, %c0_93] {strides = array<i32: 2, 1>} : memref<256x24xf32, #tpu.memory_space<vmem>>, vector<8x24xf32>
    %141 = arith.addf %139, %140 : vector<8x24xf32>
    %c209 = arith.constant 209 : index
    %c0_94 = arith.constant 0 : index
    %142 = tpu.strided_load %arg10[%c209, %c0_94] {strides = array<i32: 2, 1>} : memref<256x24xf32, #tpu.memory_space<vmem>>, vector<8x24xf32>
    %143 = arith.addf %141, %142 : vector<8x24xf32>
    %144 = arith.truncf %143 : vector<8x24xf32> to vector<8x24xbf16>
    %c48_95 = arith.constant 48 : index
    %c0_96 = arith.constant 0 : index
    %145 = vector.load %arg11[%c48_95, %c0_96] : memref<64x24xbf16, #tpu.memory_space<vmem>>, vector<8x24xbf16>
    tpu.vector_store %arg11[%c48_95, %c0_96], %144 {strides = array<i32>} : memref<64x24xbf16, #tpu.memory_space<vmem>>, vector<8x24xbf16>,
    %cst_97 = arith.constant 0.000000e+00 : f32
    %146 = vector.broadcast %cst_97 : f32 to vector<8x24xf32>
    %c224 = arith.constant 224 : index
    %c0_98 = arith.constant 0 : index
    %147 = tpu.strided_load %arg10[%c224, %c0_98] {strides = array<i32: 2, 1>} : memref<256x24xf32, #tpu.memory_space<vmem>>, vector<8x24xf32>
    %148 = arith.addf %146, %147 : vector<8x24xf32>
    %c225 = arith.constant 225 : index
    %c0_99 = arith.constant 0 : index
    %149 = tpu.strided_load %arg10[%c225, %c0_99] {strides = array<i32: 2, 1>} : memref<256x24xf32, #tpu.memory_space<vmem>>, vector<8x24xf32>
    %150 = arith.addf %148, %149 : vector<8x24xf32>
    %c240 = arith.constant 240 : index
    %c0_100 = arith.constant 0 : index
    %151 = tpu.strided_load %arg10[%c240, %c0_100] {strides = array<i32: 2, 1>} : memref<256x24xf32, #tpu.memory_space<vmem>>, vector<8x24xf32>
    %152 = arith.addf %150, %151 : vector<8x24xf32>
    %c241 = arith.constant 241 : index
    %c0_101 = arith.constant 0 : index
    %153 = tpu.strided_load %arg10[%c241, %c0_101] {strides = array<i32: 2, 1>} : memref<256x24xf32, #tpu.memory_space<vmem>>, vector<8x24xf32>
    %154 = arith.addf %152, %153 : vector<8x24xf32>
    %155 = arith.truncf %154 : vector<8x24xf32> to vector<8x24xbf16>
    %c56 = arith.constant 56 : index
    %c0_102 = arith.constant 0 : index
    %156 = vector.load %arg11[%c56, %c0_102] : memref<64x24xbf16, #tpu.memory_space<vmem>>, vector<8x24xbf16>
    tpu.vector_store %arg11[%c56, %c0_102], %155 {strides = array<i32>} : memref<64x24xbf16, #tpu.memory_space<vmem>>, vector<8x24xbf16>,
    %c0_103 = arith.constant 0 : index
    %c0_104 = arith.constant 0 : index
    %157 = vector.load %arg11[%c0_103, %c0_104] : memref<64x24xbf16, #tpu.memory_space<vmem>>, vector<64x24xbf16>
    %c0_105 = arith.constant 0 : index
    %c0_106 = arith.constant 0 : index
    %158 = vector.load %arg6[%c0_105, %c0_106] : memref<24x32xbf16, #tpu.memory_space<vmem>>, vector<24x32xbf16>
    %cst_107 = arith.constant dense<0.000000e+00> : vector<64x32xf32>
    %159 = tpu.matmul %157, %158, %cst_107 {dimension_numbers = #tpu.dot_dimension_numbers<[1], [0], [0], [1], [0, 0, 1, 1], [], []>} : vector<64x24xbf16>, vector<24x32xbf16>, vector<64x32xf32> -> vector<64x32xf32>
    %c0_108 = arith.constant 0 : index
    %c0_109 = arith.constant 0 : index
    %160 = vector.load %arg7[%c0_108, %c0_109] : memref<1x32xf32, #tpu.memory_space<vmem>>, vector<1x32xf32>
    %161 = vector.broadcast %160 : vector<1x32xf32> to vector<64x32xf32>
    %162 = arith.addf %159, %161 : vector<64x32xf32>
    %cst_110 = arith.constant 0.000000e+00 : f32
    %163 = vector.broadcast %cst_110 : f32 to vector<64x32xf32>
    %164 = arith.maximumf %162, %163 : vector<64x32xf32>
    %c0_111 = arith.constant 0 : index
    %c0_112 = arith.constant 0 : index
    %c0_113 = arith.constant 0 : index
    %165 = vector.load %arg8[%c0_111, %c0_112, %c0_113] : memref<2x64x32xf32, #tpu.memory_space<vmem>>, vector<1x64x32xf32>
    %166 = vector.shape_cast %165 : vector<1x64x32xf32> to vector<64x32xf32>
    %167 = vector.shape_cast %164 : vector<64x32xf32> to vector<1x64x32xf32>
    tpu.vector_store %arg8[%c0_111, %c0_112, %c0_113], %167 {strides = array<i32>} : memref<2x64x32xf32, #tpu.memory_space<vmem>>, vector<1x64x32xf32>,
    %c1_114 = arith.constant 1 : index
    %c0_115 = arith.constant 0 : index
    %c0_116 = arith.constant 0 : index
    %168 = vector.load %arg1[%c1_114, %c0_115, %c0_116] : memref<2x256x16xbf16, #tpu.memory_space<vmem>>, vector<1x256x16xbf16>
    %169 = vector.shape_cast %168 : vector<1x256x16xbf16> to vector<256x16xbf16>
    %c0_117 = arith.constant 0 : index
    %c0_118 = arith.constant 0 : index
    %170 = vector.load %arg2[%c0_117, %c0_118] : memref<16x8xbf16, #tpu.memory_space<vmem>>, vector<16x8xbf16>
    %cst_119 = arith.constant dense<0.000000e+00> : vector<256x8xf32>
    %171 = tpu.matmul %169, %170, %cst_119 {dimension_numbers = #tpu.dot_dimension_numbers<[1], [0], [0], [1], [0, 0, 1, 1], [], []>} : vector<256x16xbf16>, vector<16x8xbf16>, vector<256x8xf32> -> vector<256x8xf32>
    %c0_120 = arith.constant 0 : index
    %c0_121 = arith.constant 0 : index
    %172 = vector.load %arg3[%c0_120, %c0_121] : memref<1x8xf32, #tpu.memory_space<vmem>>, vector<1x8xf32>
    %173 = vector.broadcast %172 : vector<1x8xf32> to vector<256x8xf32>
    %174 = arith.addf %171, %173 : vector<256x8xf32>
    %cst_122 = arith.constant 0.000000e+00 : f32
    %175 = vector.broadcast %cst_122 : f32 to vector<256x8xf32>
    %176 = arith.maximumf %174, %175 : vector<256x8xf32>
    %177 = arith.truncf %176 : vector<256x8xf32> to vector<256x8xbf16>
    %c16_123 = arith.constant 16 : index
    %c8_124 = arith.constant 8 : index
    %178 = vector.load %arg9[%c16_123, %c8_124] : memref<288x24xbf16, #tpu.memory_space<vmem>>, vector<256x8xbf16>
    tpu.vector_store %arg9[%c16_123, %c8_124], %177 {strides = array<i32>} : memref<288x24xbf16, #tpu.memory_space<vmem>>, vector<256x8xbf16>,
    %c15_125 = arith.constant 15 : index
    %c8_126 = arith.constant 8 : index
    %179 = vector.load %arg9[%c15_125, %c8_126] : memref<288x24xbf16, #tpu.memory_space<vmem>>, vector<256x8xbf16>
    %c17_127 = arith.constant 17 : index
    %c8_128 = arith.constant 8 : index
    %180 = vector.load %arg9[%c17_127, %c8_128] : memref<288x24xbf16, #tpu.memory_space<vmem>>, vector<256x8xbf16>
    %cst_129 = arith.constant 0.000000e+00 : bf16
    %181 = vector.broadcast %cst_129 : bf16 to vector<256x8xbf16>
    %182 = arith.select %20, %179, %181 : vector<256x8xi1>, vector<256x8xbf16>
    %c16_130 = arith.constant 16 : index
    %c0_131 = arith.constant 0 : index
    %183 = vector.load %arg9[%c16_130, %c0_131] : memref<288x24xbf16, #tpu.memory_space<vmem>>, vector<256x8xbf16>
    tpu.vector_store %arg9[%c16_130, %c0_131], %182 {strides = array<i32>} : memref<288x24xbf16, #tpu.memory_space<vmem>>, vector<256x8xbf16>,
    %cst_132 = arith.constant 0.000000e+00 : bf16
    %184 = vector.broadcast %cst_132 : bf16 to vector<256x8xbf16>
    %185 = arith.select %24, %180, %184 : vector<256x8xi1>, vector<256x8xbf16>
    %c16_133 = arith.constant 16 : index
    %c16_134 = arith.constant 16 : index
    %186 = vector.load %arg9[%c16_133, %c16_134] : memref<288x24xbf16, #tpu.memory_space<vmem>>, vector<256x8xbf16>
    tpu.vector_store %arg9[%c16_133, %c16_134], %185 {strides = array<i32>} : memref<288x24xbf16, #tpu.memory_space<vmem>>, vector<256x8xbf16>,
    %c0_135 = arith.constant 0 : index
    %c0_136 = arith.constant 0 : index
    %187 = vector.load %arg9[%c0_135, %c0_136] : memref<288x24xbf16, #tpu.memory_space<vmem>>, vector<256x24xbf16>
    %c0_137 = arith.constant 0 : index
    %c0_138 = arith.constant 0 : index
    %c0_139 = arith.constant 0 : index
    %188 = vector.load %arg4[%c0_137, %c0_138, %c0_139] : memref<3x24x8xbf16, #tpu.memory_space<vmem>>, vector<1x24x8xbf16>
    %189 = vector.shape_cast %188 : vector<1x24x8xbf16> to vector<24x8xbf16>
    %cst_140 = arith.constant dense<0.000000e+00> : vector<256x8xf32>
    %190 = tpu.matmul %187, %189, %cst_140 {dimension_numbers = #tpu.dot_dimension_numbers<[1], [0], [0], [1], [0, 0, 1, 1], [], []>} : vector<256x24xbf16>, vector<24x8xbf16>, vector<256x8xf32> -> vector<256x8xf32>
    %c16_141 = arith.constant 16 : index
    %c0_142 = arith.constant 0 : index
    %191 = vector.load %arg9[%c16_141, %c0_142] : memref<288x24xbf16, #tpu.memory_space<vmem>>, vector<256x24xbf16>
    %c1_143 = arith.constant 1 : index
    %c0_144 = arith.constant 0 : index
    %c0_145 = arith.constant 0 : index
    %192 = vector.load %arg4[%c1_143, %c0_144, %c0_145] : memref<3x24x8xbf16, #tpu.memory_space<vmem>>, vector<1x24x8xbf16>
    %193 = vector.shape_cast %192 : vector<1x24x8xbf16> to vector<24x8xbf16>
    %cst_146 = arith.constant dense<0.000000e+00> : vector<256x8xf32>
    %194 = tpu.matmul %191, %193, %cst_146 {dimension_numbers = #tpu.dot_dimension_numbers<[1], [0], [0], [1], [0, 0, 1, 1], [], []>} : vector<256x24xbf16>, vector<24x8xbf16>, vector<256x8xf32> -> vector<256x8xf32>
    %195 = arith.addf %190, %194 : vector<256x8xf32>
    %c32_147 = arith.constant 32 : index
    %c0_148 = arith.constant 0 : index
    %196 = vector.load %arg9[%c32_147, %c0_148] : memref<288x24xbf16, #tpu.memory_space<vmem>>, vector<256x24xbf16>
    %c2_149 = arith.constant 2 : index
    %c0_150 = arith.constant 0 : index
    %c0_151 = arith.constant 0 : index
    %197 = vector.load %arg4[%c2_149, %c0_150, %c0_151] : memref<3x24x8xbf16, #tpu.memory_space<vmem>>, vector<1x24x8xbf16>
    %198 = vector.shape_cast %197 : vector<1x24x8xbf16> to vector<24x8xbf16>
    %cst_152 = arith.constant dense<0.000000e+00> : vector<256x8xf32>
    %199 = tpu.matmul %196, %198, %cst_152 {dimension_numbers = #tpu.dot_dimension_numbers<[1], [0], [0], [1], [0, 0, 1, 1], [], []>} : vector<256x24xbf16>, vector<24x8xbf16>, vector<256x8xf32> -> vector<256x8xf32>
    %200 = arith.addf %195, %199 : vector<256x8xf32>
    %c0_153 = arith.constant 0 : index
    %c0_154 = arith.constant 0 : index
    %201 = vector.load %arg5[%c0_153, %c0_154] : memref<1x8xf32, #tpu.memory_space<vmem>>, vector<1x8xf32>
    %202 = vector.broadcast %201 : vector<1x8xf32> to vector<256x8xf32>
    %203 = arith.addf %200, %202 : vector<256x8xf32>
    %cst_155 = arith.constant 0.000000e+00 : f32
    %204 = vector.broadcast %cst_155 : f32 to vector<256x8xf32>
    %205 = arith.maximumf %203, %204 : vector<256x8xf32>
    %c0_156 = arith.constant 0 : index
    %c0_157 = arith.constant 0 : index
    %206 = vector.load %arg10[%c0_156, %c0_157] : memref<256x24xf32, #tpu.memory_space<vmem>>, vector<256x8xf32>
    tpu.vector_store %arg10[%c0_156, %c0_157], %205 {strides = array<i32>} : memref<256x24xf32, #tpu.memory_space<vmem>>, vector<256x8xf32>,
    %207 = arith.extf %169 : vector<256x16xbf16> to vector<256x16xf32>
    %c0_158 = arith.constant 0 : index
    %c8_159 = arith.constant 8 : index
    %208 = vector.load %arg10[%c0_158, %c8_159] : memref<256x24xf32, #tpu.memory_space<vmem>>, vector<256x16xf32>
    tpu.vector_store %arg10[%c0_158, %c8_159], %207 {strides = array<i32>} : memref<256x24xf32, #tpu.memory_space<vmem>>, vector<256x16xf32>,
    %cst_160 = arith.constant 0.000000e+00 : f32
    %209 = vector.broadcast %cst_160 : f32 to vector<8x24xf32>
    %c0_161 = arith.constant 0 : index
    %c0_162 = arith.constant 0 : index
    %210 = tpu.strided_load %arg10[%c0_161, %c0_162] {strides = array<i32: 2, 1>} : memref<256x24xf32, #tpu.memory_space<vmem>>, vector<8x24xf32>
    %211 = arith.addf %209, %210 : vector<8x24xf32>
    %c1_163 = arith.constant 1 : index
    %c0_164 = arith.constant 0 : index
    %212 = tpu.strided_load %arg10[%c1_163, %c0_164] {strides = array<i32: 2, 1>} : memref<256x24xf32, #tpu.memory_space<vmem>>, vector<8x24xf32>
    %213 = arith.addf %211, %212 : vector<8x24xf32>
    %c16_165 = arith.constant 16 : index
    %c0_166 = arith.constant 0 : index
    %214 = tpu.strided_load %arg10[%c16_165, %c0_166] {strides = array<i32: 2, 1>} : memref<256x24xf32, #tpu.memory_space<vmem>>, vector<8x24xf32>
    %215 = arith.addf %213, %214 : vector<8x24xf32>
    %c17_167 = arith.constant 17 : index
    %c0_168 = arith.constant 0 : index
    %216 = tpu.strided_load %arg10[%c17_167, %c0_168] {strides = array<i32: 2, 1>} : memref<256x24xf32, #tpu.memory_space<vmem>>, vector<8x24xf32>
    %217 = arith.addf %215, %216 : vector<8x24xf32>
    %218 = arith.truncf %217 : vector<8x24xf32> to vector<8x24xbf16>
    %c0_169 = arith.constant 0 : index
    %c0_170 = arith.constant 0 : index
    %219 = vector.load %arg11[%c0_169, %c0_170] : memref<64x24xbf16, #tpu.memory_space<vmem>>, vector<8x24xbf16>
    tpu.vector_store %arg11[%c0_169, %c0_170], %218 {strides = array<i32>} : memref<64x24xbf16, #tpu.memory_space<vmem>>, vector<8x24xbf16>,
    %cst_171 = arith.constant 0.000000e+00 : f32
    %220 = vector.broadcast %cst_171 : f32 to vector<8x24xf32>
    %c32_172 = arith.constant 32 : index
    %c0_173 = arith.constant 0 : index
    %221 = tpu.strided_load %arg10[%c32_172, %c0_173] {strides = array<i32: 2, 1>} : memref<256x24xf32, #tpu.memory_space<vmem>>, vector<8x24xf32>
    %222 = arith.addf %220, %221 : vector<8x24xf32>
    %c33_174 = arith.constant 33 : index
    %c0_175 = arith.constant 0 : index
    %223 = tpu.strided_load %arg10[%c33_174, %c0_175] {strides = array<i32: 2, 1>} : memref<256x24xf32, #tpu.memory_space<vmem>>, vector<8x24xf32>
    %224 = arith.addf %222, %223 : vector<8x24xf32>
    %c48_176 = arith.constant 48 : index
    %c0_177 = arith.constant 0 : index
    %225 = tpu.strided_load %arg10[%c48_176, %c0_177] {strides = array<i32: 2, 1>} : memref<256x24xf32, #tpu.memory_space<vmem>>, vector<8x24xf32>
    %226 = arith.addf %224, %225 : vector<8x24xf32>
    %c49_178 = arith.constant 49 : index
    %c0_179 = arith.constant 0 : index
    %227 = tpu.strided_load %arg10[%c49_178, %c0_179] {strides = array<i32: 2, 1>} : memref<256x24xf32, #tpu.memory_space<vmem>>, vector<8x24xf32>
    %228 = arith.addf %226, %227 : vector<8x24xf32>
    %229 = arith.truncf %228 : vector<8x24xf32> to vector<8x24xbf16>
    %c8_180 = arith.constant 8 : index
    %c0_181 = arith.constant 0 : index
    %230 = vector.load %arg11[%c8_180, %c0_181] : memref<64x24xbf16, #tpu.memory_space<vmem>>, vector<8x24xbf16>
    tpu.vector_store %arg11[%c8_180, %c0_181], %229 {strides = array<i32>} : memref<64x24xbf16, #tpu.memory_space<vmem>>, vector<8x24xbf16>,
    %cst_182 = arith.constant 0.000000e+00 : f32
    %231 = vector.broadcast %cst_182 : f32 to vector<8x24xf32>
    %c64_183 = arith.constant 64 : index
    %c0_184 = arith.constant 0 : index
    %232 = tpu.strided_load %arg10[%c64_183, %c0_184] {strides = array<i32: 2, 1>} : memref<256x24xf32, #tpu.memory_space<vmem>>, vector<8x24xf32>
    %233 = arith.addf %231, %232 : vector<8x24xf32>
    %c65_185 = arith.constant 65 : index
    %c0_186 = arith.constant 0 : index
    %234 = tpu.strided_load %arg10[%c65_185, %c0_186] {strides = array<i32: 2, 1>} : memref<256x24xf32, #tpu.memory_space<vmem>>, vector<8x24xf32>
    %235 = arith.addf %233, %234 : vector<8x24xf32>
    %c80_187 = arith.constant 80 : index
    %c0_188 = arith.constant 0 : index
    %236 = tpu.strided_load %arg10[%c80_187, %c0_188] {strides = array<i32: 2, 1>} : memref<256x24xf32, #tpu.memory_space<vmem>>, vector<8x24xf32>
    %237 = arith.addf %235, %236 : vector<8x24xf32>
    %c81_189 = arith.constant 81 : index
    %c0_190 = arith.constant 0 : index
    %238 = tpu.strided_load %arg10[%c81_189, %c0_190] {strides = array<i32: 2, 1>} : memref<256x24xf32, #tpu.memory_space<vmem>>, vector<8x24xf32>
    %239 = arith.addf %237, %238 : vector<8x24xf32>
    %240 = arith.truncf %239 : vector<8x24xf32> to vector<8x24xbf16>
    %c16_191 = arith.constant 16 : index
    %c0_192 = arith.constant 0 : index
    %241 = vector.load %arg11[%c16_191, %c0_192] : memref<64x24xbf16, #tpu.memory_space<vmem>>, vector<8x24xbf16>
    tpu.vector_store %arg11[%c16_191, %c0_192], %240 {strides = array<i32>} : memref<64x24xbf16, #tpu.memory_space<vmem>>, vector<8x24xbf16>,
    %cst_193 = arith.constant 0.000000e+00 : f32
    %242 = vector.broadcast %cst_193 : f32 to vector<8x24xf32>
    %c96_194 = arith.constant 96 : index
    %c0_195 = arith.constant 0 : index
    %243 = tpu.strided_load %arg10[%c96_194, %c0_195] {strides = array<i32: 2, 1>} : memref<256x24xf32, #tpu.memory_space<vmem>>, vector<8x24xf32>
    %244 = arith.addf %242, %243 : vector<8x24xf32>
    %c97_196 = arith.constant 97 : index
    %c0_197 = arith.constant 0 : index
    %245 = tpu.strided_load %arg10[%c97_196, %c0_197] {strides = array<i32: 2, 1>} : memref<256x24xf32, #tpu.memory_space<vmem>>, vector<8x24xf32>
    %246 = arith.addf %244, %245 : vector<8x24xf32>
    %c112_198 = arith.constant 112 : index
    %c0_199 = arith.constant 0 : index
    %247 = tpu.strided_load %arg10[%c112_198, %c0_199] {strides = array<i32: 2, 1>} : memref<256x24xf32, #tpu.memory_space<vmem>>, vector<8x24xf32>
    %248 = arith.addf %246, %247 : vector<8x24xf32>
    %c113_200 = arith.constant 113 : index
    %c0_201 = arith.constant 0 : index
    %249 = tpu.strided_load %arg10[%c113_200, %c0_201] {strides = array<i32: 2, 1>} : memref<256x24xf32, #tpu.memory_space<vmem>>, vector<8x24xf32>
    %250 = arith.addf %248, %249 : vector<8x24xf32>
    %251 = arith.truncf %250 : vector<8x24xf32> to vector<8x24xbf16>
    %c24_202 = arith.constant 24 : index
    %c0_203 = arith.constant 0 : index
    %252 = vector.load %arg11[%c24_202, %c0_203] : memref<64x24xbf16, #tpu.memory_space<vmem>>, vector<8x24xbf16>
    tpu.vector_store %arg11[%c24_202, %c0_203], %251 {strides = array<i32>} : memref<64x24xbf16, #tpu.memory_space<vmem>>, vector<8x24xbf16>,
    %cst_204 = arith.constant 0.000000e+00 : f32
    %253 = vector.broadcast %cst_204 : f32 to vector<8x24xf32>
    %c128_205 = arith.constant 128 : index
    %c0_206 = arith.constant 0 : index
    %254 = tpu.strided_load %arg10[%c128_205, %c0_206] {strides = array<i32: 2, 1>} : memref<256x24xf32, #tpu.memory_space<vmem>>, vector<8x24xf32>
    %255 = arith.addf %253, %254 : vector<8x24xf32>
    %c129_207 = arith.constant 129 : index
    %c0_208 = arith.constant 0 : index
    %256 = tpu.strided_load %arg10[%c129_207, %c0_208] {strides = array<i32: 2, 1>} : memref<256x24xf32, #tpu.memory_space<vmem>>, vector<8x24xf32>
    %257 = arith.addf %255, %256 : vector<8x24xf32>
    %c144_209 = arith.constant 144 : index
    %c0_210 = arith.constant 0 : index
    %258 = tpu.strided_load %arg10[%c144_209, %c0_210] {strides = array<i32: 2, 1>} : memref<256x24xf32, #tpu.memory_space<vmem>>, vector<8x24xf32>
    %259 = arith.addf %257, %258 : vector<8x24xf32>
    %c145_211 = arith.constant 145 : index
    %c0_212 = arith.constant 0 : index
    %260 = tpu.strided_load %arg10[%c145_211, %c0_212] {strides = array<i32: 2, 1>} : memref<256x24xf32, #tpu.memory_space<vmem>>, vector<8x24xf32>
    %261 = arith.addf %259, %260 : vector<8x24xf32>
    %262 = arith.truncf %261 : vector<8x24xf32> to vector<8x24xbf16>
    %c32_213 = arith.constant 32 : index
    %c0_214 = arith.constant 0 : index
    %263 = vector.load %arg11[%c32_213, %c0_214] : memref<64x24xbf16, #tpu.memory_space<vmem>>, vector<8x24xbf16>
    tpu.vector_store %arg11[%c32_213, %c0_214], %262 {strides = array<i32>} : memref<64x24xbf16, #tpu.memory_space<vmem>>, vector<8x24xbf16>,
    %cst_215 = arith.constant 0.000000e+00 : f32
    %264 = vector.broadcast %cst_215 : f32 to vector<8x24xf32>
    %c160_216 = arith.constant 160 : index
    %c0_217 = arith.constant 0 : index
    %265 = tpu.strided_load %arg10[%c160_216, %c0_217] {strides = array<i32: 2, 1>} : memref<256x24xf32, #tpu.memory_space<vmem>>, vector<8x24xf32>
    %266 = arith.addf %264, %265 : vector<8x24xf32>
    %c161_218 = arith.constant 161 : index
    %c0_219 = arith.constant 0 : index
    %267 = tpu.strided_load %arg10[%c161_218, %c0_219] {strides = array<i32: 2, 1>} : memref<256x24xf32, #tpu.memory_space<vmem>>, vector<8x24xf32>
    %268 = arith.addf %266, %267 : vector<8x24xf32>
    %c176_220 = arith.constant 176 : index
    %c0_221 = arith.constant 0 : index
    %269 = tpu.strided_load %arg10[%c176_220, %c0_221] {strides = array<i32: 2, 1>} : memref<256x24xf32, #tpu.memory_space<vmem>>, vector<8x24xf32>
    %270 = arith.addf %268, %269 : vector<8x24xf32>
    %c177_222 = arith.constant 177 : index
    %c0_223 = arith.constant 0 : index
    %271 = tpu.strided_load %arg10[%c177_222, %c0_223] {strides = array<i32: 2, 1>} : memref<256x24xf32, #tpu.memory_space<vmem>>, vector<8x24xf32>
    %272 = arith.addf %270, %271 : vector<8x24xf32>
    %273 = arith.truncf %272 : vector<8x24xf32> to vector<8x24xbf16>
    %c40_224 = arith.constant 40 : index
    %c0_225 = arith.constant 0 : index
    %274 = vector.load %arg11[%c40_224, %c0_225] : memref<64x24xbf16, #tpu.memory_space<vmem>>, vector<8x24xbf16>
    tpu.vector_store %arg11[%c40_224, %c0_225], %273 {strides = array<i32>} : memref<64x24xbf16, #tpu.memory_space<vmem>>, vector<8x24xbf16>,
    %cst_226 = arith.constant 0.000000e+00 : f32
    %275 = vector.broadcast %cst_226 : f32 to vector<8x24xf32>
    %c192_227 = arith.constant 192 : index
    %c0_228 = arith.constant 0 : index
    %276 = tpu.strided_load %arg10[%c192_227, %c0_228] {strides = array<i32: 2, 1>} : memref<256x24xf32, #tpu.memory_space<vmem>>, vector<8x24xf32>
    %277 = arith.addf %275, %276 : vector<8x24xf32>
    %c193_229 = arith.constant 193 : index
    %c0_230 = arith.constant 0 : index
    %278 = tpu.strided_load %arg10[%c193_229, %c0_230] {strides = array<i32: 2, 1>} : memref<256x24xf32, #tpu.memory_space<vmem>>, vector<8x24xf32>
    %279 = arith.addf %277, %278 : vector<8x24xf32>
    %c208_231 = arith.constant 208 : index
    %c0_232 = arith.constant 0 : index
    %280 = tpu.strided_load %arg10[%c208_231, %c0_232] {strides = array<i32: 2, 1>} : memref<256x24xf32, #tpu.memory_space<vmem>>, vector<8x24xf32>
    %281 = arith.addf %279, %280 : vector<8x24xf32>
    %c209_233 = arith.constant 209 : index
    %c0_234 = arith.constant 0 : index
    %282 = tpu.strided_load %arg10[%c209_233, %c0_234] {strides = array<i32: 2, 1>} : memref<256x24xf32, #tpu.memory_space<vmem>>, vector<8x24xf32>
    %283 = arith.addf %281, %282 : vector<8x24xf32>
    %284 = arith.truncf %283 : vector<8x24xf32> to vector<8x24xbf16>
    %c48_235 = arith.constant 48 : index
    %c0_236 = arith.constant 0 : index
    %285 = vector.load %arg11[%c48_235, %c0_236] : memref<64x24xbf16, #tpu.memory_space<vmem>>, vector<8x24xbf16>
    tpu.vector_store %arg11[%c48_235, %c0_236], %284 {strides = array<i32>} : memref<64x24xbf16, #tpu.memory_space<vmem>>, vector<8x24xbf16>,
    %cst_237 = arith.constant 0.000000e+00 : f32
    %286 = vector.broadcast %cst_237 : f32 to vector<8x24xf32>
    %c224_238 = arith.constant 224 : index
    %c0_239 = arith.constant 0 : index
    %287 = tpu.strided_load %arg10[%c224_238, %c0_239] {strides = array<i32: 2, 1>} : memref<256x24xf32, #tpu.memory_space<vmem>>, vector<8x24xf32>
    %288 = arith.addf %286, %287 : vector<8x24xf32>
    %c225_240 = arith.constant 225 : index
    %c0_241 = arith.constant 0 : index
    %289 = tpu.strided_load %arg10[%c225_240, %c0_241] {strides = array<i32: 2, 1>} : memref<256x24xf32, #tpu.memory_space<vmem>>, vector<8x24xf32>
    %290 = arith.addf %288, %289 : vector<8x24xf32>
    %c240_242 = arith.constant 240 : index
    %c0_243 = arith.constant 0 : index
    %291 = tpu.strided_load %arg10[%c240_242, %c0_243] {strides = array<i32: 2, 1>} : memref<256x24xf32, #tpu.memory_space<vmem>>, vector<8x24xf32>
    %292 = arith.addf %290, %291 : vector<8x24xf32>
    %c241_244 = arith.constant 241 : index
    %c0_245 = arith.constant 0 : index
    %293 = tpu.strided_load %arg10[%c241_244, %c0_245] {strides = array<i32: 2, 1>} : memref<256x24xf32, #tpu.memory_space<vmem>>, vector<8x24xf32>
    %294 = arith.addf %292, %293 : vector<8x24xf32>
    %295 = arith.truncf %294 : vector<8x24xf32> to vector<8x24xbf16>
    %c56_246 = arith.constant 56 : index
    %c0_247 = arith.constant 0 : index
    %296 = vector.load %arg11[%c56_246, %c0_247] : memref<64x24xbf16, #tpu.memory_space<vmem>>, vector<8x24xbf16>
    tpu.vector_store %arg11[%c56_246, %c0_247], %295 {strides = array<i32>} : memref<64x24xbf16, #tpu.memory_space<vmem>>, vector<8x24xbf16>,
    %c0_248 = arith.constant 0 : index
    %c0_249 = arith.constant 0 : index
    %297 = vector.load %arg11[%c0_248, %c0_249] : memref<64x24xbf16, #tpu.memory_space<vmem>>, vector<64x24xbf16>
    %c0_250 = arith.constant 0 : index
    %c0_251 = arith.constant 0 : index
    %298 = vector.load %arg6[%c0_250, %c0_251] : memref<24x32xbf16, #tpu.memory_space<vmem>>, vector<24x32xbf16>
    %cst_252 = arith.constant dense<0.000000e+00> : vector<64x32xf32>
    %299 = tpu.matmul %297, %298, %cst_252 {dimension_numbers = #tpu.dot_dimension_numbers<[1], [0], [0], [1], [0, 0, 1, 1], [], []>} : vector<64x24xbf16>, vector<24x32xbf16>, vector<64x32xf32> -> vector<64x32xf32>
    %c0_253 = arith.constant 0 : index
    %c0_254 = arith.constant 0 : index
    %300 = vector.load %arg7[%c0_253, %c0_254] : memref<1x32xf32, #tpu.memory_space<vmem>>, vector<1x32xf32>
    %301 = vector.broadcast %300 : vector<1x32xf32> to vector<64x32xf32>
    %302 = arith.addf %299, %301 : vector<64x32xf32>
    %cst_255 = arith.constant 0.000000e+00 : f32
    %303 = vector.broadcast %cst_255 : f32 to vector<64x32xf32>
    %304 = arith.maximumf %302, %303 : vector<64x32xf32>
    %c1_256 = arith.constant 1 : index
    %c0_257 = arith.constant 0 : index
    %c0_258 = arith.constant 0 : index
    %305 = vector.load %arg8[%c1_256, %c0_257, %c0_258] : memref<2x64x32xf32, #tpu.memory_space<vmem>>, vector<1x64x32xf32>
    %306 = vector.shape_cast %305 : vector<1x64x32xf32> to vector<64x32xf32>
    %307 = vector.shape_cast %304 : vector<64x32xf32> to vector<1x64x32xf32>
    tpu.vector_store %arg8[%c1_256, %c0_257, %c0_258], %307 {strides = array<i32>} : memref<2x64x32xf32, #tpu.memory_space<vmem>>, vector<1x64x32xf32>,
    return
  }
  func.func @transform_0(%arg0: i32) -> (i32, i32, i32) {
    %c0_i32 = arith.constant 0 : i32
    %c0_i32_0 = arith.constant 0 : i32
    %c0_i32_1 = arith.constant 0 : i32
    return %arg0, %c0_i32, %c0_i32_0 : i32, i32, i32
  }
  func.func @transform_1(%arg0: i32) -> (i32, i32) {
    %c0_i32 = arith.constant 0 : i32
    %c0_i32_0 = arith.constant 0 : i32
    %c0_i32_1 = arith.constant 0 : i32
    return %c0_i32, %c0_i32_0 : i32, i32
  }
  func.func @transform_2(%arg0: i32) -> (i32, i32) {
    %c0_i32 = arith.constant 0 : i32
    %c0_i32_0 = arith.constant 0 : i32
    %c0_i32_1 = arith.constant 0 : i32
    return %c0_i32, %c0_i32_0 : i32, i32
  }
  func.func @transform_3(%arg0: i32) -> (i32, i32, i32) {
    %c0_i32 = arith.constant 0 : i32
    %c0_i32_0 = arith.constant 0 : i32
    %c0_i32_1 = arith.constant 0 : i32
    %c0_i32_2 = arith.constant 0 : i32
    return %c0_i32, %c0_i32_0, %c0_i32_1 : i32, i32, i32
  }
  func.func @transform_4(%arg0: i32) -> (i32, i32) {
    %c0_i32 = arith.constant 0 : i32
    %c0_i32_0 = arith.constant 0 : i32
    %c0_i32_1 = arith.constant 0 : i32
    return %c0_i32, %c0_i32_0 : i32, i32
  }
  func.func @transform_5(%arg0: i32) -> (i32, i32) {
    %c0_i32 = arith.constant 0 : i32
    %c0_i32_0 = arith.constant 0 : i32
    %c0_i32_1 = arith.constant 0 : i32
    return %c0_i32, %c0_i32_0 : i32, i32
  }
  func.func @transform_6(%arg0: i32) -> (i32, i32) {
    %c0_i32 = arith.constant 0 : i32
    %c0_i32_0 = arith.constant 0 : i32
    %c0_i32_1 = arith.constant 0 : i32
    return %c0_i32, %c0_i32_0 : i32, i32
  }
  func.func @transform_7(%arg0: i32) -> (i32, i32, i32) {
    %c0_i32 = arith.constant 0 : i32
    %c0_i32_0 = arith.constant 0 : i32
    %c0_i32_1 = arith.constant 0 : i32
    return %arg0, %c0_i32, %c0_i32_0 : i32, i32, i32
  }
}

</mosaic_0001>

<llo_original>
// kernel: bottleneck_forward.1
$region0: #{bottleneck_forward.1}
  #allocation0 [shape = 'u32[]', space=smem, size = 0x4, offset = 0x4, fixed_abs, tag = 'smem constant byte address 0x4 - core index']
  #allocation1 [shape = 'u32[144,128]{1,0:T(1,128)}', space=vmem, size = 0x12000, scoped, tag = 'internal scratch']
  #allocation2 [shape = 'bf16[288,24]{1,0:T(16,128)(2,1)}', space=vmem, size = 0x12000, scoped, tag = 'scratch operand']
  #allocation3 [shape = 'f32[256,24]{1,0:T(8,128)}', space=vmem, size = 0x20000, scoped, tag = 'scratch operand']
  #allocation4 [shape = 'bf16[64,24]{1,0:T(16,128)(2,1)}', space=vmem, size = 0x4000, scoped, tag = 'scratch operand']
  %s0 = inlined_call_operand.vmem [shape: bf16[2,256,16], index: 0, kind: input, shape index: {}]
  %s1 = inlined_call_operand.vmem [shape: bf16[16,8], index: 1, kind: input, shape index: {}]
  %s2 = inlined_call_operand.vmem [shape: f32[1,8], index: 2, kind: input, shape index: {}]
  %s3 = inlined_call_operand.vmem [shape: bf16[3,24,8], index: 3, kind: input, shape index: {}]
  %s4 = inlined_call_operand.vmem [shape: f32[1,8], index: 4, kind: input, shape index: {}]
  %s5 = inlined_call_operand.vmem [shape: bf16[24,32], index: 5, kind: input, shape index: {}]
  %s6 = inlined_call_operand.vmem [shape: f32[1,32], index: 6, kind: input, shape index: {}]
  %s7 = inlined_call_operand.hbm [shape: f32[2,64,32], index: 7, kind: output, shape index: {}]
  %s8 = sld [smem:[#allocation0]]
  $region38: #{bottleneck_forward.1} parent=0
    _
  %s10 = ssub.s32 1, %s8
  %s11 = scalar_select 0, %s10, %s8
  $region1: #{bottleneck_forward.1} parent=0
    #allocation5 [shape = 'u8[65536]{0}', space=vmem, size = 0x10000, scoped, tag = 'output window, operand 0, single buffered']
    #allocation6 [shape = 's32[1]{0}', space=sflag, size = 0x4, scoped, tag = 'scoped memory for bottleneck_forward.1']
    %12 = vsyncpa [#allocation6], 0
    // Predicated region
    $region2: #{bottleneck_forward.1} parent=1 // pred_check
      _
    $region3: #{bottleneck_forward.1} parent=1 // pred_check_branch
      %14 = sbr.rel (0) target = $region5
    $region4: #{bottleneck_forward.1} parent=1 // pred_region
      _
    $region5: #{bottleneck_forward.1} parent=1 // pred_fallthru
      _
    // Predicated region
    $region6: #{bottleneck_forward.1} parent=1 // pred_check
      _
    $region7: #{bottleneck_forward.1} parent=1 // pred_check_branch
      %16 = sbr.rel (0) target = $region9
    $region8: #{bottleneck_forward.1} parent=1 // pred_region
      _
    $region9: #{bottleneck_forward.1} parent=1 // pred_fallthru
      _
    // Predicated region
    $region10: #{bottleneck_forward.1} parent=1 // pred_check
      _
    $region11: #{bottleneck_forward.1} parent=1 // pred_check_branch
      %18 = sbr.rel (0) target = $region13
    $region12: #{bottleneck_forward.1} parent=1 // pred_region
      _
    $region13: #{bottleneck_forward.1} parent=1 // pred_fallthru
      _
    // Predicated region
    $region14: #{bottleneck_forward.1} parent=1 // pred_check
      _
    $region15: #{bottleneck_forward.1} parent=1 // pred_check_branch
      %20 = sbr.rel (0) target = $region17
    $region16: #{bottleneck_forward.1} parent=1 // pred_region
      _
    $region17: #{bottleneck_forward.1} parent=1 // pred_fallthru
      _
    // Predicated region
    $region18: #{bottleneck_forward.1} parent=1 // pred_check
      _
    $region19: #{bottleneck_forward.1} parent=1 // pred_check_branch
      %22 = sbr.rel (0) target = $region21
    $region20: #{bottleneck_forward.1} parent=1 // pred_region
      _
    $region21: #{bottleneck_forward.1} parent=1 // pred_fallthru
      _
    // Predicated region
    $region22: #{bottleneck_forward.1} parent=1 // pred_check
      _
    $region23: #{bottleneck_forward.1} parent=1 // pred_check_branch
      %24 = sbr.rel (0) target = $region25
    $region24: #{bottleneck_forward.1} parent=1 // pred_region
      _
    $region25: #{bottleneck_forward.1} parent=1 // pred_fallthru
      _
    // Predicated region
    $region26: #{bottleneck_forward.1} parent=1 // pred_check
      _
    $region27: #{bottleneck_forward.1} parent=1 // pred_check_branch
      %26 = sbr.rel (0) target = $region29
    $region28: #{bottleneck_forward.1} parent=1 // pred_region
      _
    $region29: #{bottleneck_forward.1} parent=1 // pred_fallthru
      _
    %v30 = vlaneseq
    %v31 = vshrl.u32 %v30, 7
    %v32 = vadd.s32 %v31, 8
    %v33 = vadd.s32 %v31, 16
    %v34 = vadd.s32 %v31, 24
    %v35 = vadd.s32 %v31, 32
    %v36 = vadd.s32 %v31, 40
    %v37 = vadd.s32 %v31, 48
    %v38 = vadd.s32 %v31, 56
    %v39 = vadd.s32 %v31, 64
    %v40 = vadd.s32 %v31, 72
    %v41 = vadd.s32 %v31, 80
    %v42 = vadd.s32 %v31, 88
    %v43 = vadd.s32 %v31, 96
    %v44 = vadd.s32 %v31, 104
    %v45 = vadd.s32 %v31, 112
    %v46 = vadd.s32 %v31, 120
    %v47 = vadd.s32 %v31, 128
    %v48 = vadd.s32 %v31, 136
    %v49 = vadd.s32 %v31, 144
    %v50 = vadd.s32 %v31, 152
    %v51 = vadd.s32 %v31, 160
    %v52 = vadd.s32 %v31, 168
    %v53 = vadd.s32 %v31, 176
    %v54 = vadd.s32 %v31, 184
    %v55 = vadd.s32 %v31, 192
    %v56 = vadd.s32 %v31, 200
    %v57 = vadd.s32 %v31, 208
    %v58 = vadd.s32 %v31, 216
    %v59 = vadd.s32 %v31, 224
    %v60 = vadd.s32 %v31, 232
    %v61 = vadd.s32 %v31, 240
    %v62 = vadd.s32 %v31, 248
    %vm63 = vcmp.lt.s32.totalorder %v31, 0
    %v64 = vsub.s32 0, %v31
    %v65 = vsel %vm63, %v64, %v31
    %v66 = vshrl.u32 %v65, 4
    %v67 = vand.u32 %v65, 15
    %v68 = vsub.s32 0, %v67
    %v69 = vsel %vm63, %v68, %v67
    %vm70 = vcmp.lt.s32.totalorder %v32, 0
    %v71 = vsub.s32 0, %v32
    %v72 = vsel %vm70, %v71, %v32
    %v73 = vshrl.u32 %v72, 4
    %v74 = vand.u32 %v72, 15
    %v75 = vsub.s32 0, %v74
    %v76 = vsel %vm70, %v75, %v74
    %vm77 = vcmp.lt.s32.totalorder %v33, 0
    %v78 = vsub.s32 0, %v33
    %v79 = vsel %vm77, %v78, %v33
    %v80 = vshrl.u32 %v79, 4
    %v81 = vand.u32 %v79, 15
    %v82 = vsub.s32 0, %v81
    %v83 = vsel %vm77, %v82, %v81
    %vm84 = vcmp.lt.s32.totalorder %v34, 0
    %v85 = vsub.s32 0, %v34
    %v86 = vsel %vm84, %v85, %v34
    %v87 = vshrl.u32 %v86, 4
    %v88 = vand.u32 %v86, 15
    %v89 = vsub.s32 0, %v88
    %v90 = vsel %vm84, %v89, %v88
    %vm91 = vcmp.lt.s32.totalorder %v35, 0
    %v92 = vsub.s32 0, %v35
    %v93 = vsel %vm91, %v92, %v35
    %v94 = vshrl.u32 %v93, 4
    %v95 = vand.u32 %v93, 15
    %v96 = vsub.s32 0, %v95
    %v97 = vsel %vm91, %v96, %v95
    %vm98 = vcmp.lt.s32.totalorder %v36, 0
    %v99 = vsub.s32 0, %v36
    %v100 = vsel %vm98, %v99, %v36
    %v101 = vshrl.u32 %v100, 4
    %v102 = vand.u32 %v100, 15
    %v103 = vsub.s32 0, %v102
    %v104 = vsel %vm98, %v103, %v102
    %vm105 = vcmp.lt.s32.totalorder %v37, 0
    %v106 = vsub.s32 0, %v37
    %v107 = vsel %vm105, %v106, %v37
    %v108 = vshrl.u32 %v107, 4
    %v109 = vand.u32 %v107, 15
    %v110 = vsub.s32 0, %v109
    %v111 = vsel %vm105, %v110, %v109
    %vm112 = vcmp.lt.s32.totalorder %v38, 0
    %v113 = vsub.s32 0, %v38
    %v114 = vsel %vm112, %v113, %v38
    %v115 = vshrl.u32 %v114, 4
    %v116 = vand.u32 %v114, 15
    %v117 = vsub.s32 0, %v116
    %v118 = vsel %vm112, %v117, %v116
    %vm119 = vcmp.lt.s32.totalorder %v39, 0
    %v120 = vsub.s32 0, %v39
    %v121 = vsel %vm119, %v120, %v39
    %v122 = vshrl.u32 %v121, 4
    %v123 = vand.u32 %v121, 15
    %v124 = vsub.s32 0, %v123
    %v125 = vsel %vm119, %v124, %v123
    %vm126 = vcmp.lt.s32.totalorder %v40, 0
    %v127 = vsub.s32 0, %v40
    %v128 = vsel %vm126, %v127, %v40
    %v129 = vshrl.u32 %v128, 4
    %v130 = vand.u32 %v128, 15
    %v131 = vsub.s32 0, %v130
    %v132 = vsel %vm126, %v131, %v130
    %vm133 = vcmp.lt.s32.totalorder %v41, 0
    %v134 = vsub.s32 0, %v41
    %v135 = vsel %vm133, %v134, %v41
    %v136 = vshrl.u32 %v135, 4
    %v137 = vand.u32 %v135, 15
    %v138 = vsub.s32 0, %v137
    %v139 = vsel %vm133, %v138, %v137
    %vm140 = vcmp.lt.s32.totalorder %v42, 0
    %v141 = vsub.s32 0, %v42
    %v142 = vsel %vm140, %v141, %v42
    %v143 = vshrl.u32 %v142, 4
    %v144 = vand.u32 %v142, 15
    %v145 = vsub.s32 0, %v144
    %v146 = vsel %vm140, %v145, %v144
    %vm147 = vcmp.lt.s32.totalorder %v43, 0
    %v148 = vsub.s32 0, %v43
    %v149 = vsel %vm147, %v148, %v43
    %v150 = vshrl.u32 %v149, 4
    %v151 = vand.u32 %v149, 15
    %v152 = vsub.s32 0, %v151
    %v153 = vsel %vm147, %v152, %v151
    %vm154 = vcmp.lt.s32.totalorder %v44, 0
    %v155 = vsub.s32 0, %v44
    %v156 = vsel %vm154, %v155, %v44
    %v157 = vshrl.u32 %v156, 4
    %v158 = vand.u32 %v156, 15
    %v159 = vsub.s32 0, %v158
    %v160 = vsel %vm154, %v159, %v158
    %vm161 = vcmp.lt.s32.totalorder %v45, 0
    %v162 = vsub.s32 0, %v45
    %v163 = vsel %vm161, %v162, %v45
    %v164 = vshrl.u32 %v163, 4
    %v165 = vand.u32 %v163, 15
    %v166 = vsub.s32 0, %v165
    %v167 = vsel %vm161, %v166, %v165
    %vm168 = vcmp.lt.s32.totalorder %v46, 0
    %v169 = vsub.s32 0, %v46
    %v170 = vsel %vm168, %v169, %v46
    %v171 = vshrl.u32 %v170, 4
    %v172 = vand.u32 %v170, 15
    %v173 = vsub.s32 0, %v172
    %v174 = vsel %vm168, %v173, %v172
    %vm175 = vcmp.lt.s32.totalorder %v47, 0
    %v176 = vsub.s32 0, %v47
    %v177 = vsel %vm175, %v176, %v47
    %v178 = vshrl.u32 %v177, 4
    %v179 = vand.u32 %v177, 15
    %v180 = vsub.s32 0, %v179
    %v181 = vsel %vm175, %v180, %v179
    %vm182 = vcmp.lt.s32.totalorder %v48, 0
    %v183 = vsub.s32 0, %v48
    %v184 = vsel %vm182, %v183, %v48
    %v185 = vshrl.u32 %v184, 4
    %v186 = vand.u32 %v184, 15
    %v187 = vsub.s32 0, %v186
    %v188 = vsel %vm182, %v187, %v186
    %vm189 = vcmp.lt.s32.totalorder %v49, 0
    %v190 = vsub.s32 0, %v49
    %v191 = vsel %vm189, %v190, %v49
    %v192 = vshrl.u32 %v191, 4
    %v193 = vand.u32 %v191, 15
    %v194 = vsub.s32 0, %v193
    %v195 = vsel %vm189, %v194, %v193
    %vm196 = vcmp.lt.s32.totalorder %v50, 0
    %v197 = vsub.s32 0, %v50
    %v198 = vsel %vm196, %v197, %v50
    %v199 = vshrl.u32 %v198, 4
    %v200 = vand.u32 %v198, 15
    %v201 = vsub.s32 0, %v200
    %v202 = vsel %vm196, %v201, %v200
    %vm203 = vcmp.lt.s32.totalorder %v51, 0
    %v204 = vsub.s32 0, %v51
    %v205 = vsel %vm203, %v204, %v51
    %v206 = vshrl.u32 %v205, 4
    %v207 = vand.u32 %v205, 15
    %v208 = vsub.s32 0, %v207
    %v209 = vsel %vm203, %v208, %v207
    %vm210 = vcmp.lt.s32.totalorder %v52, 0
    %v211 = vsub.s32 0, %v52
    %v212 = vsel %vm210, %v211, %v52
    %v213 = vshrl.u32 %v212, 4
    %v214 = vand.u32 %v212, 15
    %v215 = vsub.s32 0, %v214
    %v216 = vsel %vm210, %v215, %v214
    %vm217 = vcmp.lt.s32.totalorder %v53, 0
    %v218 = vsub.s32 0, %v53
    %v219 = vsel %vm217, %v218, %v53
    %v220 = vshrl.u32 %v219, 4
    %v221 = vand.u32 %v219, 15
    %v222 = vsub.s32 0, %v221
    %v223 = vsel %vm217, %v222, %v221
    %vm224 = vcmp.lt.s32.totalorder %v54, 0
    %v225 = vsub.s32 0, %v54
    %v226 = vsel %vm224, %v225, %v54
    %v227 = vshrl.u32 %v226, 4
    %v228 = vand.u32 %v226, 15
    %v229 = vsub.s32 0, %v228
    %v230 = vsel %vm224, %v229, %v228
    %vm231 = vcmp.lt.s32.totalorder %v55, 0
    %v232 = vsub.s32 0, %v55
    %v233 = vsel %vm231, %v232, %v55
    %v234 = vshrl.u32 %v233, 4
    %v235 = vand.u32 %v233, 15
    %v236 = vsub.s32 0, %v235
    %v237 = vsel %vm231, %v236, %v235
    %vm238 = vcmp.lt.s32.totalorder %v56, 0
    %v239 = vsub.s32 0, %v56
    %v240 = vsel %vm238, %v239, %v56
    %v241 = vshrl.u32 %v240, 4
    %v242 = vand.u32 %v240, 15
    %v243 = vsub.s32 0, %v242
    %v244 = vsel %vm238, %v243, %v242
    %vm245 = vcmp.lt.s32.totalorder %v57, 0
    %v246 = vsub.s32 0, %v57
    %v247 = vsel %vm245, %v246, %v57
    %v248 = vshrl.u32 %v247, 4
    %v249 = vand.u32 %v247, 15
    %v250 = vsub.s32 0, %v249
    %v251 = vsel %vm245, %v250, %v249
    %vm252 = vcmp.lt.s32.totalorder %v58, 0
    %v253 = vsub.s32 0, %v58
    %v254 = vsel %vm252, %v253, %v58
    %v255 = vshrl.u32 %v254, 4
    %v256 = vand.u32 %v254, 15
    %v257 = vsub.s32 0, %v256
    %v258 = vsel %vm252, %v257, %v256
    %vm259 = vcmp.lt.s32.totalorder %v59, 0
    %v260 = vsub.s32 0, %v59
    %v261 = vsel %vm259, %v260, %v59
    %v262 = vshrl.u32 %v261, 4
    %v263 = vand.u32 %v261, 15
    %v264 = vsub.s32 0, %v263
    %v265 = vsel %vm259, %v264, %v263
    %vm266 = vcmp.lt.s32.totalorder %v60, 0
    %v267 = vsub.s32 0, %v60
    %v268 = vsel %vm266, %v267, %v60
    %v269 = vshrl.u32 %v268, 4
    %v270 = vand.u32 %v268, 15
    %v271 = vsub.s32 0, %v270
    %v272 = vsel %vm266, %v271, %v270
    %vm273 = vcmp.lt.s32.totalorder %v61, 0
    %v274 = vsub.s32 0, %v61
    %v275 = vsel %vm273, %v274, %v61
    %v276 = vshrl.u32 %v275, 4
    %v277 = vand.u32 %v275, 15
    %v278 = vsub.s32 0, %v277
    %v279 = vsel %vm273, %v278, %v277
    %vm280 = vcmp.lt.s32.totalorder %v62, 0
    %v281 = vsub.s32 0, %v62
    %v282 = vsel %vm280, %v281, %v62
    %v283 = vshrl.u32 %v282, 4
    %v284 = vand.u32 %v282, 15
    %v285 = vsub.s32 0, %v284
    %v286 = vsel %vm280, %v285, %v284
    %vm287 = vcmp.ne.s32.totalorder %v69, 0
    %vm288 = vcmp.ne.s32.totalorder %v76, 0
    %vm289 = vcmp.ne.s32.totalorder %v83, 0
    %vm290 = vcmp.ne.s32.totalorder %v90, 0
    %vm291 = vcmp.ne.s32.totalorder %v97, 0
    %vm292 = vcmp.ne.s32.totalorder %v104, 0
    %vm293 = vcmp.ne.s32.totalorder %v111, 0
    %vm294 = vcmp.ne.s32.totalorder %v118, 0
    %vm295 = vcmp.ne.s32.totalorder %v125, 0
    %vm296 = vcmp.ne.s32.totalorder %v132, 0
    %vm297 = vcmp.ne.s32.totalorder %v139, 0
    %vm298 = vcmp.ne.s32.totalorder %v146, 0
    %vm299 = vcmp.ne.s32.totalorder %v153, 0
    %vm300 = vcmp.ne.s32.totalorder %v160, 0
    %vm301 = vcmp.ne.s32.totalorder %v167, 0
    %vm302 = vcmp.ne.s32.totalorder %v174, 0
    %vm303 = vcmp.ne.s32.totalorder %v181, 0
    %vm304 = vcmp.ne.s32.totalorder %v188, 0
    %vm305 = vcmp.ne.s32.totalorder %v195, 0
    %vm306 = vcmp.ne.s32.totalorder %v202, 0
    %vm307 = vcmp.ne.s32.totalorder %v209, 0
    %vm308 = vcmp.ne.s32.totalorder %v216, 0
    %vm309 = vcmp.ne.s32.totalorder %v223, 0
    %vm310 = vcmp.ne.s32.totalorder %v230, 0
    %vm311 = vcmp.ne.s32.totalorder %v237, 0
    %vm312 = vcmp.ne.s32.totalorder %v244, 0
    %vm313 = vcmp.ne.s32.totalorder %v251, 0
    %vm314 = vcmp.ne.s32.totalorder %v258, 0
    %vm315 = vcmp.ne.s32.totalorder %v265, 0
    %vm316 = vcmp.ne.s32.totalorder %v272, 0
    %vm317 = vcmp.ne.s32.totalorder %v279, 0
    %vm318 = vcmp.ne.s32.totalorder %v286, 0
    %vm319 = vcmp.lt.s32.totalorder %v69, 0
    %vm320 = vcmp.lt.s32.totalorder %v76, 0
    %vm321 = vcmp.lt.s32.totalorder %v83, 0
    %vm322 = vcmp.lt.s32.totalorder %v90, 0
    %vm323 = vcmp.lt.s32.totalorder %v97, 0
    %vm324 = vcmp.lt.s32.totalorder %v104, 0
    %vm325 = vcmp.lt.s32.totalorder %v111, 0
    %vm326 = vcmp.lt.s32.totalorder %v118, 0
    %vm327 = vcmp.lt.s32.totalorder %v125, 0
    %vm328 = vcmp.lt.s32.totalorder %v132, 0
    %vm329 = vcmp.lt.s32.totalorder %v139, 0
    %vm330 = vcmp.lt.s32.totalorder %v146, 0
    %vm331 = vcmp.lt.s32.totalorder %v153, 0
    %vm332 = vcmp.lt.s32.totalorder %v160, 0
    %vm333 = vcmp.lt.s32.totalorder %v167, 0
    %vm334 = vcmp.lt.s32.totalorder %v174, 0
    %vm335 = vcmp.lt.s32.totalorder %v181, 0
    %vm336 = vcmp.lt.s32.totalorder %v188, 0
    %vm337 = vcmp.lt.s32.totalorder %v195, 0
    %vm338 = vcmp.lt.s32.totalorder %v202, 0
    %vm339 = vcmp.lt.s32.totalorder %v209, 0
    %vm340 = vcmp.lt.s32.totalorder %v216, 0
    %vm341 = vcmp.lt.s32.totalorder %v223, 0
    %vm342 = vcmp.lt.s32.totalorder %v230, 0
    %vm343 = vcmp.lt.s32.totalorder %v237, 0
    %vm344 = vcmp.lt.s32.totalorder %v244, 0
    %vm345 = vcmp.lt.s32.totalorder %v251, 0
    %vm346 = vcmp.lt.s32.totalorder %v258, 0
    %vm347 = vcmp.lt.s32.totalorder %v265, 0
    %vm348 = vcmp.lt.s32.totalorder %v272, 0
    %vm349 = vcmp.lt.s32.totalorder %v279, 0
    %vm350 = vcmp.lt.s32.totalorder %v286, 0
    %vm351 = vmand %vm319, %vm287
    %vm352 = vmand %vm320, %vm288
    %vm353 = vmand %vm321, %vm289
    %vm354 = vmand %vm322, %vm290
    %vm355 = vmand %vm323, %vm291
    %vm356 = vmand %vm324, %vm292
    %vm357 = vmand %vm325, %vm293
    %vm358 = vmand %vm326, %vm294
    %vm359 = vmand %vm327, %vm295
    %vm360 = vmand %vm328, %vm296
    %vm361 = vmand %vm329, %vm297
    %vm362 = vmand %vm330, %vm298
    %vm363 = vmand %vm331, %vm299
    %vm364 = vmand %vm332, %vm300
    %vm365 = vmand %vm333, %vm301
    %vm366 = vmand %vm334, %vm302
    %vm367 = vmand %vm335, %vm303
    %vm368 = vmand %vm336, %vm304
    %vm369 = vmand %vm337, %vm305
    %vm370 = vmand %vm338, %vm306
    %vm371 = vmand %vm339, %vm307
    %vm372 = vmand %vm340, %vm308
    %vm373 = vmand %vm341, %vm309
    %vm374 = vmand %vm342, %vm310
    %vm375 = vmand %vm343, %vm311
    %vm376 = vmand %vm344, %vm312
    %vm377 = vmand %vm345, %vm313
    %vm378 = vmand %vm346, %vm314
    %vm379 = vmand %vm347, %vm315
    %vm380 = vmand %vm348, %vm316
    %vm381 = vmand %vm349, %vm317
    %vm382 = vmand %vm350, %vm318
    %v383 = vadd.s32 %v69, 16
    %v384 = vadd.s32 %v76, 16
    %v385 = vadd.s32 %v83, 16
    %v386 = vadd.s32 %v90, 16
    %v387 = vadd.s32 %v97, 16
    %v388 = vadd.s32 %v104, 16
    %v389 = vadd.s32 %v111, 16
    %v390 = vadd.s32 %v118, 16
    %v391 = vadd.s32 %v125, 16
    %v392 = vadd.s32 %v132, 16
    %v393 = vadd.s32 %v139, 16
    %v394 = vadd.s32 %v146, 16
    %v395 = vadd.s32 %v153, 16
    %v396 = vadd.s32 %v160, 16
    %v397 = vadd.s32 %v167, 16
    %v398 = vadd.s32 %v174, 16
    %v399 = vadd.s32 %v181, 16
    %v400 = vadd.s32 %v188, 16
    %v401 = vadd.s32 %v195, 16
    %v402 = vadd.s32 %v202, 16
    %v403 = vadd.s32 %v209, 16
    %v404 = vadd.s32 %v216, 16
    %v405 = vadd.s32 %v223, 16
    %v406 = vadd.s32 %v230, 16
    %v407 = vadd.s32 %v237, 16
    %v408 = vadd.s32 %v244, 16
    %v409 = vadd.s32 %v251, 16
    %v410 = vadd.s32 %v258, 16
    %v411 = vadd.s32 %v265, 16
    %v412 = vadd.s32 %v272, 16
    %v413 = vadd.s32 %v279, 16
    %v414 = vadd.s32 %v286, 16
    %v415 = vsel %vm351, %v383, %v69
    %v416 = vsel %vm352, %v384, %v76
    %v417 = vsel %vm353, %v385, %v83
    %v418 = vsel %vm354, %v386, %v90
    %v419 = vsel %vm355, %v387, %v97
    %v420 = vsel %vm356, %v388, %v104
    %v421 = vsel %vm357, %v389, %v111
    %v422 = vsel %vm358, %v390, %v118
    %v423 = vsel %vm359, %v391, %v125
    %v424 = vsel %vm360, %v392, %v132
    %v425 = vsel %vm361, %v393, %v139
    %v426 = vsel %vm362, %v394, %v146
    %v427 = vsel %vm363, %v395, %v153
    %v428 = vsel %vm364, %v396, %v160
    %v429 = vsel %vm365, %v397, %v167
    %v430 = vsel %vm366, %v398, %v174
    %v431 = vsel %vm367, %v399, %v181
    %v432 = vsel %vm368, %v400, %v188
    %v433 = vsel %vm369, %v401, %v195
    %v434 = vsel %vm370, %v402, %v202
    %v435 = vsel %vm371, %v403, %v209
    %v436 = vsel %vm372, %v404, %v216
    %v437 = vsel %vm373, %v405, %v223
    %v438 = vsel %vm374, %v406, %v230
    %v439 = vsel %vm375, %v407, %v237
    %v440 = vsel %vm376, %v408, %v244
    %v441 = vsel %vm377, %v409, %v251
    %v442 = vsel %vm378, %v410, %v258
    %v443 = vsel %vm379, %v411, %v265
    %v444 = vsel %vm380, %v412, %v272
    %v445 = vsel %vm381, %v413, %v279
    %v446 = vsel %vm382, %v414, %v286
    %vm447 = vcmp.ge.s32.totalorder %v415, 1
    %vm448 = vcmp.ge.s32.totalorder %v416, 1
    %vm449 = vcmp.ge.s32.totalorder %v417, 1
    %vm450 = vcmp.ge.s32.totalorder %v418, 1
    %vm451 = vcmp.ge.s32.totalorder %v419, 1
    %vm452 = vcmp.ge.s32.totalorder %v420, 1
    %vm453 = vcmp.ge.s32.totalorder %v421, 1
    %vm454 = vcmp.ge.s32.totalorder %v422, 1
    %vm455 = vcmp.ge.s32.totalorder %v423, 1
    %vm456 = vcmp.ge.s32.totalorder %v424, 1
    %vm457 = vcmp.ge.s32.totalorder %v425, 1
    %vm458 = vcmp.ge.s32.totalorder %v426, 1
    %vm459 = vcmp.ge.s32.totalorder %v427, 1
    %vm460 = vcmp.ge.s32.totalorder %v428, 1
    %vm461 = vcmp.ge.s32.totalorder %v429, 1
    %vm462 = vcmp.ge.s32.totalorder %v430, 1
    %vm463 = vcmp.ge.s32.totalorder %v431, 1
    %vm464 = vcmp.ge.s32.totalorder %v432, 1
    %vm465 = vcmp.ge.s32.totalorder %v433, 1
    %vm466 = vcmp.ge.s32.totalorder %v434, 1
    %vm467 = vcmp.ge.s32.totalorder %v435, 1
    %vm468 = vcmp.ge.s32.totalorder %v436, 1
    %vm469 = vcmp.ge.s32.totalorder %v437, 1
    %vm470 = vcmp.ge.s32.totalorder %v438, 1
    %vm471 = vcmp.ge.s32.totalorder %v439, 1
    %vm472 = vcmp.ge.s32.totalorder %v440, 1
    %vm473 = vcmp.ge.s32.totalorder %v441, 1
    %vm474 = vcmp.ge.s32.totalorder %v442, 1
    %vm475 = vcmp.ge.s32.totalorder %v443, 1
    %vm476 = vcmp.ge.s32.totalorder %v444, 1
    %vm477 = vcmp.ge.s32.totalorder %v445, 1
    %vm478 = vcmp.ge.s32.totalorder %v446, 1
    %v479 = vsel %vm447, 1, 0
    %v480 = vsel %vm448, 1, 0
    %v481 = vsel %vm449, 1, 0
    %v482 = vsel %vm450, 1, 0
    %v483 = vsel %vm451, 1, 0
    %v484 = vsel %vm452, 1, 0
    %v485 = vsel %vm453, 1, 0
    %v486 = vsel %vm454, 1, 0
    %v487 = vsel %vm455, 1, 0
    %v488 = vsel %vm456, 1, 0
    %v489 = vsel %vm457, 1, 0
    %v490 = vsel %vm458, 1, 0
    %v491 = vsel %vm459, 1, 0
    %v492 = vsel %vm460, 1, 0
    %v493 = vsel %vm461, 1, 0
    %v494 = vsel %vm462, 1, 0
    %v495 = vsel %vm463, 1, 0
    %v496 = vsel %vm464, 1, 0
    %v497 = vsel %vm465, 1, 0
    %v498 = vsel %vm466, 1, 0
    %v499 = vsel %vm467, 1, 0
    %v500 = vsel %vm468, 1, 0
    %v501 = vsel %vm469, 1, 0
    %v502 = vsel %vm470, 1, 0
    %v503 = vsel %vm471, 1, 0
    %v504 = vsel %vm472, 1, 0
    %v505 = vsel %vm473, 1, 0
    %v506 = vsel %vm474, 1, 0
    %v507 = vsel %vm475, 1, 0
    %v508 = vsel %vm476, 1, 0
    %v509 = vsel %vm477, 1, 0
    %v510 = vsel %vm478, 1, 0
    %vm511 = vcmp.eq.s32.totalorder %v479, 1
    %vm512 = vcmp.eq.s32.totalorder %v480, 1
    %vm513 = vcmp.eq.s32.totalorder %v481, 1
    %vm514 = vcmp.eq.s32.totalorder %v482, 1
    %vm515 = vcmp.eq.s32.totalorder %v483, 1
    %vm516 = vcmp.eq.s32.totalorder %v484, 1
    %vm517 = vcmp.eq.s32.totalorder %v485, 1
    %vm518 = vcmp.eq.s32.totalorder %v486, 1
    %vm519 = vcmp.eq.s32.totalorder %v487, 1
    %vm520 = vcmp.eq.s32.totalorder %v488, 1
    %vm521 = vcmp.eq.s32.totalorder %v489, 1
    %vm522 = vcmp.eq.s32.totalorder %v490, 1
    %vm523 = vcmp.eq.s32.totalorder %v491, 1
    %vm524 = vcmp.eq.s32.totalorder %v492, 1
    %vm525 = vcmp.eq.s32.totalorder %v493, 1
    %vm526 = vcmp.eq.s32.totalorder %v494, 1
    %vm527 = vcmp.eq.s32.totalorder %v495, 1
    %vm528 = vcmp.eq.s32.totalorder %v496, 1
    %vm529 = vcmp.eq.s32.totalorder %v497, 1
    %vm530 = vcmp.eq.s32.totalorder %v498, 1
    %vm531 = vcmp.eq.s32.totalorder %v499, 1
    %vm532 = vcmp.eq.s32.totalorder %v500, 1
    %vm533 = vcmp.eq.s32.totalorder %v501, 1
    %vm534 = vcmp.eq.s32.totalorder %v502, 1
    %vm535 = vcmp.eq.s32.totalorder %v503, 1
    %vm536 = vcmp.eq.s32.totalorder %v504, 1
    %vm537 = vcmp.eq.s32.totalorder %v505, 1
    %vm538 = vcmp.eq.s32.totalorder %v506, 1
    %vm539 = vcmp.eq.s32.totalorder %v507, 1
    %vm540 = vcmp.eq.s32.totalorder %v508, 1
    %vm541 = vcmp.eq.s32.totalorder %v509, 1
    %vm542 = vcmp.eq.s32.totalorder %v510, 1
    %vm543 = vcmp.lt.s32.totalorder %v415, 15
    %vm544 = vcmp.lt.s32.totalorder %v416, 15
    %vm545 = vcmp.lt.s32.totalorder %v417, 15
    %vm546 = vcmp.lt.s32.totalorder %v418, 15
    %vm547 = vcmp.lt.s32.totalorder %v419, 15
    %vm548 = vcmp.lt.s32.totalorder %v420, 15
    %vm549 = vcmp.lt.s32.totalorder %v421, 15
    %vm550 = vcmp.lt.s32.totalorder %v422, 15
    %vm551 = vcmp.lt.s32.totalorder %v423, 15
    %vm552 = vcmp.lt.s32.totalorder %v424, 15
    %vm553 = vcmp.lt.s32.totalorder %v425, 15
    %vm554 = vcmp.lt.s32.totalorder %v426, 15
    %vm555 = vcmp.lt.s32.totalorder %v427, 15
    %vm556 = vcmp.lt.s32.totalorder %v428, 15
    %vm557 = vcmp.lt.s32.totalorder %v429, 15
    %vm558 = vcmp.lt.s32.totalorder %v430, 15
    %vm559 = vcmp.lt.s32.totalorder %v431, 15
    %vm560 = vcmp.lt.s32.totalorder %v432, 15
    %vm561 = vcmp.lt.s32.totalorder %v433, 15
    %vm562 = vcmp.lt.s32.totalorder %v434, 15
    %vm563 = vcmp.lt.s32.totalorder %v435, 15
    %vm564 = vcmp.lt.s32.totalorder %v436, 15
    %vm565 = vcmp.lt.s32.totalorder %v437, 15
    %vm566 = vcmp.lt.s32.totalorder %v438, 15
    %vm567 = vcmp.lt.s32.totalorder %v439, 15
    %vm568 = vcmp.lt.s32.totalorder %v440, 15
    %vm569 = vcmp.lt.s32.totalorder %v441, 15
    %vm570 = vcmp.lt.s32.totalorder %v442, 15
    %vm571 = vcmp.lt.s32.totalorder %v443, 15
    %vm572 = vcmp.lt.s32.totalorder %v444, 15
    %vm573 = vcmp.lt.s32.totalorder %v445, 15
    %vm574 = vcmp.lt.s32.totalorder %v446, 15
    %v575 = vsel %vm543, 1, 0
    %v576 = vsel %vm544, 1, 0
    %v577 = vsel %vm545, 1, 0
    %v578 = vsel %vm546, 1, 0
    %v579 = vsel %vm547, 1, 0
    %v580 = vsel %vm548, 1, 0
    %v581 = vsel %vm549, 1, 0
    %v582 = vsel %vm550, 1, 0
    %v583 = vsel %vm551, 1, 0
    %v584 = vsel %vm552, 1, 0
    %v585 = vsel %vm553, 1, 0
    %v586 = vsel %vm554, 1, 0
    %v587 = vsel %vm555, 1, 0
    %v588 = vsel %vm556, 1, 0
    %v589 = vsel %vm557, 1, 0
    %v590 = vsel %vm558, 1, 0
    %v591 = vsel %vm559, 1, 0
    %v592 = vsel %vm560, 1, 0
    %v593 = vsel %vm561, 1, 0
    %v594 = vsel %vm562, 1, 0
    %v595 = vsel %vm563, 1, 0
    %v596 = vsel %vm564, 1, 0
    %v597 = vsel %vm565, 1, 0
    %v598 = vsel %vm566, 1, 0
    %v599 = vsel %vm567, 1, 0
    %v600 = vsel %vm568, 1, 0
    %v601 = vsel %vm569, 1, 0
    %v602 = vsel %vm570, 1, 0
    %v603 = vsel %vm571, 1, 0
    %v604 = vsel %vm572, 1, 0
    %v605 = vsel %vm573, 1, 0
    %v606 = vsel %vm574, 1, 0
    %vm607 = vcmp.eq.s32.totalorder %v575, 1
    %vm608 = vcmp.eq.s32.totalorder %v576, 1
    %vm609 = vcmp.eq.s32.totalorder %v577, 1
    %vm610 = vcmp.eq.s32.totalorder %v578, 1
    %vm611 = vcmp.eq.s32.totalorder %v579, 1
    %vm612 = vcmp.eq.s32.totalorder %v580, 1
    %vm613 = vcmp.eq.s32.totalorder %v581, 1
    %vm614 = vcmp.eq.s32.totalorder %v582, 1
    %vm615 = vcmp.eq.s32.totalorder %v583, 1
    %vm616 = vcmp.eq.s32.totalorder %v584, 1
    %vm617 = vcmp.eq.s32.totalorder %v585, 1
    %vm618 = vcmp.eq.s32.totalorder %v586, 1
    %vm619 = vcmp.eq.s32.totalorder %v587, 1
    %vm620 = vcmp.eq.s32.totalorder %v588, 1
    %vm621 = vcmp.eq.s32.totalorder %v589, 1
    %vm622 = vcmp.eq.s32.totalorder %v590, 1
    %vm623 = vcmp.eq.s32.totalorder %v591, 1
    %vm624 = vcmp.eq.s32.totalorder %v592, 1
    %vm625 = vcmp.eq.s32.totalorder %v593, 1
    %vm626 = vcmp.eq.s32.totalorder %v594, 1
    %vm627 = vcmp.eq.s32.totalorder %v595, 1
    %vm628 = vcmp.eq.s32.totalorder %v596, 1
    %vm629 = vcmp.eq.s32.totalorder %v597, 1
    %vm630 = vcmp.eq.s32.totalorder %v598, 1
    %vm631 = vcmp.eq.s32.totalorder %v599, 1
    %vm632 = vcmp.eq.s32.totalorder %v600, 1
    %vm633 = vcmp.eq.s32.totalorder %v601, 1
    %vm634 = vcmp.eq.s32.totalorder %v602, 1
    %vm635 = vcmp.eq.s32.totalorder %v603, 1
    %vm636 = vcmp.eq.s32.totalorder %v604, 1
    %vm637 = vcmp.eq.s32.totalorder %v605, 1
    %vm638 = vcmp.eq.s32.totalorder %v606, 1
    %vm639 = vcmask 195584
    %640 = vst.msk [vmem:[#allocation2] sm:$0xff] %vm639, 0
    %641 = vst.msk [vmem:[#allocation2 + $0x88] sm:$0xff] %vm639, 0
    %v642 = vld [vmem:[%s0] sm:$0xf]
    %v643 = vld [vmem:[%s0 + $0x4] sm:$0xf]
    %v644 = vld [vmem:[%s0 + $0x8] sm:$0xf]
    %v645 = vld [vmem:[%s0 + $0xc] sm:$0xf]
    %v646 = vld [vmem:[%s0 + $0x10] sm:$0xf]
    %v647 = vld [vmem:[%s0 + $0x14] sm:$0xf]
    %v648 = vld [vmem:[%s0 + $0x18] sm:$0xf]
    %v649 = vld [vmem:[%s0 + $0x1c] sm:$0xf]
    %v650 = vld [vmem:[%s0 + $0x20] sm:$0xf]
    %v651 = vld [vmem:[%s0 + $0x24] sm:$0xf]
    %v652 = vld [vmem:[%s0 + $0x28] sm:$0xf]
    %v653 = vld [vmem:[%s0 + $0x2c] sm:$0xf]
    %v654 = vld [vmem:[%s0 + $0x30] sm:$0xf]
    %v655 = vld [vmem:[%s0 + $0x34] sm:$0xf]
    %v656 = vld [vmem:[%s0 + $0x38] sm:$0xf]
    %v657 = vld [vmem:[%s0 + $0x3c] sm:$0xf]
    %v658 = vld [vmem:[%s0 + $0x40] sm:$0xf]
    %v659 = vld [vmem:[%s0 + $0x44] sm:$0xf]
    %v660 = vld [vmem:[%s0 + $0x48] sm:$0xf]
    %v661 = vld [vmem:[%s0 + $0x4c] sm:$0xf]
    %v662 = vld [vmem:[%s0 + $0x50] sm:$0xf]
    %v663 = vld [vmem:[%s0 + $0x54] sm:$0xf]
    %v664 = vld [vmem:[%s0 + $0x58] sm:$0xf]
    %v665 = vld [vmem:[%s0 + $0x5c] sm:$0xf]
    %v666 = vld [vmem:[%s0 + $0x60] sm:$0xf]
    %v667 = vld [vmem:[%s0 + $0x64] sm:$0xf]
    %v668 = vld [vmem:[%s0 + $0x68] sm:$0xf]
    %v669 = vld [vmem:[%s0 + $0x6c] sm:$0xf]
    %v670 = vld [vmem:[%s0 + $0x70] sm:$0xf]
    %v671 = vld [vmem:[%s0 + $0x74] sm:$0xf]
    %v672 = vld [vmem:[%s0 + $0x78] sm:$0xf]
    %v673 = vld [vmem:[%s0 + $0x7c] sm:$0xf]
    %v674 = vld [vmem:[%s1] sm:$0xf]
    %v675 = vld [vmem:[%s1 + $0x4] sm:$0xf]
    %v676 = vld [vmem:[%s2] sm:$0x1]
    %v678 = vlaneseq
    %v679 = vshrl.u32 %v678, 7
    %v680 = vsub.s32 0, %v679
    %v681 = vrot.slane %v676, %v680
    %v715 = vunpack.c.l.b16 %v642
    %v716 = vunpack.c.l.b16 %v643
    %v717 = vunpack.c.l.b16 %v644
    %v718 = vunpack.c.l.b16 %v645
    %v719 = vunpack.c.l.b16 %v646
    %v720 = vunpack.c.l.b16 %v647
    %v721 = vunpack.c.l.b16 %v648
    %v722 = vunpack.c.l.b16 %v649
    %v723 = vunpack.c.l.b16 %v650
    %v724 = vunpack.c.l.b16 %v651
    %v725 = vunpack.c.l.b16 %v652
    %v726 = vunpack.c.l.b16 %v653
    %v727 = vunpack.c.l.b16 %v654
    %v728 = vunpack.c.l.b16 %v655
    %v729 = vunpack.c.l.b16 %v656
    %v730 = vunpack.c.l.b16 %v657
    %v731 = vunpack.c.l.b16 %v658
    %v732 = vunpack.c.l.b16 %v659
    %v733 = vunpack.c.l.b16 %v660
    %v734 = vunpack.c.l.b16 %v661
    %v735 = vunpack.c.l.b16 %v662
    %v736 = vunpack.c.l.b16 %v663
    %v737 = vunpack.c.l.b16 %v664
    %v738 = vunpack.c.l.b16 %v665
    %v739 = vunpack.c.l.b16 %v666
    %v740 = vunpack.c.l.b16 %v667
    %v741 = vunpack.c.l.b16 %v668
    %v742 = vunpack.c.l.b16 %v669
    %v743 = vunpack.c.l.b16 %v670
    %v744 = vunpack.c.l.b16 %v671
    %v745 = vunpack.c.l.b16 %v672
    %v746 = vunpack.c.l.b16 %v673
    %v747 = vpack.c.b16 %v716, %v715
    %v748 = vpack.c.b16 %v718, %v717
    %v749 = vpack.c.b16 %v720, %v719
    %v750 = vpack.c.b16 %v722, %v721
    %v751 = vpack.c.b16 %v724, %v723
    %v752 = vpack.c.b16 %v726, %v725
    %v753 = vpack.c.b16 %v728, %v727
    %v754 = vpack.c.b16 %v730, %v729
    %v755 = vpack.c.b16 %v732, %v731
    %v756 = vpack.c.b16 %v734, %v733
    %v757 = vpack.c.b16 %v736, %v735
    %v758 = vpack.c.b16 %v738, %v737
    %v759 = vpack.c.b16 %v740, %v739
    %v760 = vpack.c.b16 %v742, %v741
    %v761 = vpack.c.b16 %v744, %v743
    %v762 = vpack.c.b16 %v746, %v745
    %v765 = vunpack.c.l.b16 %v674
    %v766 = vunpack.c.l.b16 %v675
    %v767 = vpack.c.b16 %v766, %v765
    %vm769 = vcmask 130048
    %v771 = vsel %vm769, %v747, 0
    %v774 = vsel %vm769, %v748, 0
    %v777 = vsel %vm769, %v749, 0
    %v780 = vsel %vm769, %v750, 0
    %v783 = vsel %vm769, %v751, 0
    %v786 = vsel %vm769, %v752, 0
    %v789 = vsel %vm769, %v753, 0
    %v792 = vsel %vm769, %v754, 0
    %v795 = vsel %vm769, %v755, 0
    %v798 = vsel %vm769, %v756, 0
    %v801 = vsel %vm769, %v757, 0
    %v804 = vsel %vm769, %v758, 0
    %v807 = vsel %vm769, %v759, 0
    %v810 = vsel %vm769, %v760, 0
    %v813 = vsel %vm769, %v761, 0
    %v816 = vsel %vm769, %v762, 0
    %818 = vmatprep.subr.bf16.mxu0 0
    %819 = vmatpush1.bf16.msra.mxu0 %v767
    %820 = vmatprep.subr.bf16.mxu0 0
    %821 = vmatpush1.bf16.msra.mxu0 0
    %822 = vmatprep.subr.bf16.mxu0 0
    %823 = vmatpush1.bf16.msra.mxu0 0
    %824 = vmatprep.subr.bf16.mxu0 0
    %825 = vmatpush1.bf16.msra.mxu0 0
    %826 = vmatprep.subr.bf16.mxu0 0
    %827 = vmatpush1.bf16.msra.mxu0 0
    %828 = vmatprep.subr.bf16.mxu0 0
    %829 = vmatpush1.bf16.msra.mxu0 0
    %830 = vmatprep.subr.bf16.mxu0 0
    %831 = vmatpush1.bf16.msra.mxu0 0
    %832 = vmatprep.subr.bf16.mxu0 0
    %833 = vmatpush1.bf16.msra.mxu0 0
    %834 = vmatprep.subr.bf16.mxu0 0
    %835 = vmatpush1.bf16.msra.mxu0 0
    %836 = vmatprep.subr.bf16.mxu0 0
    %837 = vmatpush1.bf16.msra.mxu0 0
    %838 = vmatprep.subr.bf16.mxu0 0
    %839 = vmatpush1.bf16.msra.mxu0 0
    %840 = vmatprep.subr.bf16.mxu0 0
    %841 = vmatpush1.bf16.msra.mxu0 0
    %842 = vmatprep.subr.bf16.mxu0 0
    %843 = vmatpush1.bf16.msra.mxu0 0
    %844 = vmatprep.subr.bf16.mxu0 0
    %845 = vmatpush1.bf16.msra.mxu0 0
    %846 = vmatprep.subr.bf16.mxu0 0
    %847 = vmatpush1.bf16.msra.mxu0 0
    %848 = vmatprep.subr.bf16.mxu0 0
    %849 = vmatpush1.bf16.msra.mxu0 0
    %850 = vmatprep.mubr.bf16.mxu0 0
    %851 = vmatmul.mubr.bf16.gmra.mrb[0].mxu0 %v771
    %v852 = vpop.f32.mrb[0].mxu0
    %v853 = vadd.f32 %v681, %v852
    %v854 = vpop.f32.mrb[0].mxu0
    %v855 = vpop.f32.mrb[0].mxu0
    %v856 = vadd.f32 %v681, %v855
    %v857 = vpop.f32.mrb[0].mxu0
    %858 = vmatprep.mubr.bf16.mxu0 0
    %859 = vmatmul.mubr.bf16.gmra.mrb[0].mxu0 %v774
    %v860 = vpop.f32.mrb[0].mxu0
    %v861 = vadd.f32 %v681, %v860
    %v862 = vpop.f32.mrb[0].mxu0
    %v863 = vpop.f32.mrb[0].mxu0
    %v864 = vadd.f32 %v681, %v863
    %v865 = vpop.f32.mrb[0].mxu0
    %866 = vmatprep.mubr.bf16.mxu0 0
    %867 = vmatmul.mubr.bf16.gmra.mrb[0].mxu0 %v777
    %v868 = vpop.f32.mrb[0].mxu0
    %v869 = vadd.f32 %v681, %v868
    %v870 = vpop.f32.mrb[0].mxu0
    %v871 = vpop.f32.mrb[0].mxu0
    %v872 = vadd.f32 %v681, %v871
    %v873 = vpop.f32.mrb[0].mxu0
    %874 = vmatprep.mubr.bf16.mxu0 0
    %875 = vmatmul.mubr.bf16.gmra.mrb[0].mxu0 %v780
    %v876 = vpop.f32.mrb[0].mxu0
    %v877 = vadd.f32 %v681, %v876
    %v878 = vpop.f32.mrb[0].mxu0
    %v879 = vpop.f32.mrb[0].mxu0
    %v880 = vadd.f32 %v681, %v879
    %v881 = vpop.f32.mrb[0].mxu0
    %882 = vmatprep.mubr.bf16.mxu0 0
    %883 = vmatmul.mubr.bf16.gmra.mrb[0].mxu0 %v783
    %v884 = vpop.f32.mrb[0].mxu0
    %v885 = vadd.f32 %v681, %v884
    %v886 = vpop.f32.mrb[0].mxu0
    %v887 = vpop.f32.mrb[0].mxu0
    %v888 = vadd.f32 %v681, %v887
    %v889 = vpop.f32.mrb[0].mxu0
    %890 = vmatprep.mubr.bf16.mxu0 0
    %891 = vmatmul.mubr.bf16.gmra.mrb[0].mxu0 %v786
    %v892 = vpop.f32.mrb[0].mxu0
    %v893 = vadd.f32 %v681, %v892
    %v894 = vpop.f32.mrb[0].mxu0
    %v895 = vpop.f32.mrb[0].mxu0
    %v896 = vadd.f32 %v681, %v895
    %v897 = vpop.f32.mrb[0].mxu0
    %898 = vmatprep.mubr.bf16.mxu0 0
    %899 = vmatmul.mubr.bf16.gmra.mrb[0].mxu0 %v789
    %v900 = vpop.f32.mrb[0].mxu0
    %v901 = vadd.f32 %v681, %v900
    %v902 = vpop.f32.mrb[0].mxu0
    %v903 = vpop.f32.mrb[0].mxu0
    %v904 = vadd.f32 %v681, %v903
    %v905 = vpop.f32.mrb[0].mxu0
    %906 = vmatprep.mubr.bf16.mxu0 0
    %907 = vmatmul.mubr.bf16.gmra.mrb[0].mxu0 %v792
    %v908 = vpop.f32.mrb[0].mxu0
    %v909 = vadd.f32 %v681, %v908
    %v910 = vpop.f32.mrb[0].mxu0
    %v911 = vpop.f32.mrb[0].mxu0
    %v912 = vadd.f32 %v681, %v911
    %v913 = vpop.f32.mrb[0].mxu0
    %914 = vmatprep.mubr.bf16.mxu0 0
    %915 = vmatmul.mubr.bf16.gmra.mrb[0].mxu0 %v795
    %v916 = vpop.f32.mrb[0].mxu0
    %v917 = vadd.f32 %v681, %v916
    %v918 = vpop.f32.mrb[0].mxu0
    %v919 = vpop.f32.mrb[0].mxu0
    %v920 = vadd.f32 %v681, %v919
    %v921 = vpop.f32.mrb[0].mxu0
    %922 = vmatprep.mubr.bf16.mxu0 0
    %923 = vmatmul.mubr.bf16.gmra.mrb[0].mxu0 %v798
    %v924 = vpop.f32.mrb[0].mxu0
    %v925 = vadd.f32 %v681, %v924
    %v926 = vpop.f32.mrb[0].mxu0
    %v927 = vpop.f32.mrb[0].mxu0
    %v928 = vadd.f32 %v681, %v927
    %v929 = vpop.f32.mrb[0].mxu0
    %930 = vmatprep.mubr.bf16.mxu0 0
    %931 = vmatmul.mubr.bf16.gmra.mrb[0].mxu0 %v801
    %v932 = vpop.f32.mrb[0].mxu0
    %v933 = vadd.f32 %v681, %v932
    %v934 = vpop.f32.mrb[0].mxu0
    %v935 = vpop.f32.mrb[0].mxu0
    %v936 = vadd.f32 %v681, %v935
    %v937 = vpop.f32.mrb[0].mxu0
    %938 = vmatprep.mubr.bf16.mxu0 0
    %939 = vmatmul.mubr.bf16.gmra.mrb[0].mxu0 %v804
    %v940 = vpop.f32.mrb[0].mxu0
    %v941 = vadd.f32 %v681, %v940
    %v942 = vpop.f32.mrb[0].mxu0
    %v943 = vpop.f32.mrb[0].mxu0
    %v944 = vadd.f32 %v681, %v943
    %v945 = vpop.f32.mrb[0].mxu0
    %946 = vmatprep.mubr.bf16.mxu0 0
    %947 = vmatmul.mubr.bf16.gmra.mrb[0].mxu0 %v807
    %v948 = vpop.f32.mrb[0].mxu0
    %v949 = vadd.f32 %v681, %v948
    %v950 = vpop.f32.mrb[0].mxu0
    %v951 = vpop.f32.mrb[0].mxu0
    %v952 = vadd.f32 %v681, %v951
    %v953 = vpop.f32.mrb[0].mxu0
    %954 = vmatprep.mubr.bf16.mxu0 0
    %955 = vmatmul.mubr.bf16.gmra.mrb[0].mxu0 %v810
    %v956 = vpop.f32.mrb[0].mxu0
    %v957 = vadd.f32 %v681, %v956
    %v958 = vpop.f32.mrb[0].mxu0
    %v959 = vpop.f32.mrb[0].mxu0
    %v960 = vadd.f32 %v681, %v959
    %v961 = vpop.f32.mrb[0].mxu0
    %962 = vmatprep.mubr.bf16.mxu0 0
    %963 = vmatmul.mubr.bf16.gmra.mrb[0].mxu0 %v813
    %v964 = vpop.f32.mrb[0].mxu0
    %v965 = vadd.f32 %v681, %v964
    %v966 = vpop.f32.mrb[0].mxu0
    %v967 = vpop.f32.mrb[0].mxu0
    %v968 = vadd.f32 %v681, %v967
    %v969 = vpop.f32.mrb[0].mxu0
    %970 = vmatprep.mubr.bf16.mxu0 0
    %971 = vmatmul.mubr.bf16.gmra.mrb[0].mxu0 %v816
    %v972 = vpop.f32.mrb[0].mxu0
    %v973 = vadd.f32 %v681, %v972
    %v974 = vpop.f32.mrb[0].mxu0
    %v975 = vpop.f32.mrb[0].mxu0
    %v976 = vadd.f32 %v681, %v975
    %v977 = vpop.f32.mrb[0].mxu0
    %978 = vdwg.mxu0
    %v979 = vmax.f32 %v853, 0.0
    %v980 = vmax.f32 %v856, 0.0
    %v981 = vmax.f32 %v861, 0.0
    %v982 = vmax.f32 %v864, 0.0
    %v983 = vmax.f32 %v869, 0.0
    %v984 = vmax.f32 %v872, 0.0
    %v985 = vmax.f32 %v877, 0.0
    %v986 = vmax.f32 %v880, 0.0
    %v987 = vmax.f32 %v885, 0.0
    %v988 = vmax.f32 %v888, 0.0
    %v989 = vmax.f32 %v893, 0.0
    %v990 = vmax.f32 %v896, 0.0
    %v991 = vmax.f32 %v901, 0.0
    %v992 = vmax.f32 %v904, 0.0
    %v993 = vmax.f32 %v909, 0.0
    %v994 = vmax.f32 %v912, 0.0
    %v995 = vmax.f32 %v917, 0.0
    %v996 = vmax.f32 %v920, 0.0
    %v997 = vmax.f32 %v925, 0.0
    %v998 = vmax.f32 %v928, 0.0
    %v999 = vmax.f32 %v933, 0.0
    %v1000 = vmax.f32 %v936, 0.0
    %v1001 = vmax.f32 %v941, 0.0
    %v1002 = vmax.f32 %v944, 0.0
    %v1003 = vmax.f32 %v949, 0.0
    %v1004 = vmax.f32 %v952, 0.0
    %v1005 = vmax.f32 %v957, 0.0
    %v1006 = vmax.f32 %v960, 0.0
    %v1007 = vmax.f32 %v965, 0.0
    %v1008 = vmax.f32 %v968, 0.0
    %v1009 = vmax.f32 %v973, 0.0
    %v1010 = vmax.f32 %v976, 0.0
    %v1011 = vpack.c.bf16 %v980, %v979
    %v1012 = vpack.c.bf16 %v982, %v981
    %v1013 = vpack.c.bf16 %v984, %v983
    %v1014 = vpack.c.bf16 %v986, %v985
    %v1015 = vpack.c.bf16 %v988, %v987
    %v1016 = vpack.c.bf16 %v990, %v989
    %v1017 = vpack.c.bf16 %v992, %v991
    %v1018 = vpack.c.bf16 %v994, %v993
    %v1019 = vpack.c.bf16 %v996, %v995
    %v1020 = vpack.c.bf16 %v998, %v997
    %v1021 = vpack.c.bf16 %v1000, %v999
    %v1022 = vpack.c.bf16 %v1002, %v1001
    %v1023 = vpack.c.bf16 %v1004, %v1003
    %v1024 = vpack.c.bf16 %v1006, %v1005
    %v1025 = vpack.c.bf16 %v1008, %v1007
    %v1026 = vpack.c.bf16 %v1010, %v1009
    %1043 = vrot.lane.b32.xlu0 %v1011, 8
    %v1044 = vpop.permute.xlu0 %1043
    %1045 = vrot.lane.b32.xlu0 %v1012, 8
    %v1046 = vpop.permute.xlu0 %1045
    %1047 = vrot.lane.b32.xlu0 %v1013, 8
    %v1048 = vpop.permute.xlu0 %1047
    %1049 = vrot.lane.b32.xlu0 %v1014, 8
    %v1050 = vpop.permute.xlu0 %1049
    %1051 = vrot.lane.b32.xlu0 %v1015, 8
    %v1052 = vpop.permute.xlu0 %1051
    %1053 = vrot.lane.b32.xlu0 %v1016, 8
    %v1054 = vpop.permute.xlu0 %1053
    %1055 = vrot.lane.b32.xlu0 %v1017, 8
    %v1056 = vpop.permute.xlu0 %1055
    %1057 = vrot.lane.b32.xlu0 %v1018, 8
    %v1058 = vpop.permute.xlu0 %1057
    %1059 = vrot.lane.b32.xlu0 %v1019, 8
    %v1060 = vpop.permute.xlu0 %1059
    %1061 = vrot.lane.b32.xlu0 %v1020, 8
    %v1062 = vpop.permute.xlu0 %1061
    %1063 = vrot.lane.b32.xlu0 %v1021, 8
    %v1064 = vpop.permute.xlu0 %1063
    %1065 = vrot.lane.b32.xlu0 %v1022, 8
    %v1066 = vpop.permute.xlu0 %1065
    %1067 = vrot.lane.b32.xlu0 %v1023, 8
    %v1068 = vpop.permute.xlu0 %1067
    %1069 = vrot.lane.b32.xlu0 %v1024, 8
    %v1070 = vpop.permute.xlu0 %1069
    %1071 = vrot.lane.b32.xlu0 %v1025, 8
    %v1072 = vpop.permute.xlu0 %1071
    %1073 = vrot.lane.b32.xlu0 %v1026, 8
    %v1074 = vpop.permute.xlu0 %1073
    %vm1091 = vcmask 130112
    %1092 = vst.msk [vmem:[#allocation2 + $0x8] sm:$0xff] %vm1091, %v1044
    %1093 = vst.msk [vmem:[#allocation2 + $0x10] sm:$0xff] %vm1091, %v1046
    %1094 = vst.msk [vmem:[#allocation2 + $0x18] sm:$0xff] %vm1091, %v1048
    %1095 = vst.msk [vmem:[#allocation2 + $0x20] sm:$0xff] %vm1091, %v1050
    %1096 = vst.msk [vmem:[#allocation2 + $0x28] sm:$0xff] %vm1091, %v1052
    %1097 = vst.msk [vmem:[#allocation2 + $0x30] sm:$0xff] %vm1091, %v1054
    %1098 = vst.msk [vmem:[#allocation2 + $0x38] sm:$0xff] %vm1091, %v1056
    %1099 = vst.msk [vmem:[#allocation2 + $0x40] sm:$0xff] %vm1091, %v1058
    %1100 = vst.msk [vmem:[#allocation2 + $0x48] sm:$0xff] %vm1091, %v1060
    %1101 = vst.msk [vmem:[#allocation2 + $0x50] sm:$0xff] %vm1091, %v1062
    %1102 = vst.msk [vmem:[#allocation2 + $0x58] sm:$0xff] %vm1091, %v1064
    %1103 = vst.msk [vmem:[#allocation2 + $0x60] sm:$0xff] %vm1091, %v1066
    %1104 = vst.msk [vmem:[#allocation2 + $0x68] sm:$0xff] %vm1091, %v1068
    %1105 = vst.msk [vmem:[#allocation2 + $0x70] sm:$0xff] %vm1091, %v1070
    %1106 = vst.msk [vmem:[#allocation2 + $0x78] sm:$0xff] %vm1091, %v1072
    %1107 = vst.msk [vmem:[#allocation2 + $0x80] sm:$0xff] %vm1091, %v1074
    %v1108 = vld [vmem:[#allocation2] sm:$0x80]
    %v1109 = vld [vmem:[#allocation2 + $0x8] sm:$0xff]
    %v1110 = vld [vmem:[#allocation2 + $0x10] sm:$0xff]
    %v1111 = vld [vmem:[#allocation2 + $0x18] sm:$0xff]
    %v1112 = vld [vmem:[#allocation2 + $0x20] sm:$0xff]
    %v1113 = vld [vmem:[#allocation2 + $0x28] sm:$0xff]
    %v1114 = vld [vmem:[#allocation2 + $0x30] sm:$0xff]
    %v1115 = vld [vmem:[#allocation2 + $0x38] sm:$0xff]
    %v1116 = vld [vmem:[#allocation2 + $0x40] sm:$0xff]
    %v1117 = vld [vmem:[#allocation2 + $0x48] sm:$0xff]
    %v1118 = vld [vmem:[#allocation2 + $0x50] sm:$0xff]
    %v1119 = vld [vmem:[#allocation2 + $0x58] sm:$0xff]
    %v1120 = vld [vmem:[#allocation2 + $0x60] sm:$0xff]
    %v1121 = vld [vmem:[#allocation2 + $0x68] sm:$0xff]
    %v1122 = vld [vmem:[#allocation2 + $0x70] sm:$0xff]
    %v1123 = vld [vmem:[#allocation2 + $0x78] sm:$0xff]
    %v1124 = vld [vmem:[#allocation2 + $0x80] sm:$0xff]
    %v1125 = vld [vmem:[#allocation2 + $0x88] sm:$0x1]
    %vm1126 = vmpackc.low %vm511, %vm511
    %vm1127 = vmpackc.low %vm512, %vm512
    %vm1128 = vmpackc.low %vm513, %vm513
    %vm1129 = vmpackc.low %vm514, %vm514
    %vm1130 = vmpackc.low %vm515, %vm515
    %vm1131 = vmpackc.low %vm516, %vm516
    %vm1132 = vmpackc.low %vm517, %vm517
    %vm1133 = vmpackc.low %vm518, %vm518
    %vm1134 = vmpackc.low %vm519, %vm519
    %vm1135 = vmpackc.low %vm520, %vm520
    %vm1136 = vmpackc.low %vm521, %vm521
    %vm1137 = vmpackc.low %vm522, %vm522
    %vm1138 = vmpackc.low %vm523, %vm523
    %vm1139 = vmpackc.low %vm524, %vm524
    %vm1140 = vmpackc.low %vm525, %vm525
    %vm1141 = vmpackc.low %vm526, %vm526
    %vm1142 = vmpackc.low %vm527, %vm527
    %vm1143 = vmpackc.low %vm528, %vm528
    %vm1144 = vmpackc.low %vm529, %vm529
    %vm1145 = vmpackc.low %vm530, %vm530
    %vm1146 = vmpackc.low %vm531, %vm531
    %vm1147 = vmpackc.low %vm532, %vm532
    %vm1148 = vmpackc.low %vm533, %vm533
    %vm1149 = vmpackc.low %vm534, %vm534
    %vm1150 = vmpackc.low %vm535, %vm535
    %vm1151 = vmpackc.low %vm536, %vm536
    %vm1152 = vmpackc.low %vm537, %vm537
    %vm1153 = vmpackc.low %vm538, %vm538
    %vm1154 = vmpackc.low %vm539, %vm539
    %vm1155 = vmpackc.low %vm540, %vm540
    %vm1156 = vmpackc.low %vm541, %vm541
    %vm1157 = vmpackc.low %vm542, %vm542
    %v1158 = vsel %vm1126, 65537, 0
    %v1159 = vsel %vm1127, 65537, 0
    %v1160 = vsel %vm1128, 65537, 0
    %v1161 = vsel %vm1129, 65537, 0
    %v1162 = vsel %vm1130, 65537, 0
    %v1163 = vsel %vm1131, 65537, 0
    %v1164 = vsel %vm1132, 65537, 0
    %v1165 = vsel %vm1133, 65537, 0
    %v1166 = vsel %vm1134, 65537, 0
    %v1167 = vsel %vm1135, 65537, 0
    %v1168 = vsel %vm1136, 65537, 0
    %v1169 = vsel %vm1137, 65537, 0
    %v1170 = vsel %vm1138, 65537, 0
    %v1171 = vsel %vm1139, 65537, 0
    %v1172 = vsel %vm1140, 65537, 0
    %v1173 = vsel %vm1141, 65537, 0
    %v1174 = vsel %vm1142, 65537, 0
    %v1175 = vsel %vm1143, 65537, 0
    %v1176 = vsel %vm1144, 65537, 0
    %v1177 = vsel %vm1145, 65537, 0
    %v1178 = vsel %vm1146, 65537, 0
    %v1179 = vsel %vm1147, 65537, 0
    %v1180 = vsel %vm1148, 65537, 0
    %v1181 = vsel %vm1149, 65537, 0
    %v1182 = vsel %vm1150, 65537, 0
    %v1183 = vsel %vm1151, 65537, 0
    %v1184 = vsel %vm1152, 65537, 0
    %v1185 = vsel %vm1153, 65537, 0
    %v1186 = vsel %vm1154, 65537, 0
    %v1187 = vsel %vm1155, 65537, 0
    %v1188 = vsel %vm1156, 65537, 0
    %v1189 = vsel %vm1157, 65537, 0
    %v1190 = vunpack.c.l.b16 %v1158
    %v1191 = vunpack.c.l.b16 %v1159
    %v1192 = vunpack.c.l.b16 %v1160
    %v1193 = vunpack.c.l.b16 %v1161
    %v1194 = vunpack.c.l.b16 %v1162
    %v1195 = vunpack.c.l.b16 %v1163
    %v1196 = vunpack.c.l.b16 %v1164
    %v1197 = vunpack.c.l.b16 %v1165
    %v1198 = vunpack.c.l.b16 %v1166
    %v1199 = vunpack.c.l.b16 %v1167
    %v1200 = vunpack.c.l.b16 %v1168
    %v1201 = vunpack.c.l.b16 %v1169
    %v1202 = vunpack.c.l.b16 %v1170
    %v1203 = vunpack.c.l.b16 %v1171
    %v1204 = vunpack.c.l.b16 %v1172
    %v1205 = vunpack.c.l.b16 %v1173
    %v1206 = vunpack.c.l.b16 %v1174
    %v1207 = vunpack.c.l.b16 %v1175
    %v1208 = vunpack.c.l.b16 %v1176
    %v1209 = vunpack.c.l.b16 %v1177
    %v1210 = vunpack.c.l.b16 %v1178
    %v1211 = vunpack.c.l.b16 %v1179
    %v1212 = vunpack.c.l.b16 %v1180
    %v1213 = vunpack.c.l.b16 %v1181
    %v1214 = vunpack.c.l.b16 %v1182
    %v1215 = vunpack.c.l.b16 %v1183
    %v1216 = vunpack.c.l.b16 %v1184
    %v1217 = vunpack.c.l.b16 %v1185
    %v1218 = vunpack.c.l.b16 %v1186
    %v1219 = vunpack.c.l.b16 %v1187
    %v1220 = vunpack.c.l.b16 %v1188
    %v1221 = vunpack.c.l.b16 %v1189
    %v1222 = vpack.c.b16 %v1191, %v1190
    %v1223 = vpack.c.b16 %v1193, %v1192
    %v1224 = vpack.c.b16 %v1195, %v1194
    %v1225 = vpack.c.b16 %v1197, %v1196
    %v1226 = vpack.c.b16 %v1199, %v1198
    %v1227 = vpack.c.b16 %v1201, %v1200
    %v1228 = vpack.c.b16 %v1203, %v1202
    %v1229 = vpack.c.b16 %v1205, %v1204
    %v1230 = vpack.c.b16 %v1207, %v1206
    %v1231 = vpack.c.b16 %v1209, %v1208
    %v1232 = vpack.c.b16 %v1211, %v1210
    %v1233 = vpack.c.b16 %v1213, %v1212
    %v1234 = vpack.c.b16 %v1215, %v1214
    %v1235 = vpack.c.b16 %v1217, %v1216
    %v1236 = vpack.c.b16 %v1219, %v1218
    %v1237 = vpack.c.b16 %v1221, %v1220
    %vm1238 = vsmask.f32 7424
    %v1240 = vshll.u32 %v1222, 16
    %v1242 = vrot.slane %v1240, 1
    %v1243 = vshrl.u32 %v1222, 16
    %v1245 = vor.u32 %v1243, %v1242
    %v1247 = vshll.u32 %v1223, 16
    %v1249 = vrot.slane %v1247, 1
    %v1250 = vsel %vm1238, %v1245, %v1249
    %v1251 = vshrl.u32 %v1223, 16
    %v1253 = vor.u32 %v1251, %v1249
    %v1255 = vshll.u32 %v1224, 16
    %v1257 = vrot.slane %v1255, 1
    %v1258 = vsel %vm1238, %v1253, %v1257
    %v1259 = vshrl.u32 %v1224, 16
    %v1261 = vor.u32 %v1259, %v1257
    %v1263 = vshll.u32 %v1225, 16
    %v1265 = vrot.slane %v1263, 1
    %v1266 = vsel %vm1238, %v1261, %v1265
    %v1267 = vshrl.u32 %v1225, 16
    %v1269 = vor.u32 %v1267, %v1265
    %v1271 = vshll.u32 %v1226, 16
    %v1273 = vrot.slane %v1271, 1
    %v1274 = vsel %vm1238, %v1269, %v1273
    %v1275 = vshrl.u32 %v1226, 16
    %v1277 = vor.u32 %v1275, %v1273
    %v1279 = vshll.u32 %v1227, 16
    %v1281 = vrot.slane %v1279, 1
    %v1282 = vsel %vm1238, %v1277, %v1281
    %v1283 = vshrl.u32 %v1227, 16
    %v1285 = vor.u32 %v1283, %v1281
    %v1287 = vshll.u32 %v1228, 16
    %v1289 = vrot.slane %v1287, 1
    %v1290 = vsel %vm1238, %v1285, %v1289
    %v1291 = vshrl.u32 %v1228, 16
    %v1293 = vor.u32 %v1291, %v1289
    %v1295 = vshll.u32 %v1229, 16
    %v1297 = vrot.slane %v1295, 1
    %v1298 = vsel %vm1238, %v1293, %v1297
    %v1299 = vshrl.u32 %v1229, 16
    %v1301 = vor.u32 %v1299, %v1297
    %v1303 = vshll.u32 %v1230, 16
    %v1305 = vrot.slane %v1303, 1
    %v1306 = vsel %vm1238, %v1301, %v1305
    %v1307 = vshrl.u32 %v1230, 16
    %v1309 = vor.u32 %v1307, %v1305
    %v1311 = vshll.u32 %v1231, 16
    %v1313 = vrot.slane %v1311, 1
    %v1314 = vsel %vm1238, %v1309, %v1313
    %v1315 = vshrl.u32 %v1231, 16
    %v1317 = vor.u32 %v1315, %v1313
    %v1319 = vshll.u32 %v1232, 16
    %v1321 = vrot.slane %v1319, 1
    %v1322 = vsel %vm1238, %v1317, %v1321
    %v1323 = vshrl.u32 %v1232, 16
    %v1325 = vor.u32 %v1323, %v1321
    %v1327 = vshll.u32 %v1233, 16
    %v1329 = vrot.slane %v1327, 1
    %v1330 = vsel %vm1238, %v1325, %v1329
    %v1331 = vshrl.u32 %v1233, 16
    %v1333 = vor.u32 %v1331, %v1329
    %v1335 = vshll.u32 %v1234, 16
    %v1337 = vrot.slane %v1335, 1
    %v1338 = vsel %vm1238, %v1333, %v1337
    %v1339 = vshrl.u32 %v1234, 16
    %v1341 = vor.u32 %v1339, %v1337
    %v1343 = vshll.u32 %v1235, 16
    %v1345 = vrot.slane %v1343, 1
    %v1346 = vsel %vm1238, %v1341, %v1345
    %v1347 = vshrl.u32 %v1235, 16
    %v1349 = vor.u32 %v1347, %v1345
    %v1351 = vshll.u32 %v1236, 16
    %v1353 = vrot.slane %v1351, 1
    %v1354 = vsel %vm1238, %v1349, %v1353
    %v1355 = vshrl.u32 %v1236, 16
    %v1357 = vor.u32 %v1355, %v1353
    %v1359 = vshll.u32 %v1237, 16
    %v1361 = vrot.slane %v1359, 1
    %v1362 = vsel %vm1238, %v1357, %v1361
    %v1363 = vshrl.u32 %v1237, 16
    %v1365 = vor.u32 %v1363, %v1361
    %vm1366 = vcmp.ne.s16.totalorder %v1242, 0
    %vm1367 = vcmp.ne.s16.totalorder %v1250, 0
    %vm1368 = vcmp.ne.s16.totalorder %v1258, 0
    %vm1369 = vcmp.ne.s16.totalorder %v1266, 0
    %vm1370 = vcmp.ne.s16.totalorder %v1274, 0
    %vm1371 = vcmp.ne.s16.totalorder %v1282, 0
    %vm1372 = vcmp.ne.s16.totalorder %v1290, 0
    %vm1373 = vcmp.ne.s16.totalorder %v1298, 0
    %vm1374 = vcmp.ne.s16.totalorder %v1306, 0
    %vm1375 = vcmp.ne.s16.totalorder %v1314, 0
    %vm1376 = vcmp.ne.s16.totalorder %v1322, 0
    %vm1377 = vcmp.ne.s16.totalorder %v1330, 0
    %vm1378 = vcmp.ne.s16.totalorder %v1338, 0
    %vm1379 = vcmp.ne.s16.totalorder %v1346, 0
    %vm1380 = vcmp.ne.s16.totalorder %v1354, 0
    %vm1381 = vcmp.ne.s16.totalorder %v1362, 0
    %vm1382 = vcmp.ne.s16.totalorder %v1365, 0
    %v1383 = vsel %vm1366, %v1108, 0
    %v1384 = vsel %vm1367, %v1109, 0
    %v1385 = vsel %vm1368, %v1110, 0
    %v1386 = vsel %vm1369, %v1111, 0
    %v1387 = vsel %vm1370, %v1112, 0
    %v1388 = vsel %vm1371, %v1113, 0
    %v1389 = vsel %vm1372, %v1114, 0
    %v1390 = vsel %vm1373, %v1115, 0
    %v1391 = vsel %vm1374, %v1116, 0
    %v1392 = vsel %vm1375, %v1117, 0
    %v1393 = vsel %vm1376, %v1118, 0
    %v1394 = vsel %vm1377, %v1119, 0
    %v1395 = vsel %vm1378, %v1120, 0
    %v1396 = vsel %vm1379, %v1121, 0
    %v1397 = vsel %vm1380, %v1122, 0
    %v1398 = vsel %vm1381, %v1123, 0
    %v1399 = vsel %vm1382, %v1124, 0
    %vm1400 = vsmask.f32 256
    %v1402 = vshrl.u32 %v1383, 16
    %v1404 = vrot.slane %v1402, 7
    %v1406 = vshrl.u32 %v1384, 16
    %v1408 = vrot.slane %v1406, 7
    %v1409 = vshll.u32 %v1384, 16
    %v1411 = vor.u32 %v1408, %v1409
    %v1412 = vsel %vm1400, %v1404, %v1411
    %v1414 = vshrl.u32 %v1385, 16
    %v1416 = vrot.slane %v1414, 7
    %v1417 = vshll.u32 %v1385, 16
    %v1419 = vor.u32 %v1416, %v1417
    %v1420 = vsel %vm1400, %v1408, %v1419
    %v1422 = vshrl.u32 %v1386, 16
    %v1424 = vrot.slane %v1422, 7
    %v1425 = vshll.u32 %v1386, 16
    %v1427 = vor.u32 %v1424, %v1425
    %v1428 = vsel %vm1400, %v1416, %v1427
    %v1430 = vshrl.u32 %v1387, 16
    %v1432 = vrot.slane %v1430, 7
    %v1433 = vshll.u32 %v1387, 16
    %v1435 = vor.u32 %v1432, %v1433
    %v1436 = vsel %vm1400, %v1424, %v1435
    %v1438 = vshrl.u32 %v1388, 16
    %v1440 = vrot.slane %v1438, 7
    %v1441 = vshll.u32 %v1388, 16
    %v1443 = vor.u32 %v1440, %v1441
    %v1444 = vsel %vm1400, %v1432, %v1443
    %v1446 = vshrl.u32 %v1389, 16
    %v1448 = vrot.slane %v1446, 7
    %v1449 = vshll.u32 %v1389, 16
    %v1451 = vor.u32 %v1448, %v1449
    %v1452 = vsel %vm1400, %v1440, %v1451
    %v1454 = vshrl.u32 %v1390, 16
    %v1456 = vrot.slane %v1454, 7
    %v1457 = vshll.u32 %v1390, 16
    %v1459 = vor.u32 %v1456, %v1457
    %v1460 = vsel %vm1400, %v1448, %v1459
    %v1462 = vshrl.u32 %v1391, 16
    %v1464 = vrot.slane %v1462, 7
    %v1465 = vshll.u32 %v1391, 16
    %v1467 = vor.u32 %v1464, %v1465
    %v1468 = vsel %vm1400, %v1456, %v1467
    %v1470 = vshrl.u32 %v1392, 16
    %v1472 = vrot.slane %v1470, 7
    %v1473 = vshll.u32 %v1392, 16
    %v1475 = vor.u32 %v1472, %v1473
    %v1476 = vsel %vm1400, %v1464, %v1475
    %v1478 = vshrl.u32 %v1393, 16
    %v1480 = vrot.slane %v1478, 7
    %v1481 = vshll.u32 %v1393, 16
    %v1483 = vor.u32 %v1480, %v1481
    %v1484 = vsel %vm1400, %v1472, %v1483
    %v1486 = vshrl.u32 %v1394, 16
    %v1488 = vrot.slane %v1486, 7
    %v1489 = vshll.u32 %v1394, 16
    %v1491 = vor.u32 %v1488, %v1489
    %v1492 = vsel %vm1400, %v1480, %v1491
    %v1494 = vshrl.u32 %v1395, 16
    %v1496 = vrot.slane %v1494, 7
    %v1497 = vshll.u32 %v1395, 16
    %v1499 = vor.u32 %v1496, %v1497
    %v1500 = vsel %vm1400, %v1488, %v1499
    %v1502 = vshrl.u32 %v1396, 16
    %v1504 = vrot.slane %v1502, 7
    %v1505 = vshll.u32 %v1396, 16
    %v1507 = vor.u32 %v1504, %v1505
    %v1508 = vsel %vm1400, %v1496, %v1507
    %v1510 = vshrl.u32 %v1397, 16
    %v1512 = vrot.slane %v1510, 7
    %v1513 = vshll.u32 %v1397, 16
    %v1515 = vor.u32 %v1512, %v1513
    %v1516 = vsel %vm1400, %v1504, %v1515
    %v1518 = vshrl.u32 %v1398, 16
    %v1520 = vrot.slane %v1518, 7
    %v1521 = vshll.u32 %v1398, 16
    %v1523 = vor.u32 %v1520, %v1521
    %v1524 = vsel %vm1400, %v1512, %v1523
    %v1526 = vshrl.u32 %v1399, 16
    %v1528 = vrot.slane %v1526, 7
    %v1529 = vshll.u32 %v1399, 16
    %v1531 = vor.u32 %v1528, %v1529
    %v1532 = vsel %vm1400, %v1520, %v1531
    %1533 = vrot.lane.b32.xlu0 %v1412, 120
    %v1534 = vpop.permute.xlu0 %1533
    %1535 = vrot.lane.b32.xlu0 %v1420, 120
    %v1536 = vpop.permute.xlu0 %1535
    %1537 = vrot.lane.b32.xlu0 %v1428, 120
    %v1538 = vpop.permute.xlu0 %1537
    %1539 = vrot.lane.b32.xlu0 %v1436, 120
    %v1540 = vpop.permute.xlu0 %1539
    %1541 = vrot.lane.b32.xlu0 %v1444, 120
    %v1542 = vpop.permute.xlu0 %1541
    %1543 = vrot.lane.b32.xlu0 %v1452, 120
    %v1544 = vpop.permute.xlu0 %1543
    %1545 = vrot.lane.b32.xlu0 %v1460, 120
    %v1546 = vpop.permute.xlu0 %1545
    %1547 = vrot.lane.b32.xlu0 %v1468, 120
    %v1548 = vpop.permute.xlu0 %1547
    %1549 = vrot.lane.b32.xlu0 %v1476, 120
    %v1550 = vpop.permute.xlu0 %1549
    %1551 = vrot.lane.b32.xlu0 %v1484, 120
    %v1552 = vpop.permute.xlu0 %1551
    %1553 = vrot.lane.b32.xlu0 %v1492, 120
    %v1554 = vpop.permute.xlu0 %1553
    %1555 = vrot.lane.b32.xlu0 %v1500, 120
    %v1556 = vpop.permute.xlu0 %1555
    %1557 = vrot.lane.b32.xlu0 %v1508, 120
    %v1558 = vpop.permute.xlu0 %1557
    %1559 = vrot.lane.b32.xlu0 %v1516, 120
    %v1560 = vpop.permute.xlu0 %1559
    %1561 = vrot.lane.b32.xlu0 %v1524, 120
    %v1562 = vpop.permute.xlu0 %1561
    %1563 = vrot.lane.b32.xlu0 %v1532, 120
    %v1564 = vpop.permute.xlu0 %1563
    %vm1581 = vcmask 64512
    %1582 = vst.msk [vmem:[#allocation2 + $0x8] sm:$0xff] %vm1581, %v1534
    %1583 = vst.msk [vmem:[#allocation2 + $0x10] sm:$0xff] %vm1581, %v1536
    %1584 = vst.msk [vmem:[#allocation2 + $0x18] sm:$0xff] %vm1581, %v1538
    %1585 = vst.msk [vmem:[#allocation2 + $0x20] sm:$0xff] %vm1581, %v1540
    %1586 = vst.msk [vmem:[#allocation2 + $0x28] sm:$0xff] %vm1581, %v1542
    %1587 = vst.msk [vmem:[#allocation2 + $0x30] sm:$0xff] %vm1581, %v1544
    %1588 = vst.msk [vmem:[#allocation2 + $0x38] sm:$0xff] %vm1581, %v1546
    %1589 = vst.msk [vmem:[#allocation2 + $0x40] sm:$0xff] %vm1581, %v1548
    %1590 = vst.msk [vmem:[#allocation2 + $0x48] sm:$0xff] %vm1581, %v1550
    %1591 = vst.msk [vmem:[#allocation2 + $0x50] sm:$0xff] %vm1581, %v1552
    %1592 = vst.msk [vmem:[#allocation2 + $0x58] sm:$0xff] %vm1581, %v1554
    %1593 = vst.msk [vmem:[#allocation2 + $0x60] sm:$0xff] %vm1581, %v1556
    %1594 = vst.msk [vmem:[#allocation2 + $0x68] sm:$0xff] %vm1581, %v1558
    %1595 = vst.msk [vmem:[#allocation2 + $0x70] sm:$0xff] %vm1581, %v1560
    %1596 = vst.msk [vmem:[#allocation2 + $0x78] sm:$0xff] %vm1581, %v1562
    %1597 = vst.msk [vmem:[#allocation2 + $0x80] sm:$0xff] %vm1581, %v1564
    %vm1598 = vmpackc.low %vm607, %vm607
    %vm1599 = vmpackc.low %vm608, %vm608
    %vm1600 = vmpackc.low %vm609, %vm609
    %vm1601 = vmpackc.low %vm610, %vm610
    %vm1602 = vmpackc.low %vm611, %vm611
    %vm1603 = vmpackc.low %vm612, %vm612
    %vm1604 = vmpackc.low %vm613, %vm613
    %vm1605 = vmpackc.low %vm614, %vm614
    %vm1606 = vmpackc.low %vm615, %vm615
    %vm1607 = vmpackc.low %vm616, %vm616
    %vm1608 = vmpackc.low %vm617, %vm617
    %vm1609 = vmpackc.low %vm618, %vm618
    %vm1610 = vmpackc.low %vm619, %vm619
    %vm1611 = vmpackc.low %vm620, %vm620
    %vm1612 = vmpackc.low %vm621, %vm621
    %vm1613 = vmpackc.low %vm622, %vm622
    %vm1614 = vmpackc.low %vm623, %vm623
    %vm1615 = vmpackc.low %vm624, %vm624
    %vm1616 = vmpackc.low %vm625, %vm625
    %vm1617 = vmpackc.low %vm626, %vm626
    %vm1618 = vmpackc.low %vm627, %vm627
    %vm1619 = vmpackc.low %vm628, %vm628
    %vm1620 = vmpackc.low %vm629, %vm629
    %vm1621 = vmpackc.low %vm630, %vm630
    %vm1622 = vmpackc.low %vm631, %vm631
    %vm1623 = vmpackc.low %vm632, %vm632
    %vm1624 = vmpackc.low %vm633, %vm633
    %vm1625 = vmpackc.low %vm634, %vm634
    %vm1626 = vmpackc.low %vm635, %vm635
    %vm1627 = vmpackc.low %vm636, %vm636
    %vm1628 = vmpackc.low %vm637, %vm637
    %vm1629 = vmpackc.low %vm638, %vm638
    %v1630 = vsel %vm1598, 65537, 0
    %v1631 = vsel %vm1599, 65537, 0
    %v1632 = vsel %vm1600, 65537, 0
    %v1633 = vsel %vm1601, 65537, 0
    %v1634 = vsel %vm1602, 65537, 0
    %v1635 = vsel %vm1603, 65537, 0
    %v1636 = vsel %vm1604, 65537, 0
    %v1637 = vsel %vm1605, 65537, 0
    %v1638 = vsel %vm1606, 65537, 0
    %v1639 = vsel %vm1607, 65537, 0
    %v1640 = vsel %vm1608, 65537, 0
    %v1641 = vsel %vm1609, 65537, 0
    %v1642 = vsel %vm1610, 65537, 0
    %v1643 = vsel %vm1611, 65537, 0
    %v1644 = vsel %vm1612, 65537, 0
    %v1645 = vsel %vm1613, 65537, 0
    %v1646 = vsel %vm1614, 65537, 0
    %v1647 = vsel %vm1615, 65537, 0
    %v1648 = vsel %vm1616, 65537, 0
    %v1649 = vsel %vm1617, 65537, 0
    %v1650 = vsel %vm1618, 65537, 0
    %v1651 = vsel %vm1619, 65537, 0
    %v1652 = vsel %vm1620, 65537, 0
    %v1653 = vsel %vm1621, 65537, 0
    %v1654 = vsel %vm1622, 65537, 0
    %v1655 = vsel %vm1623, 65537, 0
    %v1656 = vsel %vm1624, 65537, 0
    %v1657 = vsel %vm1625, 65537, 0
    %v1658 = vsel %vm1626, 65537, 0
    %v1659 = vsel %vm1627, 65537, 0
    %v1660 = vsel %vm1628, 65537, 0
    %v1661 = vsel %vm1629, 65537, 0
    %v1662 = vunpack.c.l.b16 %v1630
    %v1663 = vunpack.c.l.b16 %v1631
    %v1664 = vunpack.c.l.b16 %v1632
    %v1665 = vunpack.c.l.b16 %v1633
    %v1666 = vunpack.c.l.b16 %v1634
    %v1667 = vunpack.c.l.b16 %v1635
    %v1668 = vunpack.c.l.b16 %v1636
    %v1669 = vunpack.c.l.b16 %v1637
    %v1670 = vunpack.c.l.b16 %v1638
    %v1671 = vunpack.c.l.b16 %v1639
    %v1672 = vunpack.c.l.b16 %v1640
    %v1673 = vunpack.c.l.b16 %v1641
    %v1674 = vunpack.c.l.b16 %v1642
    %v1675 = vunpack.c.l.b16 %v1643
    %v1676 = vunpack.c.l.b16 %v1644
    %v1677 = vunpack.c.l.b16 %v1645
    %v1678 = vunpack.c.l.b16 %v1646
    %v1679 = vunpack.c.l.b16 %v1647
    %v1680 = vunpack.c.l.b16 %v1648
    %v1681 = vunpack.c.l.b16 %v1649
    %v1682 = vunpack.c.l.b16 %v1650
    %v1683 = vunpack.c.l.b16 %v1651
    %v1684 = vunpack.c.l.b16 %v1652
    %v1685 = vunpack.c.l.b16 %v1653
    %v1686 = vunpack.c.l.b16 %v1654
    %v1687 = vunpack.c.l.b16 %v1655
    %v1688 = vunpack.c.l.b16 %v1656
    %v1689 = vunpack.c.l.b16 %v1657
    %v1690 = vunpack.c.l.b16 %v1658
    %v1691 = vunpack.c.l.b16 %v1659
    %v1692 = vunpack.c.l.b16 %v1660
    %v1693 = vunpack.c.l.b16 %v1661
    %v1694 = vpack.c.b16 %v1663, %v1662
    %v1695 = vpack.c.b16 %v1665, %v1664
    %v1696 = vpack.c.b16 %v1667, %v1666
    %v1697 = vpack.c.b16 %v1669, %v1668
    %v1698 = vpack.c.b16 %v1671, %v1670
    %v1699 = vpack.c.b16 %v1673, %v1672
    %v1700 = vpack.c.b16 %v1675, %v1674
    %v1701 = vpack.c.b16 %v1677, %v1676
    %v1702 = vpack.c.b16 %v1679, %v1678
    %v1703 = vpack.c.b16 %v1681, %v1680
    %v1704 = vpack.c.b16 %v1683, %v1682
    %v1705 = vpack.c.b16 %v1685, %v1684
    %v1706 = vpack.c.b16 %v1687, %v1686
    %v1707 = vpack.c.b16 %v1689, %v1688
    %v1708 = vpack.c.b16 %v1691, %v1690
    %v1709 = vpack.c.b16 %v1693, %v1692
    %v1711 = vshrl.u32 %v1694, 16
    %v1713 = vrot.slane %v1711, 7
    %v1714 = vshll.u32 %v1694, 16
    %v1716 = vor.u32 %v1713, %v1714
    %v1718 = vshrl.u32 %v1695, 16
    %v1720 = vrot.slane %v1718, 7
    %v1721 = vshll.u32 %v1695, 16
    %v1723 = vor.u32 %v1720, %v1721
    %v1724 = vsel %vm1400, %v1713, %v1723
    %v1726 = vshrl.u32 %v1696, 16
    %v1728 = vrot.slane %v1726, 7
    %v1729 = vshll.u32 %v1696, 16
    %v1731 = vor.u32 %v1728, %v1729
    %v1732 = vsel %vm1400, %v1720, %v1731
    %v1734 = vshrl.u32 %v1697, 16
    %v1736 = vrot.slane %v1734, 7
    %v1737 = vshll.u32 %v1697, 16
    %v1739 = vor.u32 %v1736, %v1737
    %v1740 = vsel %vm1400, %v1728, %v1739
    %v1742 = vshrl.u32 %v1698, 16
    %v1744 = vrot.slane %v1742, 7
    %v1745 = vshll.u32 %v1698, 16
    %v1747 = vor.u32 %v1744, %v1745
    %v1748 = vsel %vm1400, %v1736, %v1747
    %v1750 = vshrl.u32 %v1699, 16
    %v1752 = vrot.slane %v1750, 7
    %v1753 = vshll.u32 %v1699, 16
    %v1755 = vor.u32 %v1752, %v1753
    %v1756 = vsel %vm1400, %v1744, %v1755
    %v1758 = vshrl.u32 %v1700, 16
    %v1760 = vrot.slane %v1758, 7
    %v1761 = vshll.u32 %v1700, 16
    %v1763 = vor.u32 %v1760, %v1761
    %v1764 = vsel %vm1400, %v1752, %v1763
    %v1766 = vshrl.u32 %v1701, 16
    %v1768 = vrot.slane %v1766, 7
    %v1769 = vshll.u32 %v1701, 16
    %v1771 = vor.u32 %v1768, %v1769
    %v1772 = vsel %vm1400, %v1760, %v1771
    %v1774 = vshrl.u32 %v1702, 16
    %v1776 = vrot.slane %v1774, 7
    %v1777 = vshll.u32 %v1702, 16
    %v1779 = vor.u32 %v1776, %v1777
    %v1780 = vsel %vm1400, %v1768, %v1779
    %v1782 = vshrl.u32 %v1703, 16
    %v1784 = vrot.slane %v1782, 7
    %v1785 = vshll.u32 %v1703, 16
    %v1787 = vor.u32 %v1784, %v1785
    %v1788 = vsel %vm1400, %v1776, %v1787
    %v1790 = vshrl.u32 %v1704, 16
    %v1792 = vrot.slane %v1790, 7
    %v1793 = vshll.u32 %v1704, 16
    %v1795 = vor.u32 %v1792, %v1793
    %v1796 = vsel %vm1400, %v1784, %v1795
    %v1798 = vshrl.u32 %v1705, 16
    %v1800 = vrot.slane %v1798, 7
    %v1801 = vshll.u32 %v1705, 16
    %v1803 = vor.u32 %v1800, %v1801
    %v1804 = vsel %vm1400, %v1792, %v1803
    %v1806 = vshrl.u32 %v1706, 16
    %v1808 = vrot.slane %v1806, 7
    %v1809 = vshll.u32 %v1706, 16
    %v1811 = vor.u32 %v1808, %v1809
    %v1812 = vsel %vm1400, %v1800, %v1811
    %v1814 = vshrl.u32 %v1707, 16
    %v1816 = vrot.slane %v1814, 7
    %v1817 = vshll.u32 %v1707, 16
    %v1819 = vor.u32 %v1816, %v1817
    %v1820 = vsel %vm1400, %v1808, %v1819
    %v1822 = vshrl.u32 %v1708, 16
    %v1824 = vrot.slane %v1822, 7
    %v1825 = vshll.u32 %v1708, 16
    %v1827 = vor.u32 %v1824, %v1825
    %v1828 = vsel %vm1400, %v1816, %v1827
    %v1830 = vshrl.u32 %v1709, 16
    %v1832 = vrot.slane %v1830, 7
    %v1833 = vshll.u32 %v1709, 16
    %v1835 = vor.u32 %v1832, %v1833
    %v1836 = vsel %vm1400, %v1824, %v1835
    %vm1837 = vcmp.ne.s16.totalorder %v1716, 0
    %vm1838 = vcmp.ne.s16.totalorder %v1724, 0
    %vm1839 = vcmp.ne.s16.totalorder %v1732, 0
    %vm1840 = vcmp.ne.s16.totalorder %v1740, 0
    %vm1841 = vcmp.ne.s16.totalorder %v1748, 0
    %vm1842 = vcmp.ne.s16.totalorder %v1756, 0
    %vm1843 = vcmp.ne.s16.totalorder %v1764, 0
    %vm1844 = vcmp.ne.s16.totalorder %v1772, 0
    %vm1845 = vcmp.ne.s16.totalorder %v1780, 0
    %vm1846 = vcmp.ne.s16.totalorder %v1788, 0
    %vm1847 = vcmp.ne.s16.totalorder %v1796, 0
    %vm1848 = vcmp.ne.s16.totalorder %v1804, 0
    %vm1849 = vcmp.ne.s16.totalorder %v1812, 0
    %vm1850 = vcmp.ne.s16.totalorder %v1820, 0
    %vm1851 = vcmp.ne.s16.totalorder %v1828, 0
    %vm1852 = vcmp.ne.s16.totalorder %v1836, 0
    %vm1853 = vcmp.ne.s16.totalorder %v1832, 0
    %v1854 = vsel %vm1837, %v1109, 0
    %v1855 = vsel %vm1838, %v1110, 0
    %v1856 = vsel %vm1839, %v1111, 0
    %v1857 = vsel %vm1840, %v1112, 0
    %v1858 = vsel %vm1841, %v1113, 0
    %v1859 = vsel %vm1842, %v1114, 0
    %v1860 = vsel %vm1843, %v1115, 0
    %v1861 = vsel %vm1844, %v1116, 0
    %v1862 = vsel %vm1845, %v1117, 0
    %v1863 = vsel %vm1846, %v1118, 0
    %v1864 = vsel %vm1847, %v1119, 0
    %v1865 = vsel %vm1848, %v1120, 0
    %v1866 = vsel %vm1849, %v1121, 0
    %v1867 = vsel %vm1850, %v1122, 0
    %v1868 = vsel %vm1851, %v1123, 0
    %v1869 = vsel %vm1852, %v1124, 0
    %v1870 = vsel %vm1853, %v1125, 0
    %v1872 = vshrl.u32 %v1854, 16
    %v1874 = vshll.u32 %v1854, 16
    %v1876 = vrot.slane %v1874, 1
    %v1877 = vor.u32 %v1872, %v1876
    %v1879 = vshll.u32 %v1855, 16
    %v1881 = vrot.slane %v1879, 1
    %v1882 = vsel %vm1238, %v1877, %v1881
    %v1883 = vshrl.u32 %v1855, 16
    %v1885 = vor.u32 %v1883, %v1881
    %v1887 = vshll.u32 %v1856, 16
    %v1889 = vrot.slane %v1887, 1
    %v1890 = vsel %vm1238, %v1885, %v1889
    %v1891 = vshrl.u32 %v1856, 16
    %v1893 = vor.u32 %v1891, %v1889
    %v1895 = vshll.u32 %v1857, 16
    %v1897 = vrot.slane %v1895, 1
    %v1898 = vsel %vm1238, %v1893, %v1897
    %v1899 = vshrl.u32 %v1857, 16
    %v1901 = vor.u32 %v1899, %v1897
    %v1903 = vshll.u32 %v1858, 16
    %v1905 = vrot.slane %v1903, 1
    %v1906 = vsel %vm1238, %v1901, %v1905
    %v1907 = vshrl.u32 %v1858, 16
    %v1909 = vor.u32 %v1907, %v1905
    %v1911 = vshll.u32 %v1859, 16
    %v1913 = vrot.slane %v1911, 1
    %v1914 = vsel %vm1238, %v1909, %v1913
    %v1915 = vshrl.u32 %v1859, 16
    %v1917 = vor.u32 %v1915, %v1913
    %v1919 = vshll.u32 %v1860, 16
    %v1921 = vrot.slane %v1919, 1
    %v1922 = vsel %vm1238, %v1917, %v1921
    %v1923 = vshrl.u32 %v1860, 16
    %v1925 = vor.u32 %v1923, %v1921
    %v1927 = vshll.u32 %v1861, 16
    %v1929 = vrot.slane %v1927, 1
    %v1930 = vsel %vm1238, %v1925, %v1929
    %v1931 = vshrl.u32 %v1861, 16
    %v1933 = vor.u32 %v1931, %v1929
    %v1935 = vshll.u32 %v1862, 16
    %v1937 = vrot.slane %v1935, 1
    %v1938 = vsel %vm1238, %v1933, %v1937
    %v1939 = vshrl.u32 %v1862, 16
    %v1941 = vor.u32 %v1939, %v1937
    %v1943 = vshll.u32 %v1863, 16
    %v1945 = vrot.slane %v1943, 1
    %v1946 = vsel %vm1238, %v1941, %v1945
    %v1947 = vshrl.u32 %v1863, 16
    %v1949 = vor.u32 %v1947, %v1945
    %v1951 = vshll.u32 %v1864, 16
    %v1953 = vrot.slane %v1951, 1
    %v1954 = vsel %vm1238, %v1949, %v1953
    %v1955 = vshrl.u32 %v1864, 16
    %v1957 = vor.u32 %v1955, %v1953
    %v1959 = vshll.u32 %v1865, 16
    %v1961 = vrot.slane %v1959, 1
    %v1962 = vsel %vm1238, %v1957, %v1961
    %v1963 = vshrl.u32 %v1865, 16
    %v1965 = vor.u32 %v1963, %v1961
    %v1967 = vshll.u32 %v1866, 16
    %v1969 = vrot.slane %v1967, 1
    %v1970 = vsel %vm1238, %v1965, %v1969
    %v1971 = vshrl.u32 %v1866, 16
    %v1973 = vor.u32 %v1971, %v1969
    %v1975 = vshll.u32 %v1867, 16
    %v1977 = vrot.slane %v1975, 1
    %v1978 = vsel %vm1238, %v1973, %v1977
    %v1979 = vshrl.u32 %v1867, 16
    %v1981 = vor.u32 %v1979, %v1977
    %v1983 = vshll.u32 %v1868, 16
    %v1985 = vrot.slane %v1983, 1
    %v1986 = vsel %vm1238, %v1981, %v1985
    %v1987 = vshrl.u32 %v1868, 16
    %v1989 = vor.u32 %v1987, %v1985
    %v1991 = vshll.u32 %v1869, 16
    %v1993 = vrot.slane %v1991, 1
    %v1994 = vsel %vm1238, %v1989, %v1993
    %v1995 = vshrl.u32 %v1869, 16
    %v1997 = vor.u32 %v1995, %v1993
    %v1999 = vshll.u32 %v1870, 16
    %v2001 = vrot.slane %v1999, 1
    %v2002 = vsel %vm1238, %v1997, %v2001
    %2003 = vrot.lane.b32.xlu0 %v1882, 8
    %v2004 = vpop.permute.xlu0 %2003
    %2005 = vrot.lane.b32.xlu0 %v1890, 8
    %v2006 = vpop.permute.xlu0 %2005
    %2007 = vrot.lane.b32.xlu0 %v1898, 8
    %v2008 = vpop.permute.xlu0 %2007
    %2009 = vrot.lane.b32.xlu0 %v1906, 8
    %v2010 = vpop.permute.xlu0 %2009
    %2011 = vrot.lane.b32.xlu0 %v1914, 8
    %v2012 = vpop.permute.xlu0 %2011
    %2013 = vrot.lane.b32.xlu0 %v1922, 8
    %v2014 = vpop.permute.xlu0 %2013
    %2015 = vrot.lane.b32.xlu0 %v1930, 8
    %v2016 = vpop.permute.xlu0 %2015
    %2017 = vrot.lane.b32.xlu0 %v1938, 8
    %v2018 = vpop.permute.xlu0 %2017
    %2019 = vrot.lane.b32.xlu0 %v1946, 8
    %v2020 = vpop.permute.xlu0 %2019
    %2021 = vrot.lane.b32.xlu0 %v1954, 8
    %v2022 = vpop.permute.xlu0 %2021
    %2023 = vrot.lane.b32.xlu0 %v1962, 8
    %v2024 = vpop.permute.xlu0 %2023
    %2025 = vrot.lane.b32.xlu0 %v1970, 8
    %v2026 = vpop.permute.xlu0 %2025
    %2027 = vrot.lane.b32.xlu0 %v1978, 8
    %v2028 = vpop.permute.xlu0 %2027
    %2029 = vrot.lane.b32.xlu0 %v1986, 8
    %v2030 = vpop.permute.xlu0 %2029
    %2031 = vrot.lane.b32.xlu0 %v1994, 8
    %v2032 = vpop.permute.xlu0 %2031
    %2033 = vrot.lane.b32.xlu0 %v2002, 8
    %v2034 = vpop.permute.xlu0 %2033
    %vm2051 = vcmask 195712
    %2052 = vst.msk [vmem:[#allocation2 + $0x8] sm:$0xff] %vm2051, %v2004
    %2053 = vst.msk [vmem:[#allocation2 + $0x10] sm:$0xff] %vm2051, %v2006
    %2054 = vst.msk [vmem:[#allocation2 + $0x18] sm:$0xff] %vm2051, %v2008
    %2055 = vst.msk [vmem:[#allocation2 + $0x20] sm:$0xff] %vm2051, %v2010
    %2056 = vst.msk [vmem:[#allocation2 + $0x28] sm:$0xff] %vm2051, %v2012
    %2057 = vst.msk [vmem:[#allocation2 + $0x30] sm:$0xff] %vm2051, %v2014
    %2058 = vst.msk [vmem:[#allocation2 + $0x38] sm:$0xff] %vm2051, %v2016
    %2059 = vst.msk [vmem:[#allocation2 + $0x40] sm:$0xff] %vm2051, %v2018
    %2060 = vst.msk [vmem:[#allocation2 + $0x48] sm:$0xff] %vm2051, %v2020
    %2061 = vst.msk [vmem:[#allocation2 + $0x50] sm:$0xff] %vm2051, %v2022
    %2062 = vst.msk [vmem:[#allocation2 + $0x58] sm:$0xff] %vm2051, %v2024
    %2063 = vst.msk [vmem:[#allocation2 + $0x60] sm:$0xff] %vm2051, %v2026
    %2064 = vst.msk [vmem:[#allocation2 + $0x68] sm:$0xff] %vm2051, %v2028
    %2065 = vst.msk [vmem:[#allocation2 + $0x70] sm:$0xff] %vm2051, %v2030
    %2066 = vst.msk [vmem:[#allocation2 + $0x78] sm:$0xff] %vm2051, %v2032
    %2067 = vst.msk [vmem:[#allocation2 + $0x80] sm:$0xff] %vm2051, %v2034
    %v2068 = vld [vmem:[#allocation2] sm:$0xff]
    %v2069 = vld [vmem:[#allocation2 + $0x8] sm:$0xff]
    %v2070 = vld [vmem:[#allocation2 + $0x10] sm:$0xff]
    %v2071 = vld [vmem:[#allocation2 + $0x18] sm:$0xff]
    %v2072 = vld [vmem:[#allocation2 + $0x20] sm:$0xff]
    %v2073 = vld [vmem:[#allocation2 + $0x28] sm:$0xff]
    %v2074 = vld [vmem:[#allocation2 + $0x30] sm:$0xff]
    %v2075 = vld [vmem:[#allocation2 + $0x38] sm:$0xff]
    %v2076 = vld [vmem:[#allocation2 + $0x40] sm:$0xff]
    %v2077 = vld [vmem:[#allocation2 + $0x48] sm:$0xff]
    %v2078 = vld [vmem:[#allocation2 + $0x50] sm:$0xff]
    %v2079 = vld [vmem:[#allocation2 + $0x58] sm:$0xff]
    %v2080 = vld [vmem:[#allocation2 + $0x60] sm:$0xff]
    %v2081 = vld [vmem:[#allocation2 + $0x68] sm:$0xff]
    %v2082 = vld [vmem:[#allocation2 + $0x70] sm:$0xff]
    %v2083 = vld [vmem:[#allocation2 + $0x78] sm:$0xff]
    %v2084 = vld [vmem:[%s3] sm:$0xf]
    %v2085 = vld [vmem:[%s3 + $0x4] sm:$0xf]
    %v2086 = vld [vmem:[%s3 + $0x8] sm:$0xf]
    %v2087 = vld [vmem:[#allocation2 + $0x80] sm:$0xff]
    %s2088 = scalar_lea.vmem %s3, 12
    %v2089 = vld [vmem:[%s2088] sm:$0xf]
    %v2090 = vld [vmem:[%s2088 + $0x4] sm:$0xf]
    %v2091 = vld [vmem:[%s2088 + $0x8] sm:$0xf]
    %v2095 = vunpack.c.l.b16 %v2089
    %v2096 = vunpack.c.l.b16 %v2090
    %v2097 = vunpack.c.l.b16 %v2091
    %v2098 = vpack.c.b16 %v2096, %v2095
    %v2099 = vpack.c.b16 %v2097, %v2097
    %v2102 = vsel %vm639, %v2069, 0
    %v2105 = vsel %vm639, %v2070, 0
    %v2108 = vsel %vm639, %v2071, 0
    %v2111 = vsel %vm639, %v2072, 0
    %v2114 = vsel %vm639, %v2073, 0
    %v2117 = vsel %vm639, %v2074, 0
    %v2120 = vsel %vm639, %v2075, 0
    %v2123 = vsel %vm639, %v2076, 0
    %v2126 = vsel %vm639, %v2077, 0
    %v2129 = vsel %vm639, %v2078, 0
    %v2132 = vsel %vm639, %v2079, 0
    %v2135 = vsel %vm639, %v2080, 0
    %v2138 = vsel %vm639, %v2081, 0
    %v2141 = vsel %vm639, %v2082, 0
    %v2144 = vsel %vm639, %v2083, 0
    %v2147 = vsel %vm639, %v2087, 0
    %vm2149 = vcmask 1043456
    %v2151 = vsel %vm2149, %v2099, 0
    %2153 = vmatprep.subr.bf16.mxu0 0
    %2154 = vmatpush1.bf16.msra.mxu0 %v2098
    %2155 = vmatprep.subr.bf16.mxu0 0
    %2156 = vmatpush1.bf16.msra.mxu0 %v2151
    %2157 = vmatprep.subr.bf16.mxu0 0
    %2158 = vmatpush1.bf16.msra.mxu0 0
    %2159 = vmatprep.subr.bf16.mxu0 0
    %2160 = vmatpush1.bf16.msra.mxu0 0
    %2161 = vmatprep.subr.bf16.mxu0 0
    %2162 = vmatpush1.bf16.msra.mxu0 0
    %2163 = vmatprep.subr.bf16.mxu0 0
    %2164 = vmatpush1.bf16.msra.mxu0 0
    %2165 = vmatprep.subr.bf16.mxu0 0
    %2166 = vmatpush1.bf16.msra.mxu0 0
    %2167 = vmatprep.subr.bf16.mxu0 0
    %2168 = vmatpush1.bf16.msra.mxu0 0
    %2169 = vmatprep.subr.bf16.mxu0 0
    %2170 = vmatpush1.bf16.msra.mxu0 0
    %2171 = vmatprep.subr.bf16.mxu0 0
    %2172 = vmatpush1.bf16.msra.mxu0 0
    %2173 = vmatprep.subr.bf16.mxu0 0
    %2174 = vmatpush1.bf16.msra.mxu0 0
    %2175 = vmatprep.subr.bf16.mxu0 0
    %2176 = vmatpush1.bf16.msra.mxu0 0
    %2177 = vmatprep.subr.bf16.mxu0 0
    %2178 = vmatpush1.bf16.msra.mxu0 0
    %2179 = vmatprep.subr.bf16.mxu0 0
    %2180 = vmatpush1.bf16.msra.mxu0 0
    %2181 = vmatprep.subr.bf16.mxu0 0
    %2182 = vmatpush1.bf16.msra.mxu0 0
    %2183 = vmatprep.subr.bf16.mxu0 0
    %2184 = vmatpush1.bf16.msra.mxu0 0
    %2185 = vmatprep.mubr.bf16.mxu0 0
    %2186 = vmatmul.mubr.bf16.gmra.mrb[0].mxu0 %v2102
    %v2187 = vpop.f32.mrb[0].mxu0
    %v2188 = vadd.f32 0.0, %v2187
    %v2189 = vpop.f32.mrb[0].mxu0
    %v2190 = vpop.f32.mrb[0].mxu0
    %v2191 = vadd.f32 0.0, %v2190
    %v2192 = vpop.f32.mrb[0].mxu0
    %2193 = vmatprep.mubr.bf16.mxu0 0
    %2194 = vmatmul.mubr.bf16.gmra.mrb[0].mxu0 %v2105
    %v2195 = vpop.f32.mrb[0].mxu0
    %v2196 = vadd.f32 0.0, %v2195
    %v2197 = vpop.f32.mrb[0].mxu0
    %v2198 = vpop.f32.mrb[0].mxu0
    %v2199 = vadd.f32 0.0, %v2198
    %v2200 = vpop.f32.mrb[0].mxu0
    %2201 = vmatprep.mubr.bf16.mxu0 0
    %2202 = vmatmul.mubr.bf16.gmra.mrb[0].mxu0 %v2108
    %v2203 = vpop.f32.mrb[0].mxu0
    %v2204 = vadd.f32 0.0, %v2203
    %v2205 = vpop.f32.mrb[0].mxu0
    %v2206 = vpop.f32.mrb[0].mxu0
    %v2207 = vadd.f32 0.0, %v2206
    %v2208 = vpop.f32.mrb[0].mxu0
    %2209 = vmatprep.mubr.bf16.mxu0 0
    %2210 = vmatmul.mubr.bf16.gmra.mrb[0].mxu0 %v2111
    %v2211 = vpop.f32.mrb[0].mxu0
    %v2212 = vadd.f32 0.0, %v2211
    %v2213 = vpop.f32.mrb[0].mxu0
    %v2214 = vpop.f32.mrb[0].mxu0
    %v2215 = vadd.f32 0.0, %v2214
    %v2216 = vpop.f32.mrb[0].mxu0
    %2217 = vmatprep.mubr.bf16.mxu0 0
    %2218 = vmatmul.mubr.bf16.gmra.mrb[0].mxu0 %v2114
    %v2219 = vpop.f32.mrb[0].mxu0
    %v2220 = vadd.f32 0.0, %v2219
    %v2221 = vpop.f32.mrb[0].mxu0
    %v2222 = vpop.f32.mrb[0].mxu0
    %v2223 = vadd.f32 0.0, %v2222
    %v2224 = vpop.f32.mrb[0].mxu0
    %2225 = vmatprep.mubr.bf16.mxu0 0
    %2226 = vmatmul.mubr.bf16.gmra.mrb[0].mxu0 %v2117
    %v2227 = vpop.f32.mrb[0].mxu0
    %v2228 = vadd.f32 0.0, %v2227
    %v2229 = vpop.f32.mrb[0].mxu0
    %v2230 = vpop.f32.mrb[0].mxu0
    %v2231 = vadd.f32 0.0, %v2230
    %v2232 = vpop.f32.mrb[0].mxu0
    %2233 = vmatprep.mubr.bf16.mxu0 0
    %2234 = vmatmul.mubr.bf16.gmra.mrb[0].mxu0 %v2120
    %v2235 = vpop.f32.mrb[0].mxu0
    %v2236 = vadd.f32 0.0, %v2235
    %v2237 = vpop.f32.mrb[0].mxu0
    %v2238 = vpop.f32.mrb[0].mxu0
    %v2239 = vadd.f32 0.0, %v2238
    %v2240 = vpop.f32.mrb[0].mxu0
    %2241 = vmatprep.mubr.bf16.mxu0 0
    %2242 = vmatmul.mubr.bf16.gmra.mrb[0].mxu0 %v2123
    %v2243 = vpop.f32.mrb[0].mxu0
    %v2244 = vadd.f32 0.0, %v2243
    %v2245 = vpop.f32.mrb[0].mxu0
    %v2246 = vpop.f32.mrb[0].mxu0
    %v2247 = vadd.f32 0.0, %v2246
    %v2248 = vpop.f32.mrb[0].mxu0
    %2249 = vmatprep.mubr.bf16.mxu0 0
    %2250 = vmatmul.mubr.bf16.gmra.mrb[0].mxu0 %v2126
    %v2251 = vpop.f32.mrb[0].mxu0
    %v2252 = vadd.f32 0.0, %v2251
    %v2253 = vpop.f32.mrb[0].mxu0
    %v2254 = vpop.f32.mrb[0].mxu0
    %v2255 = vadd.f32 0.0, %v2254
    %v2256 = vpop.f32.mrb[0].mxu0
    %2257 = vmatprep.mubr.bf16.mxu0 0
    %2258 = vmatmul.mubr.bf16.gmra.mrb[0].mxu0 %v2129
    %v2259 = vpop.f32.mrb[0].mxu0
    %v2260 = vadd.f32 0.0, %v2259
    %v2261 = vpop.f32.mrb[0].mxu0
    %v2262 = vpop.f32.mrb[0].mxu0
    %v2263 = vadd.f32 0.0, %v2262
    %v2264 = vpop.f32.mrb[0].mxu0
    %2265 = vmatprep.mubr.bf16.mxu0 0
    %2266 = vmatmul.mubr.bf16.gmra.mrb[0].mxu0 %v2132
    %v2267 = vpop.f32.mrb[0].mxu0
    %v2268 = vadd.f32 0.0, %v2267
    %v2269 = vpop.f32.mrb[0].mxu0
    %v2270 = vpop.f32.mrb[0].mxu0
    %v2271 = vadd.f32 0.0, %v2270
    %v2272 = vpop.f32.mrb[0].mxu0
    %2273 = vmatprep.mubr.bf16.mxu0 0
    %2274 = vmatmul.mubr.bf16.gmra.mrb[0].mxu0 %v2135
    %v2275 = vpop.f32.mrb[0].mxu0
    %v2276 = vadd.f32 0.0, %v2275
    %v2277 = vpop.f32.mrb[0].mxu0
    %v2278 = vpop.f32.mrb[0].mxu0
    %v2279 = vadd.f32 0.0, %v2278
    %v2280 = vpop.f32.mrb[0].mxu0
    %2281 = vmatprep.mubr.bf16.mxu0 0
    %2282 = vmatmul.mubr.bf16.gmra.mrb[0].mxu0 %v2138
    %v2283 = vpop.f32.mrb[0].mxu0
    %v2284 = vadd.f32 0.0, %v2283
    %v2285 = vpop.f32.mrb[0].mxu0
    %v2286 = vpop.f32.mrb[0].mxu0
    %v2287 = vadd.f32 0.0, %v2286
    %v2288 = vpop.f32.mrb[0].mxu0
    %2289 = vmatprep.mubr.bf16.mxu0 0
    %2290 = vmatmul.mubr.bf16.gmra.mrb[0].mxu0 %v2141
    %v2291 = vpop.f32.mrb[0].mxu0
    %v2292 = vadd.f32 0.0, %v2291
    %v2293 = vpop.f32.mrb[0].mxu0
    %v2294 = vpop.f32.mrb[0].mxu0
    %v2295 = vadd.f32 0.0, %v2294
    %v2296 = vpop.f32.mrb[0].mxu0
    %2297 = vmatprep.mubr.bf16.mxu0 0
    %2298 = vmatmul.mubr.bf16.gmra.mrb[0].mxu0 %v2144
    %v2299 = vpop.f32.mrb[0].mxu0
    %v2300 = vadd.f32 0.0, %v2299
    %v2301 = vpop.f32.mrb[0].mxu0
    %v2302 = vpop.f32.mrb[0].mxu0
    %v2303 = vadd.f32 0.0, %v2302
    %v2304 = vpop.f32.mrb[0].mxu0
    %2305 = vmatprep.mubr.bf16.mxu0 0
    %2306 = vmatmul.mubr.bf16.gmra.mrb[0].mxu0 %v2147
    %v2307 = vpop.f32.mrb[0].mxu0
    %v2308 = vadd.f32 0.0, %v2307
    %v2309 = vpop.f32.mrb[0].mxu0
    %v2310 = vpop.f32.mrb[0].mxu0
    %v2311 = vadd.f32 0.0, %v2310
    %v2312 = vpop.f32.mrb[0].mxu0
    %2313 = vdwg.mxu0
    %v2317 = vunpack.c.l.b16 %v2084
    %v2318 = vunpack.c.l.b16 %v2085
    %v2319 = vunpack.c.l.b16 %v2086
    %v2320 = vpack.c.b16 %v2318, %v2317
    %v2321 = vpack.c.b16 %v2319, %v2319
    %v2324 = vsel %vm639, %v2068, 0
    %v2327 = vsel %vm2149, %v2321, 0
    %2329 = vmatprep.subr.bf16.mxu0 0
    %2330 = vmatpush1.bf16.msra.mxu0 %v2320
    %2331 = vmatprep.subr.bf16.mxu0 0
    %2332 = vmatpush1.bf16.msra.mxu0 %v2327
    %2333 = vmatprep.subr.bf16.mxu0 0
    %2334 = vmatpush1.bf16.msra.mxu0 0
    %2335 = vmatprep.subr.bf16.mxu0 0
    %2336 = vmatpush1.bf16.msra.mxu0 0
    %2337 = vmatprep.subr.bf16.mxu0 0
    %2338 = vmatpush1.bf16.msra.mxu0 0
    %2339 = vmatprep.subr.bf16.mxu0 0
    %2340 = vmatpush1.bf16.msra.mxu0 0
    %2341 = vmatprep.subr.bf16.mxu0 0
    %2342 = vmatpush1.bf16.msra.mxu0 0
    %2343 = vmatprep.subr.bf16.mxu0 0
    %2344 = vmatpush1.bf16.msra.mxu0 0
    %2345 = vmatprep.subr.bf16.mxu0 0
    %2346 = vmatpush1.bf16.msra.mxu0 0
    %2347 = vmatprep.subr.bf16.mxu0 0
    %2348 = vmatpush1.bf16.msra.mxu0 0
    %2349 = vmatprep.subr.bf16.mxu0 0
    %2350 = vmatpush1.bf16.msra.mxu0 0
    %2351 = vmatprep.subr.bf16.mxu0 0
    %2352 = vmatpush1.bf16.msra.mxu0 0
    %2353 = vmatprep.subr.bf16.mxu0 0
    %2354 = vmatpush1.bf16.msra.mxu0 0
    %2355 = vmatprep.subr.bf16.mxu0 0
    %2356 = vmatpush1.bf16.msra.mxu0 0
    %2357 = vmatprep.subr.bf16.mxu0 0
    %2358 = vmatpush1.bf16.msra.mxu0 0
    %2359 = vmatprep.subr.bf16.mxu0 0
    %2360 = vmatpush1.bf16.msra.mxu0 0
    %2361 = vmatprep.mubr.bf16.mxu0 0
    %2362 = vmatmul.mubr.bf16.gmra.mrb[0].mxu0 %v2324
    %v2363 = vpop.f32.mrb[0].mxu0
    %v2364 = vadd.f32 %v2188, %v2363
    %v2365 = vpop.f32.mrb[0].mxu0
    %v2366 = vpop.f32.mrb[0].mxu0
    %v2367 = vadd.f32 %v2191, %v2366
    %v2368 = vpop.f32.mrb[0].mxu0
    %2369 = vmatprep.mubr.bf16.mxu0 0
    %2370 = vmatmul.mubr.bf16.gmra.mrb[0].mxu0 %v2102
    %v2371 = vpop.f32.mrb[0].mxu0
    %v2372 = vadd.f32 %v2196, %v2371
    %v2373 = vpop.f32.mrb[0].mxu0
    %v2374 = vpop.f32.mrb[0].mxu0
    %v2375 = vadd.f32 %v2199, %v2374
    %v2376 = vpop.f32.mrb[0].mxu0
    %2377 = vmatprep.mubr.bf16.mxu0 0
    %2378 = vmatmul.mubr.bf16.gmra.mrb[0].mxu0 %v2105
    %v2379 = vpop.f32.mrb[0].mxu0
    %v2380 = vadd.f32 %v2204, %v2379
    %v2381 = vpop.f32.mrb[0].mxu0
    %v2382 = vpop.f32.mrb[0].mxu0
    %v2383 = vadd.f32 %v2207, %v2382
    %v2384 = vpop.f32.mrb[0].mxu0
    %2385 = vmatprep.mubr.bf16.mxu0 0
    %2386 = vmatmul.mubr.bf16.gmra.mrb[0].mxu0 %v2108
    %v2387 = vpop.f32.mrb[0].mxu0
    %v2388 = vadd.f32 %v2212, %v2387
    %v2389 = vpop.f32.mrb[0].mxu0
    %v2390 = vpop.f32.mrb[0].mxu0
    %v2391 = vadd.f32 %v2215, %v2390
    %v2392 = vpop.f32.mrb[0].mxu0
    %2393 = vmatprep.mubr.bf16.mxu0 0
    %2394 = vmatmul.mubr.bf16.gmra.mrb[0].mxu0 %v2111
    %v2395 = vpop.f32.mrb[0].mxu0
    %v2396 = vadd.f32 %v2220, %v2395
    %v2397 = vpop.f32.mrb[0].mxu0
    %v2398 = vpop.f32.mrb[0].mxu0
    %v2399 = vadd.f32 %v2223, %v2398
    %v2400 = vpop.f32.mrb[0].mxu0
    %2401 = vmatprep.mubr.bf16.mxu0 0
    %2402 = vmatmul.mubr.bf16.gmra.mrb[0].mxu0 %v2114
    %v2403 = vpop.f32.mrb[0].mxu0
    %v2404 = vadd.f32 %v2228, %v2403
    %v2405 = vpop.f32.mrb[0].mxu0
    %v2406 = vpop.f32.mrb[0].mxu0
    %v2407 = vadd.f32 %v2231, %v2406
    %v2408 = vpop.f32.mrb[0].mxu0
    %2409 = vmatprep.mubr.bf16.mxu0 0
    %2410 = vmatmul.mubr.bf16.gmra.mrb[0].mxu0 %v2117
    %v2411 = vpop.f32.mrb[0].mxu0
    %v2412 = vadd.f32 %v2236, %v2411
    %v2413 = vpop.f32.mrb[0].mxu0
    %v2414 = vpop.f32.mrb[0].mxu0
    %v2415 = vadd.f32 %v2239, %v2414
    %v2416 = vpop.f32.mrb[0].mxu0
    %2417 = vmatprep.mubr.bf16.mxu0 0
    %2418 = vmatmul.mubr.bf16.gmra.mrb[0].mxu0 %v2120
    %v2419 = vpop.f32.mrb[0].mxu0
    %v2420 = vadd.f32 %v2244, %v2419
    %v2421 = vpop.f32.mrb[0].mxu0
    %v2422 = vpop.f32.mrb[0].mxu0
    %v2423 = vadd.f32 %v2247, %v2422
    %v2424 = vpop.f32.mrb[0].mxu0
    %2425 = vmatprep.mubr.bf16.mxu0 0
    %2426 = vmatmul.mubr.bf16.gmra.mrb[0].mxu0 %v2123
    %v2427 = vpop.f32.mrb[0].mxu0
    %v2428 = vadd.f32 %v2252, %v2427
    %v2429 = vpop.f32.mrb[0].mxu0
    %v2430 = vpop.f32.mrb[0].mxu0
    %v2431 = vadd.f32 %v2255, %v2430
    %v2432 = vpop.f32.mrb[0].mxu0
    %2433 = vmatprep.mubr.bf16.mxu0 0
    %2434 = vmatmul.mubr.bf16.gmra.mrb[0].mxu0 %v2126
    %v2435 = vpop.f32.mrb[0].mxu0
    %v2436 = vadd.f32 %v2260, %v2435
    %v2437 = vpop.f32.mrb[0].mxu0
    %v2438 = vpop.f32.mrb[0].mxu0
    %v2439 = vadd.f32 %v2263, %v2438
    %v2440 = vpop.f32.mrb[0].mxu0
    %2441 = vmatprep.mubr.bf16.mxu0 0
    %2442 = vmatmul.mubr.bf16.gmra.mrb[0].mxu0 %v2129
    %v2443 = vpop.f32.mrb[0].mxu0
    %v2444 = vadd.f32 %v2268, %v2443
    %v2445 = vpop.f32.mrb[0].mxu0
    %v2446 = vpop.f32.mrb[0].mxu0
    %v2447 = vadd.f32 %v2271, %v2446
    %v2448 = vpop.f32.mrb[0].mxu0
    %2449 = vmatprep.mubr.bf16.mxu0 0
    %2450 = vmatmul.mubr.bf16.gmra.mrb[0].mxu0 %v2132
    %v2451 = vpop.f32.mrb[0].mxu0
    %v2452 = vadd.f32 %v2276, %v2451
    %v2453 = vpop.f32.mrb[0].mxu0
    %v2454 = vpop.f32.mrb[0].mxu0
    %v2455 = vadd.f32 %v2279, %v2454
    %v2456 = vpop.f32.mrb[0].mxu0
    %2457 = vmatprep.mubr.bf16.mxu0 0
    %2458 = vmatmul.mubr.bf16.gmra.mrb[0].mxu0 %v2135
    %v2459 = vpop.f32.mrb[0].mxu0
    %v2460 = vadd.f32 %v2284, %v2459
    %v2461 = vpop.f32.mrb[0].mxu0
    %v2462 = vpop.f32.mrb[0].mxu0
    %v2463 = vadd.f32 %v2287, %v2462
    %v2464 = vpop.f32.mrb[0].mxu0
    %2465 = vmatprep.mubr.bf16.mxu0 0
    %2466 = vmatmul.mubr.bf16.gmra.mrb[0].mxu0 %v2138
    %v2467 = vpop.f32.mrb[0].mxu0
    %v2468 = vadd.f32 %v2292, %v2467
    %v2469 = vpop.f32.mrb[0].mxu0
    %v2470 = vpop.f32.mrb[0].mxu0
    %v2471 = vadd.f32 %v2295, %v2470
    %v2472 = vpop.f32.mrb[0].mxu0
    %2473 = vmatprep.mubr.bf16.mxu0 0
    %2474 = vmatmul.mubr.bf16.gmra.mrb[0].mxu0 %v2141
    %v2475 = vpop.f32.mrb[0].mxu0
    %v2476 = vadd.f32 %v2300, %v2475
    %v2477 = vpop.f32.mrb[0].mxu0
    %v2478 = vpop.f32.mrb[0].mxu0
    %v2479 = vadd.f32 %v2303, %v2478
    %v2480 = vpop.f32.mrb[0].mxu0
    %2481 = vmatprep.mubr.bf16.mxu0 0
    %2482 = vmatmul.mubr.bf16.gmra.mrb[0].mxu0 %v2144
    %v2483 = vpop.f32.mrb[0].mxu0
    %v2484 = vadd.f32 %v2308, %v2483
    %v2485 = vpop.f32.mrb[0].mxu0
    %v2486 = vpop.f32.mrb[0].mxu0
    %v2487 = vadd.f32 %v2311, %v2486
    %v2488 = vpop.f32.mrb[0].mxu0
    %2489 = vdwg.mxu0
    %v2490 = vld [vmem:[#allocation2 + $0x10] sm:$0xff]
    %v2491 = vld [vmem:[#allocation2 + $0x18] sm:$0xff]
    %v2492 = vld [vmem:[#allocation2 + $0x20] sm:$0xff]
    %v2493 = vld [vmem:[#allocation2 + $0x28] sm:$0xff]
    %v2494 = vld [vmem:[#allocation2 + $0x30] sm:$0xff]
    %v2495 = vld [vmem:[#allocation2 + $0x38] sm:$0xff]
    %v2496 = vld [vmem:[#allocation2 + $0x40] sm:$0xff]
    %v2497 = vld [vmem:[#allocation2 + $0x48] sm:$0xff]
    %v2498 = vld [vmem:[#allocation2 + $0x50] sm:$0xff]
    %v2499 = vld [vmem:[#allocation2 + $0x58] sm:$0xff]
    %v2500 = vld [vmem:[#allocation2 + $0x60] sm:$0xff]
    %v2501 = vld [vmem:[#allocation2 + $0x68] sm:$0xff]
    %v2502 = vld [vmem:[#allocation2 + $0x70] sm:$0xff]
    %v2503 = vld [vmem:[#allocation2 + $0x78] sm:$0xff]
    %v2504 = vld [vmem:[#allocation2 + $0x80] sm:$0xff]
    %v2505 = vld [vmem:[#allocation2 + $0x88] sm:$0xff]
    %s2506 = scalar_lea.vmem %s3, 24
    %v2507 = vld [vmem:[%s2506] sm:$0xf]
    %v2508 = vld [vmem:[%s2506 + $0x4] sm:$0xf]
    %v2509 = vld [vmem:[%s2506 + $0x8] sm:$0xf]
    %v2513 = vunpack.c.l.b16 %v2507
    %v2514 = vunpack.c.l.b16 %v2508
    %v2515 = vunpack.c.l.b16 %v2509
    %v2516 = vpack.c.b16 %v2514, %v2513
    %v2517 = vpack.c.b16 %v2515, %v2515
    %v2520 = vsel %vm639, %v2490, 0
    %v2523 = vsel %vm639, %v2491, 0
    %v2526 = vsel %vm639, %v2492, 0
    %v2529 = vsel %vm639, %v2493, 0
    %v2532 = vsel %vm639, %v2494, 0
    %v2535 = vsel %vm639, %v2495, 0
    %v2538 = vsel %vm639, %v2496, 0
    %v2541 = vsel %vm639, %v2497, 0
    %v2544 = vsel %vm639, %v2498, 0
    %v2547 = vsel %vm639, %v2499, 0
    %v2550 = vsel %vm639, %v2500, 0
    %v2553 = vsel %vm639, %v2501, 0
    %v2556 = vsel %vm639, %v2502, 0
    %v2559 = vsel %vm639, %v2503, 0
    %v2562 = vsel %vm639, %v2504, 0
    %v2565 = vsel %vm639, %v2505, 0
    %v2568 = vsel %vm2149, %v2517, 0
    %2570 = vmatprep.subr.bf16.mxu0 0
    %2571 = vmatpush1.bf16.msra.mxu0 %v2516
    %2572 = vmatprep.subr.bf16.mxu0 0
    %2573 = vmatpush1.bf16.msra.mxu0 %v2568
    %2574 = vmatprep.subr.bf16.mxu0 0
    %2575 = vmatpush1.bf16.msra.mxu0 0
    %2576 = vmatprep.subr.bf16.mxu0 0
    %2577 = vmatpush1.bf16.msra.mxu0 0
    %2578 = vmatprep.subr.bf16.mxu0 0
    %2579 = vmatpush1.bf16.msra.mxu0 0
    %2580 = vmatprep.subr.bf16.mxu0 0
    %2581 = vmatpush1.bf16.msra.mxu0 0
    %2582 = vmatprep.subr.bf16.mxu0 0
    %2583 = vmatpush1.bf16.msra.mxu0 0
    %2584 = vmatprep.subr.bf16.mxu0 0
    %2585 = vmatpush1.bf16.msra.mxu0 0
    %2586 = vmatprep.subr.bf16.mxu0 0
    %2587 = vmatpush1.bf16.msra.mxu0 0
    %2588 = vmatprep.subr.bf16.mxu0 0
    %2589 = vmatpush1.bf16.msra.mxu0 0
    %2590 = vmatprep.subr.bf16.mxu0 0
    %2591 = vmatpush1.bf16.msra.mxu0 0
    %2592 = vmatprep.subr.bf16.mxu0 0
    %2593 = vmatpush1.bf16.msra.mxu0 0
    %2594 = vmatprep.subr.bf16.mxu0 0
    %2595 = vmatpush1.bf16.msra.mxu0 0
    %2596 = vmatprep.subr.bf16.mxu0 0
    %2597 = vmatpush1.bf16.msra.mxu0 0
    %2598 = vmatprep.subr.bf16.mxu0 0
    %2599 = vmatpush1.bf16.msra.mxu0 0
    %2600 = vmatprep.subr.bf16.mxu0 0
    %2601 = vmatpush1.bf16.msra.mxu0 0
    %2602 = vmatprep.mubr.bf16.mxu0 0
    %2603 = vmatmul.mubr.bf16.gmra.mrb[0].mxu0 %v2520
    %v2604 = vpop.f32.mrb[0].mxu0
    %v2605 = vadd.f32 0.0, %v2604
    %v2606 = vpop.f32.mrb[0].mxu0
    %v2607 = vpop.f32.mrb[0].mxu0
    %v2608 = vadd.f32 0.0, %v2607
    %v2609 = vpop.f32.mrb[0].mxu0
    %2610 = vmatprep.mubr.bf16.mxu0 0
    %2611 = vmatmul.mubr.bf16.gmra.mrb[0].mxu0 %v2523
    %v2612 = vpop.f32.mrb[0].mxu0
    %v2613 = vadd.f32 0.0, %v2612
    %v2614 = vpop.f32.mrb[0].mxu0
    %v2615 = vpop.f32.mrb[0].mxu0
    %v2616 = vadd.f32 0.0, %v2615
    %v2617 = vpop.f32.mrb[0].mxu0
    %2618 = vmatprep.mubr.bf16.mxu0 0
    %2619 = vmatmul.mubr.bf16.gmra.mrb[0].mxu0 %v2526
    %v2620 = vpop.f32.mrb[0].mxu0
    %v2621 = vadd.f32 0.0, %v2620
    %v2622 = vpop.f32.mrb[0].mxu0
    %v2623 = vpop.f32.mrb[0].mxu0
    %v2624 = vadd.f32 0.0, %v2623
    %v2625 = vpop.f32.mrb[0].mxu0
    %2626 = vmatprep.mubr.bf16.mxu0 0
    %2627 = vmatmul.mubr.bf16.gmra.mrb[0].mxu0 %v2529
    %v2628 = vpop.f32.mrb[0].mxu0
    %v2629 = vadd.f32 0.0, %v2628
    %v2630 = vpop.f32.mrb[0].mxu0
    %v2631 = vpop.f32.mrb[0].mxu0
    %v2632 = vadd.f32 0.0, %v2631
    %v2633 = vpop.f32.mrb[0].mxu0
    %2634 = vmatprep.mubr.bf16.mxu0 0
    %2635 = vmatmul.mubr.bf16.gmra.mrb[0].mxu0 %v2532
    %v2636 = vpop.f32.mrb[0].mxu0
    %v2637 = vadd.f32 0.0, %v2636
    %v2638 = vpop.f32.mrb[0].mxu0
    %v2639 = vpop.f32.mrb[0].mxu0
    %v2640 = vadd.f32 0.0, %v2639
    %v2641 = vpop.f32.mrb[0].mxu0
    %2642 = vmatprep.mubr.bf16.mxu0 0
    %2643 = vmatmul.mubr.bf16.gmra.mrb[0].mxu0 %v2535
    %v2644 = vpop.f32.mrb[0].mxu0
    %v2645 = vadd.f32 0.0, %v2644
    %v2646 = vpop.f32.mrb[0].mxu0
    %v2647 = vpop.f32.mrb[0].mxu0
    %v2648 = vadd.f32 0.0, %v2647
    %v2649 = vpop.f32.mrb[0].mxu0
    %2650 = vmatprep.mubr.bf16.mxu0 0
    %2651 = vmatmul.mubr.bf16.gmra.mrb[0].mxu0 %v2538
    %v2652 = vpop.f32.mrb[0].mxu0
    %v2653 = vadd.f32 0.0, %v2652
    %v2654 = vpop.f32.mrb[0].mxu0
    %v2655 = vpop.f32.mrb[0].mxu0
    %v2656 = vadd.f32 0.0, %v2655
    %v2657 = vpop.f32.mrb[0].mxu0
    %2658 = vmatprep.mubr.bf16.mxu0 0
    %2659 = vmatmul.mubr.bf16.gmra.mrb[0].mxu0 %v2541
    %v2660 = vpop.f32.mrb[0].mxu0
    %v2661 = vadd.f32 0.0, %v2660
    %v2662 = vpop.f32.mrb[0].mxu0
    %v2663 = vpop.f32.mrb[0].mxu0
    %v2664 = vadd.f32 0.0, %v2663
    %v2665 = vpop.f32.mrb[0].mxu0
    %2666 = vmatprep.mubr.bf16.mxu0 0
    %2667 = vmatmul.mubr.bf16.gmra.mrb[0].mxu0 %v2544
    %v2668 = vpop.f32.mrb[0].mxu0
    %v2669 = vadd.f32 0.0, %v2668
    %v2670 = vpop.f32.mrb[0].mxu0
    %v2671 = vpop.f32.mrb[0].mxu0
    %v2672 = vadd.f32 0.0, %v2671
    %v2673 = vpop.f32.mrb[0].mxu0
    %2674 = vmatprep.mubr.bf16.mxu0 0
    %2675 = vmatmul.mubr.bf16.gmra.mrb[0].mxu0 %v2547
    %v2676 = vpop.f32.mrb[0].mxu0
    %v2677 = vadd.f32 0.0, %v2676
    %v2678 = vpop.f32.mrb[0].mxu0
    %v2679 = vpop.f32.mrb[0].mxu0
    %v2680 = vadd.f32 0.0, %v2679
    %v2681 = vpop.f32.mrb[0].mxu0
    %2682 = vmatprep.mubr.bf16.mxu0 0
    %2683 = vmatmul.mubr.bf16.gmra.mrb[0].mxu0 %v2550
    %v2684 = vpop.f32.mrb[0].mxu0
    %v2685 = vadd.f32 0.0, %v2684
    %v2686 = vpop.f32.mrb[0].mxu0
    %v2687 = vpop.f32.mrb[0].mxu0
    %v2688 = vadd.f32 0.0, %v2687
    %v2689 = vpop.f32.mrb[0].mxu0
    %2690 = vmatprep.mubr.bf16.mxu0 0
    %2691 = vmatmul.mubr.bf16.gmra.mrb[0].mxu0 %v2553
    %v2692 = vpop.f32.mrb[0].mxu0
    %v2693 = vadd.f32 0.0, %v2692
    %v2694 = vpop.f32.mrb[0].mxu0
    %v2695 = vpop.f32.mrb[0].mxu0
    %v2696 = vadd.f32 0.0, %v2695
    %v2697 = vpop.f32.mrb[0].mxu0
    %2698 = vmatprep.mubr.bf16.mxu0 0
    %2699 = vmatmul.mubr.bf16.gmra.mrb[0].mxu0 %v2556
    %v2700 = vpop.f32.mrb[0].mxu0
    %v2701 = vadd.f32 0.0, %v2700
    %v2702 = vpop.f32.mrb[0].mxu0
    %v2703 = vpop.f32.mrb[0].mxu0
    %v2704 = vadd.f32 0.0, %v2703
    %v2705 = vpop.f32.mrb[0].mxu0
    %2706 = vmatprep.mubr.bf16.mxu0 0
    %2707 = vmatmul.mubr.bf16.gmra.mrb[0].mxu0 %v2559
    %v2708 = vpop.f32.mrb[0].mxu0
    %v2709 = vadd.f32 0.0, %v2708
    %v2710 = vpop.f32.mrb[0].mxu0
    %v2711 = vpop.f32.mrb[0].mxu0
    %v2712 = vadd.f32 0.0, %v2711
    %v2713 = vpop.f32.mrb[0].mxu0
    %2714 = vmatprep.mubr.bf16.mxu0 0
    %2715 = vmatmul.mubr.bf16.gmra.mrb[0].mxu0 %v2562
    %v2716 = vpop.f32.mrb[0].mxu0
    %v2717 = vadd.f32 0.0, %v2716
    %v2718 = vpop.f32.mrb[0].mxu0
    %v2719 = vpop.f32.mrb[0].mxu0
    %v2720 = vadd.f32 0.0, %v2719
    %v2721 = vpop.f32.mrb[0].mxu0
    %2722 = vmatprep.mubr.bf16.mxu0 0
    %2723 = vmatmul.mubr.bf16.gmra.mrb[0].mxu0 %v2565
    %v2724 = vpop.f32.mrb[0].mxu0
    %v2725 = vadd.f32 0.0, %v2724
    %v2726 = vpop.f32.mrb[0].mxu0
    %v2727 = vpop.f32.mrb[0].mxu0
    %v2728 = vadd.f32 0.0, %v2727
    %v2729 = vpop.f32.mrb[0].mxu0
    %2730 = vdwg.mxu0
    %v2731 = vadd.f32 %v2364, %v2605
    %v2732 = vadd.f32 %v2367, %v2608
    %v2733 = vadd.f32 %v2372, %v2613
    %v2734 = vadd.f32 %v2375, %v2616
    %v2735 = vadd.f32 %v2380, %v2621
    %v2736 = vadd.f32 %v2383, %v2624
    %v2737 = vadd.f32 %v2388, %v2629
    %v2738 = vadd.f32 %v2391, %v2632
    %v2739 = vadd.f32 %v2396, %v2637
    %v2740 = vadd.f32 %v2399, %v2640
    %v2741 = vadd.f32 %v2404, %v2645
    %v2742 = vadd.f32 %v2407, %v2648
    %v2743 = vadd.f32 %v2412, %v2653
    %v2744 = vadd.f32 %v2415, %v2656
    %v2745 = vadd.f32 %v2420, %v2661
    %v2746 = vadd.f32 %v2423, %v2664
    %v2747 = vadd.f32 %v2428, %v2669
    %v2748 = vadd.f32 %v2431, %v2672
    %v2749 = vadd.f32 %v2436, %v2677
    %v2750 = vadd.f32 %v2439, %v2680
    %v2751 = vadd.f32 %v2444, %v2685
    %v2752 = vadd.f32 %v2447, %v2688
    %v2753 = vadd.f32 %v2452, %v2693
    %v2754 = vadd.f32 %v2455, %v2696
    %v2755 = vadd.f32 %v2460, %v2701
    %v2756 = vadd.f32 %v2463, %v2704
    %v2757 = vadd.f32 %v2468, %v2709
    %v2758 = vadd.f32 %v2471, %v2712
    %v2759 = vadd.f32 %v2476, %v2717
    %v2760 = vadd.f32 %v2479, %v2720
    %v2761 = vadd.f32 %v2484, %v2725
    %v2762 = vadd.f32 %v2487, %v2728
    %v2763 = vld [vmem:[%s4] sm:$0x1]
    %v2765 = vlaneseq
    %v2766 = vshrl.u32 %v2765, 7
    %v2767 = vsub.s32 0, %v2766
    %v2768 = vrot.slane %v2763, %v2767
    %v2770 = vadd.f32 %v2731, %v2768
    %v2771 = vadd.f32 %v2732, %v2768
    %v2772 = vadd.f32 %v2733, %v2768
    %v2773 = vadd.f32 %v2734, %v2768
    %v2774 = vadd.f32 %v2735, %v2768
    %v2775 = vadd.f32 %v2736, %v2768
    %v2776 = vadd.f32 %v2737, %v2768
    %v2777 = vadd.f32 %v2738, %v2768
    %v2778 = vadd.f32 %v2739, %v2768
    %v2779 = vadd.f32 %v2740, %v2768
    %v2780 = vadd.f32 %v2741, %v2768
    %v2781 = vadd.f32 %v2742, %v2768
    %v2782 = vadd.f32 %v2743, %v2768
    %v2783 = vadd.f32 %v2744, %v2768
    %v2784 = vadd.f32 %v2745, %v2768
    %v2785 = vadd.f32 %v2746, %v2768
    %v2786 = vadd.f32 %v2747, %v2768
    %v2787 = vadd.f32 %v2748, %v2768
    %v2788 = vadd.f32 %v2749, %v2768
    %v2789 = vadd.f32 %v2750, %v2768
    %v2790 = vadd.f32 %v2751, %v2768
    %v2791 = vadd.f32 %v2752, %v2768
    %v2792 = vadd.f32 %v2753, %v2768
    %v2793 = vadd.f32 %v2754, %v2768
    %v2794 = vadd.f32 %v2755, %v2768
    %v2795 = vadd.f32 %v2756, %v2768
    %v2796 = vadd.f32 %v2757, %v2768
    %v2797 = vadd.f32 %v2758, %v2768
    %v2798 = vadd.f32 %v2759, %v2768
    %v2799 = vadd.f32 %v2760, %v2768
    %v2800 = vadd.f32 %v2761, %v2768
    %v2801 = vadd.f32 %v2762, %v2768
    %v2802 = vmax.f32 %v2770, 0.0
    %v2803 = vmax.f32 %v2771, 0.0
    %v2804 = vmax.f32 %v2772, 0.0
    %v2805 = vmax.f32 %v2773, 0.0
    %v2806 = vmax.f32 %v2774, 0.0
    %v2807 = vmax.f32 %v2775, 0.0
    %v2808 = vmax.f32 %v2776, 0.0
    %v2809 = vmax.f32 %v2777, 0.0
    %v2810 = vmax.f32 %v2778, 0.0
    %v2811 = vmax.f32 %v2779, 0.0
    %v2812 = vmax.f32 %v2780, 0.0
    %v2813 = vmax.f32 %v2781, 0.0
    %v2814 = vmax.f32 %v2782, 0.0
    %v2815 = vmax.f32 %v2783, 0.0
    %v2816 = vmax.f32 %v2784, 0.0
    %v2817 = vmax.f32 %v2785, 0.0
    %v2818 = vmax.f32 %v2786, 0.0
    %v2819 = vmax.f32 %v2787, 0.0
    %v2820 = vmax.f32 %v2788, 0.0
    %v2821 = vmax.f32 %v2789, 0.0
    %v2822 = vmax.f32 %v2790, 0.0
    %v2823 = vmax.f32 %v2791, 0.0
    %v2824 = vmax.f32 %v2792, 0.0
    %v2825 = vmax.f32 %v2793, 0.0
    %v2826 = vmax.f32 %v2794, 0.0
    %v2827 = vmax.f32 %v2795, 0.0
    %v2828 = vmax.f32 %v2796, 0.0
    %v2829 = vmax.f32 %v2797, 0.0
    %v2830 = vmax.f32 %v2798, 0.0
    %v2831 = vmax.f32 %v2799, 0.0
    %v2832 = vmax.f32 %v2800, 0.0
    %v2833 = vmax.f32 %v2801, 0.0
    %2834 = vst.msk [vmem:[#allocation3] sm:$0xff] %vm1581, %v2802
    %2835 = vst.msk [vmem:[#allocation3 + $0x8] sm:$0xff] %vm1581, %v2803
    %2836 = vst.msk [vmem:[#allocation3 + $0x10] sm:$0xff] %vm1581, %v2804
    %2837 = vst.msk [vmem:[#allocation3 + $0x18] sm:$0xff] %vm1581, %v2805
    %2838 = vst.msk [vmem:[#allocation3 + $0x20] sm:$0xff] %vm1581, %v2806
    %2839 = vst.msk [vmem:[#allocation3 + $0x28] sm:$0xff] %vm1581, %v2807
    %2840 = vst.msk [vmem:[#allocation3 + $0x30] sm:$0xff] %vm1581, %v2808
    %2841 = vst.msk [vmem:[#allocation3 + $0x38] sm:$0xff] %vm1581, %v2809
    %2842 = vst.msk [vmem:[#allocation3 + $0x40] sm:$0xff] %vm1581, %v2810
    %2843 = vst.msk [vmem:[#allocation3 + $0x48] sm:$0xff] %vm1581, %v2811
    %2844 = vst.msk [vmem:[#allocation3 + $0x50] sm:$0xff] %vm1581, %v2812
    %2845 = vst.msk [vmem:[#allocation3 + $0x58] sm:$0xff] %vm1581, %v2813
    %2846 = vst.msk [vmem:[#allocation3 + $0x60] sm:$0xff] %vm1581, %v2814
    %2847 = vst.msk [vmem:[#allocation3 + $0x68] sm:$0xff] %vm1581, %v2815
    %2848 = vst.msk [vmem:[#allocation3 + $0x70] sm:$0xff] %vm1581, %v2816
    %2849 = vst.msk [vmem:[#allocation3 + $0x78] sm:$0xff] %vm1581, %v2817
    %2850 = vst.msk [vmem:[#allocation3 + $0x80] sm:$0xff] %vm1581, %v2818
    %2851 = vst.msk [vmem:[#allocation3 + $0x88] sm:$0xff] %vm1581, %v2819
    %2852 = vst.msk [vmem:[#allocation3 + $0x90] sm:$0xff] %vm1581, %v2820
    %2853 = vst.msk [vmem:[#allocation3 + $0x98] sm:$0xff] %vm1581, %v2821
    %2854 = vst.msk [vmem:[#allocation3 + $0xa0] sm:$0xff] %vm1581, %v2822
    %2855 = vst.msk [vmem:[#allocation3 + $0xa8] sm:$0xff] %vm1581, %v2823
    %2856 = vst.msk [vmem:[#allocation3 + $0xb0] sm:$0xff] %vm1581, %v2824
    %2857 = vst.msk [vmem:[#allocation3 + $0xb8] sm:$0xff] %vm1581, %v2825
    %2858 = vst.msk [vmem:[#allocation3 + $0xc0] sm:$0xff] %vm1581, %v2826
    %2859 = vst.msk [vmem:[#allocation3 + $0xc8] sm:$0xff] %vm1581, %v2827
    %2860 = vst.msk [vmem:[#allocation3 + $0xd0] sm:$0xff] %vm1581, %v2828
    %2861 = vst.msk [vmem:[#allocation3 + $0xd8] sm:$0xff] %vm1581, %v2829
    %2862 = vst.msk [vmem:[#allocation3 + $0xe0] sm:$0xff] %vm1581, %v2830
    %2863 = vst.msk [vmem:[#allocation3 + $0xe8] sm:$0xff] %vm1581, %v2831
    %2864 = vst.msk [vmem:[#allocation3 + $0xf0] sm:$0xff] %vm1581, %v2832
    %2865 = vst.msk [vmem:[#allocation3 + $0xf8] sm:$0xff] %vm1581, %v2833
    %v2866 = vunpack.c.l.bf16 %v642
    %v2867 = vunpack.c.l.bf16 %v643
    %v2868 = vunpack.c.l.bf16 %v644
    %v2869 = vunpack.c.l.bf16 %v645
    %v2870 = vunpack.c.l.bf16 %v646
    %v2871 = vunpack.c.l.bf16 %v647
    %v2872 = vunpack.c.l.bf16 %v648
    %v2873 = vunpack.c.l.bf16 %v649
    %v2874 = vunpack.c.l.bf16 %v650
    %v2875 = vunpack.c.l.bf16 %v651
    %v2876 = vunpack.c.l.bf16 %v652
    %v2877 = vunpack.c.l.bf16 %v653
    %v2878 = vunpack.c.l.bf16 %v654
    %v2879 = vunpack.c.l.bf16 %v655
    %v2880 = vunpack.c.l.bf16 %v656
    %v2881 = vunpack.c.l.bf16 %v657
    %v2882 = vunpack.c.l.bf16 %v658
    %v2883 = vunpack.c.l.bf16 %v659
    %v2884 = vunpack.c.l.bf16 %v660
    %v2885 = vunpack.c.l.bf16 %v661
    %v2886 = vunpack.c.l.bf16 %v662
    %v2887 = vunpack.c.l.bf16 %v663
    %v2888 = vunpack.c.l.bf16 %v664
    %v2889 = vunpack.c.l.bf16 %v665
    %v2890 = vunpack.c.l.bf16 %v666
    %v2891 = vunpack.c.l.bf16 %v667
    %v2892 = vunpack.c.l.bf16 %v668
    %v2893 = vunpack.c.l.bf16 %v669
    %v2894 = vunpack.c.l.bf16 %v670
    %v2895 = vunpack.c.l.bf16 %v671
    %v2896 = vunpack.c.l.bf16 %v672
    %v2897 = vunpack.c.l.bf16 %v673
    %2930 = vrot.lane.b32.xlu0 %v2866, 8
    %v2931 = vpop.permute.xlu0 %2930
    %2932 = vrot.lane.b32.xlu0 %v2867, 8
    %v2933 = vpop.permute.xlu0 %2932
    %2934 = vrot.lane.b32.xlu0 %v2868, 8
    %v2935 = vpop.permute.xlu0 %2934
    %2936 = vrot.lane.b32.xlu0 %v2869, 8
    %v2937 = vpop.permute.xlu0 %2936
    %2938 = vrot.lane.b32.xlu0 %v2870, 8
    %v2939 = vpop.permute.xlu0 %2938
    %2940 = vrot.lane.b32.xlu0 %v2871, 8
    %v2941 = vpop.permute.xlu0 %2940
    %2942 = vrot.lane.b32.xlu0 %v2872, 8
    %v2943 = vpop.permute.xlu0 %2942
    %2944 = vrot.lane.b32.xlu0 %v2873, 8
    %v2945 = vpop.permute.xlu0 %2944
    %2946 = vrot.lane.b32.xlu0 %v2874, 8
    %v2947 = vpop.permute.xlu0 %2946
    %2948 = vrot.lane.b32.xlu0 %v2875, 8
    %v2949 = vpop.permute.xlu0 %2948
    %2950 = vrot.lane.b32.xlu0 %v2876, 8
    %v2951 = vpop.permute.xlu0 %2950
    %2952 = vrot.lane.b32.xlu0 %v2877, 8
    %v2953 = vpop.permute.xlu0 %2952
    %2954 = vrot.lane.b32.xlu0 %v2878, 8
    %v2955 = vpop.permute.xlu0 %2954
    %2956 = vrot.lane.b32.xlu0 %v2879, 8
    %v2957 = vpop.permute.xlu0 %2956
    %2958 = vrot.lane.b32.xlu0 %v2880, 8
    %v2959 = vpop.permute.xlu0 %2958
    %2960 = vrot.lane.b32.xlu0 %v2881, 8
    %v2961 = vpop.permute.xlu0 %2960
    %2962 = vrot.lane.b32.xlu0 %v2882, 8
    %v2963 = vpop.permute.xlu0 %2962
    %2964 = vrot.lane.b32.xlu0 %v2883, 8
    %v2965 = vpop.permute.xlu0 %2964
    %2966 = vrot.lane.b32.xlu0 %v2884, 8
    %v2967 = vpop.permute.xlu0 %2966
    %2968 = vrot.lane.b32.xlu0 %v2885, 8
    %v2969 = vpop.permute.xlu0 %2968
    %2970 = vrot.lane.b32.xlu0 %v2886, 8
    %v2971 = vpop.permute.xlu0 %2970
    %2972 = vrot.lane.b32.xlu0 %v2887, 8
    %v2973 = vpop.permute.xlu0 %2972
    %2974 = vrot.lane.b32.xlu0 %v2888, 8
    %v2975 = vpop.permute.xlu0 %2974
    %2976 = vrot.lane.b32.xlu0 %v2889, 8
    %v2977 = vpop.permute.xlu0 %2976
    %2978 = vrot.lane.b32.xlu0 %v2890, 8
    %v2979 = vpop.permute.xlu0 %2978
    %2980 = vrot.lane.b32.xlu0 %v2891, 8
    %v2981 = vpop.permute.xlu0 %2980
    %2982 = vrot.lane.b32.xlu0 %v2892, 8
    %v2983 = vpop.permute.xlu0 %2982
    %2984 = vrot.lane.b32.xlu0 %v2893, 8
    %v2985 = vpop.permute.xlu0 %2984
    %2986 = vrot.lane.b32.xlu0 %v2894, 8
    %v2987 = vpop.permute.xlu0 %2986
    %2988 = vrot.lane.b32.xlu0 %v2895, 8
    %v2989 = vpop.permute.xlu0 %2988
    %2990 = vrot.lane.b32.xlu0 %v2896, 8
    %v2991 = vpop.permute.xlu0 %2990
    %2992 = vrot.lane.b32.xlu0 %v2897, 8
    %v2993 = vpop.permute.xlu0 %2992
    %vm3026 = vcmask 195648
    %3027 = vst.msk [vmem:[#allocation3] sm:$0xff] %vm3026, %v2931
    %3028 = vst.msk [vmem:[#allocation3 + $0x8] sm:$0xff] %vm3026, %v2933
    %3029 = vst.msk [vmem:[#allocation3 + $0x10] sm:$0xff] %vm3026, %v2935
    %3030 = vst.msk [vmem:[#allocation3 + $0x18] sm:$0xff] %vm3026, %v2937
    %3031 = vst.msk [vmem:[#allocation3 + $0x20] sm:$0xff] %vm3026, %v2939
    %3032 = vst.msk [vmem:[#allocation3 + $0x28] sm:$0xff] %vm3026, %v2941
    %3033 = vst.msk [vmem:[#allocation3 + $0x30] sm:$0xff] %vm3026, %v2943
    %3034 = vst.msk [vmem:[#allocation3 + $0x38] sm:$0xff] %vm3026, %v2945
    %3035 = vst.msk [vmem:[#allocation3 + $0x40] sm:$0xff] %vm3026, %v2947
    %3036 = vst.msk [vmem:[#allocation3 + $0x48] sm:$0xff] %vm3026, %v2949
    %3037 = vst.msk [vmem:[#allocation3 + $0x50] sm:$0xff] %vm3026, %v2951
    %3038 = vst.msk [vmem:[#allocation3 + $0x58] sm:$0xff] %vm3026, %v2953
    %3039 = vst.msk [vmem:[#allocation3 + $0x60] sm:$0xff] %vm3026, %v2955
    %3040 = vst.msk [vmem:[#allocation3 + $0x68] sm:$0xff] %vm3026, %v2957
    %3041 = vst.msk [vmem:[#allocation3 + $0x70] sm:$0xff] %vm3026, %v2959
    %3042 = vst.msk [vmem:[#allocation3 + $0x78] sm:$0xff] %vm3026, %v2961
    %3043 = vst.msk [vmem:[#allocation3 + $0x80] sm:$0xff] %vm3026, %v2963
    %3044 = vst.msk [vmem:[#allocation3 + $0x88] sm:$0xff] %vm3026, %v2965
    %3045 = vst.msk [vmem:[#allocation3 + $0x90] sm:$0xff] %vm3026, %v2967
    %3046 = vst.msk [vmem:[#allocation3 + $0x98] sm:$0xff] %vm3026, %v2969
    %3047 = vst.msk [vmem:[#allocation3 + $0xa0] sm:$0xff] %vm3026, %v2971
    %3048 = vst.msk [vmem:[#allocation3 + $0xa8] sm:$0xff] %vm3026, %v2973
    %3049 = vst.msk [vmem:[#allocation3 + $0xb0] sm:$0xff] %vm3026, %v2975
    %3050 = vst.msk [vmem:[#allocation3 + $0xb8] sm:$0xff] %vm3026, %v2977
    %3051 = vst.msk [vmem:[#allocation3 + $0xc0] sm:$0xff] %vm3026, %v2979
    %3052 = vst.msk [vmem:[#allocation3 + $0xc8] sm:$0xff] %vm3026, %v2981
    %3053 = vst.msk [vmem:[#allocation3 + $0xd0] sm:$0xff] %vm3026, %v2983
    %3054 = vst.msk [vmem:[#allocation3 + $0xd8] sm:$0xff] %vm3026, %v2985
    %3055 = vst.msk [vmem:[#allocation3 + $0xe0] sm:$0xff] %vm3026, %v2987
    %3056 = vst.msk [vmem:[#allocation3 + $0xe8] sm:$0xff] %vm3026, %v2989
    %3057 = vst.msk [vmem:[#allocation3 + $0xf0] sm:$0xff] %vm3026, %v2991
    %3058 = vst.msk [vmem:[#allocation3 + $0xf8] sm:$0xff] %vm3026, %v2993
    %v3059 = vld [vmem:[#allocation3] ss:$2 sm:$0xff]
    %v3060 = vadd.f32 %v3059, 0.0
    %s3061 = scalar_lea.vmem [#allocation3], 1
    %v3062 = vld [vmem:[%s3061] ss:$2 sm:$0xff]
    %v3063 = vadd.f32 %v3060, %v3062
    %s3064 = scalar_lea.vmem [#allocation3], 16
    %v3065 = vld [vmem:[%s3064] ss:$2 sm:$0xff]
    %v3066 = vadd.f32 %v3063, %v3065
    %s3067 = scalar_lea.vmem [#allocation3], 17
    %v3068 = vld [vmem:[%s3067] ss:$2 sm:$0xff]
    %v3069 = vadd.f32 %v3066, %v3068
    %v3070 = vpack.c.bf16 %v3069, %v3069
    %vm3071 = vcmask 191488
    %3072 = vst.msk [vmem:[#allocation4] sm:$0xf] %vm3071, %v3070
    %s3073 = scalar_lea.vmem [#allocation3], 32
    %v3074 = vld [vmem:[%s3073] ss:$2 sm:$0xff]
    %v3075 = vadd.f32 %v3074, 0.0
    %s3076 = scalar_lea.vmem [#allocation3], 33
    %v3077 = vld [vmem:[%s3076] ss:$2 sm:$0xff]
    %v3078 = vadd.f32 %v3075, %v3077
    %s3079 = scalar_lea.vmem [#allocation3], 48
    %v3080 = vld [vmem:[%s3079] ss:$2 sm:$0xff]
    %v3081 = vadd.f32 %v3078, %v3080
    %s3082 = scalar_lea.vmem [#allocation3], 49
    %v3083 = vld [vmem:[%s3082] ss:$2 sm:$0xff]
    %v3084 = vadd.f32 %v3081, %v3083
    %v3085 = vpack.c.bf16 %v3084, %v3084
    %v3087 = vrot.slane %v3085, 4
    %vm3089 = vcmask 195588
    %3090 = vst.msk [vmem:[#allocation4] sm:$0xf0] %vm3089, %v3087
    %s3091 = scalar_lea.vmem [#allocation3], 64
    %v3092 = vld [vmem:[%s3091] ss:$2 sm:$0xff]
    %v3093 = vadd.f32 %v3092, 0.0
    %s3094 = scalar_lea.vmem [#allocation3], 65
    %v3095 = vld [vmem:[%s3094] ss:$2 sm:$0xff]
    %v3096 = vadd.f32 %v3093, %v3095
    %s3097 = scalar_lea.vmem [#allocation3], 80
    %v3098 = vld [vmem:[%s3097] ss:$2 sm:$0xff]
    %v3099 = vadd.f32 %v3096, %v3098
    %s3100 = scalar_lea.vmem [#allocation3], 81
    %v3101 = vld [vmem:[%s3100] ss:$2 sm:$0xff]
    %v3102 = vadd.f32 %v3099, %v3101
    %v3103 = vpack.c.bf16 %v3102, %v3102
    %3104 = vst.msk [vmem:[#allocation4 + $0x8] sm:$0xf] %vm3071, %v3103
    %s3105 = scalar_lea.vmem [#allocation3], 96
    %v3106 = vld [vmem:[%s3105] ss:$2 sm:$0xff]
    %v3107 = vadd.f32 %v3106, 0.0
    %s3108 = scalar_lea.vmem [#allocation3], 97
    %v3109 = vld [vmem:[%s3108] ss:$2 sm:$0xff]
    %v3110 = vadd.f32 %v3107, %v3109
    %s3111 = scalar_lea.vmem [#allocation3], 112
    %v3112 = vld [vmem:[%s3111] ss:$2 sm:$0xff]
    %v3113 = vadd.f32 %v3110, %v3112
    %s3114 = scalar_lea.vmem [#allocation3], 113
    %v3115 = vld [vmem:[%s3114] ss:$2 sm:$0xff]
    %v3116 = vadd.f32 %v3113, %v3115
    %v3117 = vpack.c.bf16 %v3116, %v3116
    %v3119 = vrot.slane %v3117, 4
    %3121 = vst.msk [vmem:[#allocation4 + $0x8] sm:$0xf0] %vm3089, %v3119
    %s3122 = scalar_lea.vmem [#allocation3], 128
    %v3123 = vld [vmem:[%s3122] ss:$2 sm:$0xff]
    %v3124 = vadd.f32 %v3123, 0.0
    %s3125 = scalar_lea.vmem [#allocation3], 129
    %v3126 = vld [vmem:[%s3125] ss:$2 sm:$0xff]
    %v3127 = vadd.f32 %v3124, %v3126
    %s3128 = scalar_lea.vmem [#allocation3], 144
    %v3129 = vld [vmem:[%s3128] ss:$2 sm:$0xff]
    %v3130 = vadd.f32 %v3127, %v3129
    %s3131 = scalar_lea.vmem [#allocation3], 145
    %v3132 = vld [vmem:[%s3131] ss:$2 sm:$0xff]
    %v3133 = vadd.f32 %v3130, %v3132
    %v3134 = vpack.c.bf16 %v3133, %v3133
    %3135 = vst.msk [vmem:[#allocation4 + $0x10] sm:$0xf] %vm3071, %v3134
    %s3136 = scalar_lea.vmem [#allocation3], 160
    %v3137 = vld [vmem:[%s3136] ss:$2 sm:$0xff]
    %v3138 = vadd.f32 %v3137, 0.0
    %s3139 = scalar_lea.vmem [#allocation3], 161
    %v3140 = vld [vmem:[%s3139] ss:$2 sm:$0xff]
    %v3141 = vadd.f32 %v3138, %v3140
    %s3142 = scalar_lea.vmem [#allocation3], 176
    %v3143 = vld [vmem:[%s3142] ss:$2 sm:$0xff]
    %v3144 = vadd.f32 %v3141, %v3143
    %s3145 = scalar_lea.vmem [#allocation3], 177
    %v3146 = vld [vmem:[%s3145] ss:$2 sm:$0xff]
    %v3147 = vadd.f32 %v3144, %v3146
    %v3148 = vpack.c.bf16 %v3147, %v3147
    %v3150 = vrot.slane %v3148, 4
    %3152 = vst.msk [vmem:[#allocation4 + $0x10] sm:$0xf0] %vm3089, %v3150
    %s3153 = scalar_lea.vmem [#allocation3], 192
    %v3154 = vld [vmem:[%s3153] ss:$2 sm:$0xff]
    %v3155 = vadd.f32 %v3154, 0.0
    %s3156 = scalar_lea.vmem [#allocation3], 193
    %v3157 = vld [vmem:[%s3156] ss:$2 sm:$0xff]
    %v3158 = vadd.f32 %v3155, %v3157
    %s3159 = scalar_lea.vmem [#allocation3], 208
    %v3160 = vld [vmem:[%s3159] ss:$2 sm:$0xff]
    %v3161 = vadd.f32 %v3158, %v3160
    %s3162 = scalar_lea.vmem [#allocation3], 209
    %v3163 = vld [vmem:[%s3162] ss:$2 sm:$0xff]
    %v3164 = vadd.f32 %v3161, %v3163
    %v3165 = vpack.c.bf16 %v3164, %v3164
    %3166 = vst.msk [vmem:[#allocation4 + $0x18] sm:$0xf] %vm3071, %v3165
    %s3167 = scalar_lea.vmem [#allocation3], 224
    %v3168 = vld [vmem:[%s3167] ss:$2 sm:$0xff]
    %v3169 = vadd.f32 %v3168, 0.0
    %s3170 = scalar_lea.vmem [#allocation3], 225
    %v3171 = vld [vmem:[%s3170] ss:$2 sm:$0xff]
    %v3172 = vadd.f32 %v3169, %v3171
    %s3173 = scalar_lea.vmem [#allocation3], 240
    %v3174 = vld [vmem:[%s3173] ss:$2 sm:$0xff]
    %v3175 = vadd.f32 %v3172, %v3174
    %s3176 = scalar_lea.vmem [#allocation3], 241
    %v3177 = vld [vmem:[%s3176] ss:$2 sm:$0xff]
    %v3178 = vadd.f32 %v3175, %v3177
    %v3179 = vpack.c.bf16 %v3178, %v3178
    %v3181 = vrot.slane %v3179, 4
    %3183 = vst.msk [vmem:[#allocation4 + $0x18] sm:$0xf0] %vm3089, %v3181
    %v3184 = vld [vmem:[#allocation4] sm:$0xff]
    %v3185 = vld [vmem:[#allocation4 + $0x8] sm:$0xff]
    %v3186 = vld [vmem:[#allocation4 + $0x10] sm:$0xff]
    %v3187 = vld [vmem:[#allocation4 + $0x18] sm:$0xff]
    %v3188 = vld [vmem:[%s5] sm:$0xf]
    %v3189 = vld [vmem:[%s5 + $0x4] sm:$0xf]
    %v3190 = vld [vmem:[%s5 + $0x8] sm:$0xf]
    %v3191 = vld [vmem:[%s6] sm:$0x1]
    %v3193 = vlaneseq
    %v3194 = vshrl.u32 %v3193, 7
    %v3195 = vsub.s32 0, %v3194
    %v3196 = vrot.slane %v3191, %v3195
    %v3201 = vunpack.c.l.b16 %v3188
    %v3202 = vunpack.c.l.b16 %v3189
    %v3203 = vunpack.c.l.b16 %v3190
    %v3204 = vpack.c.b16 %v3202, %v3201
    %v3205 = vpack.c.b16 %v3203, %v3203
    %v3208 = vsel %vm639, %v3184, 0
    %v3211 = vsel %vm639, %v3185, 0
    %v3214 = vsel %vm639, %v3186, 0
    %v3217 = vsel %vm639, %v3187, 0
    %v3220 = vsel %vm2149, %v3205, 0
    %3222 = vmatprep.subr.bf16.mxu0 0
    %3223 = vmatpush1.bf16.msra.mxu0 %v3204
    %3224 = vmatprep.subr.bf16.mxu0 0
    %3225 = vmatpush1.bf16.msra.mxu0 %v3220
    %3226 = vmatprep.subr.bf16.mxu0 0
    %3227 = vmatpush1.bf16.msra.mxu0 0
    %3228 = vmatprep.subr.bf16.mxu0 0
    %3229 = vmatpush1.bf16.msra.mxu0 0
    %3230 = vmatprep.subr.bf16.mxu0 0
    %3231 = vmatpush1.bf16.msra.mxu0 0
    %3232 = vmatprep.subr.bf16.mxu0 0
    %3233 = vmatpush1.bf16.msra.mxu0 0
    %3234 = vmatprep.subr.bf16.mxu0 0
    %3235 = vmatpush1.bf16.msra.mxu0 0
    %3236 = vmatprep.subr.bf16.mxu0 0
    %3237 = vmatpush1.bf16.msra.mxu0 0
    %3238 = vmatprep.subr.bf16.mxu0 0
    %3239 = vmatpush1.bf16.msra.mxu0 0
    %3240 = vmatprep.subr.bf16.mxu0 0
    %3241 = vmatpush1.bf16.msra.mxu0 0
    %3242 = vmatprep.subr.bf16.mxu0 0
    %3243 = vmatpush1.bf16.msra.mxu0 0
    %3244 = vmatprep.subr.bf16.mxu0 0
    %3245 = vmatpush1.bf16.msra.mxu0 0
    %3246 = vmatprep.subr.bf16.mxu0 0
    %3247 = vmatpush1.bf16.msra.mxu0 0
    %3248 = vmatprep.subr.bf16.mxu0 0
    %3249 = vmatpush1.bf16.msra.mxu0 0
    %3250 = vmatprep.subr.bf16.mxu0 0
    %3251 = vmatpush1.bf16.msra.mxu0 0
    %3252 = vmatprep.subr.bf16.mxu0 0
    %3253 = vmatpush1.bf16.msra.mxu0 0
    %3254 = vmatprep.mubr.bf16.mxu0 0
    %3255 = vmatmul.mubr.bf16.gmra.mrb[0].mxu0 %v3208
    %v3256 = vpop.f32.mrb[0].mxu0
    %v3257 = vadd.f32 %v3196, %v3256
    %v3258 = vpop.f32.mrb[0].mxu0
    %v3259 = vpop.f32.mrb[0].mxu0
    %v3260 = vadd.f32 %v3196, %v3259
    %v3261 = vpop.f32.mrb[0].mxu0
    %3262 = vmatprep.mubr.bf16.mxu0 0
    %3263 = vmatmul.mubr.bf16.gmra.mrb[0].mxu0 %v3211
    %v3264 = vpop.f32.mrb[0].mxu0
    %v3265 = vadd.f32 %v3196, %v3264
    %v3266 = vpop.f32.mrb[0].mxu0
    %v3267 = vpop.f32.mrb[0].mxu0
    %v3268 = vadd.f32 %v3196, %v3267
    %v3269 = vpop.f32.mrb[0].mxu0
    %3270 = vmatprep.mubr.bf16.mxu0 0
    %3271 = vmatmul.mubr.bf16.gmra.mrb[0].mxu0 %v3214
    %v3272 = vpop.f32.mrb[0].mxu0
    %v3273 = vadd.f32 %v3196, %v3272
    %v3274 = vpop.f32.mrb[0].mxu0
    %v3275 = vpop.f32.mrb[0].mxu0
    %v3276 = vadd.f32 %v3196, %v3275
    %v3277 = vpop.f32.mrb[0].mxu0
    %3278 = vmatprep.mubr.bf16.mxu0 0
    %3279 = vmatmul.mubr.bf16.gmra.mrb[0].mxu0 %v3217
    %v3280 = vpop.f32.mrb[0].mxu0
    %v3281 = vadd.f32 %v3196, %v3280
    %v3282 = vpop.f32.mrb[0].mxu0
    %v3283 = vpop.f32.mrb[0].mxu0
    %v3284 = vadd.f32 %v3196, %v3283
    %v3285 = vpop.f32.mrb[0].mxu0
    %3286 = vdwg.mxu0
    %v3287 = vmax.f32 %v3257, 0.0
    %v3288 = vmax.f32 %v3260, 0.0
    %v3289 = vmax.f32 %v3265, 0.0
    %v3290 = vmax.f32 %v3268, 0.0
    %v3291 = vmax.f32 %v3273, 0.0
    %v3292 = vmax.f32 %v3276, 0.0
    %v3293 = vmax.f32 %v3281, 0.0
    %v3294 = vmax.f32 %v3284, 0.0
    %vm3295 = vcmask 261120
    %3296 = vst.msk [vmem:[#allocation5] sm:$0xff] %vm3295, %v3287
    %3297 = vst.msk [vmem:[#allocation5 + $0x8] sm:$0xff] %vm3295, %v3288
    %3298 = vst.msk [vmem:[#allocation5 + $0x10] sm:$0xff] %vm3295, %v3289
    %3299 = vst.msk [vmem:[#allocation5 + $0x18] sm:$0xff] %vm3295, %v3290
    %3300 = vst.msk [vmem:[#allocation5 + $0x20] sm:$0xff] %vm3295, %v3291
    %3301 = vst.msk [vmem:[#allocation5 + $0x28] sm:$0xff] %vm3295, %v3292
    %3302 = vst.msk [vmem:[#allocation5 + $0x30] sm:$0xff] %vm3295, %v3293
    %3303 = vst.msk [vmem:[#allocation5 + $0x38] sm:$0xff] %vm3295, %v3294
    %s3304 = scalar_lea.vmem %s0, 128
    %v3305 = vld [vmem:[%s3304] sm:$0xf]
    %v3306 = vld [vmem:[%s3304 + $0x4] sm:$0xf]
    %v3307 = vld [vmem:[%s3304 + $0x8] sm:$0xf]
    %v3308 = vld [vmem:[%s3304 + $0xc] sm:$0xf]
    %v3309 = vld [vmem:[%s3304 + $0x10] sm:$0xf]
    %v3310 = vld [vmem:[%s3304 + $0x14] sm:$0xf]
    %v3311 = vld [vmem:[%s3304 + $0x18] sm:$0xf]
    %v3312 = vld [vmem:[%s3304 + $0x1c] sm:$0xf]
    %v3313 = vld [vmem:[%s3304 + $0x20] sm:$0xf]
    %v3314 = vld [vmem:[%s3304 + $0x24] sm:$0xf]
    %v3315 = vld [vmem:[%s3304 + $0x28] sm:$0xf]
    %v3316 = vld [vmem:[%s3304 + $0x2c] sm:$0xf]
    %v3317 = vld [vmem:[%s3304 + $0x30] sm:$0xf]
    %v3318 = vld [vmem:[%s3304 + $0x34] sm:$0xf]
    %v3319 = vld [vmem:[%s3304 + $0x38] sm:$0xf]
    %v3320 = vld [vmem:[%s3304 + $0x3c] sm:$0xf]
    %v3321 = vld [vmem:[%s3304 + $0x40] sm:$0xf]
    %v3322 = vld [vmem:[%s3304 + $0x44] sm:$0xf]
    %v3323 = vld [vmem:[%s3304 + $0x48] sm:$0xf]
    %v3324 = vld [vmem:[%s3304 + $0x4c] sm:$0xf]
    %v3325 = vld [vmem:[%s3304 + $0x50] sm:$0xf]
    %v3326 = vld [vmem:[%s3304 + $0x54] sm:$0xf]
    %v3327 = vld [vmem:[%s3304 + $0x58] sm:$0xf]
    %v3328 = vld [vmem:[%s3304 + $0x5c] sm:$0xf]
    %v3329 = vld [vmem:[%s3304 + $0x60] sm:$0xf]
    %v3330 = vld [vmem:[%s3304 + $0x64] sm:$0xf]
    %v3331 = vld [vmem:[%s3304 + $0x68] sm:$0xf]
    %v3332 = vld [vmem:[%s3304 + $0x6c] sm:$0xf]
    %v3333 = vld [vmem:[%s3304 + $0x70] sm:$0xf]
    %v3334 = vld [vmem:[%s3304 + $0x74] sm:$0xf]
    %v3335 = vld [vmem:[%s3304 + $0x78] sm:$0xf]
    %v3336 = vld [vmem:[%s3304 + $0x7c] sm:$0xf]
    %v3337 = vld [vmem:[%s1] sm:$0xf]
    %v3338 = vld [vmem:[%s1 + $0x4] sm:$0xf]
    %v3339 = vld [vmem:[%s2] sm:$0x1]
    %v3341 = vlaneseq
    %v3342 = vshrl.u32 %v3341, 7
    %v3343 = vsub.s32 0, %v3342
    %v3344 = vrot.slane %v3339, %v3343
    %v3378 = vunpack.c.l.b16 %v3305
    %v3379 = vunpack.c.l.b16 %v3306
    %v3380 = vunpack.c.l.b16 %v3307
    %v3381 = vunpack.c.l.b16 %v3308
    %v3382 = vunpack.c.l.b16 %v3309
    %v3383 = vunpack.c.l.b16 %v3310
    %v3384 = vunpack.c.l.b16 %v3311
    %v3385 = vunpack.c.l.b16 %v3312
    %v3386 = vunpack.c.l.b16 %v3313
    %v3387 = vunpack.c.l.b16 %v3314
    %v3388 = vunpack.c.l.b16 %v3315
    %v3389 = vunpack.c.l.b16 %v3316
    %v3390 = vunpack.c.l.b16 %v3317
    %v3391 = vunpack.c.l.b16 %v3318
    %v3392 = vunpack.c.l.b16 %v3319
    %v3393 = vunpack.c.l.b16 %v3320
    %v3394 = vunpack.c.l.b16 %v3321
    %v3395 = vunpack.c.l.b16 %v3322
    %v3396 = vunpack.c.l.b16 %v3323
    %v3397 = vunpack.c.l.b16 %v3324
    %v3398 = vunpack.c.l.b16 %v3325
    %v3399 = vunpack.c.l.b16 %v3326
    %v3400 = vunpack.c.l.b16 %v3327
    %v3401 = vunpack.c.l.b16 %v3328
    %v3402 = vunpack.c.l.b16 %v3329
    %v3403 = vunpack.c.l.b16 %v3330
    %v3404 = vunpack.c.l.b16 %v3331
    %v3405 = vunpack.c.l.b16 %v3332
    %v3406 = vunpack.c.l.b16 %v3333
    %v3407 = vunpack.c.l.b16 %v3334
    %v3408 = vunpack.c.l.b16 %v3335
    %v3409 = vunpack.c.l.b16 %v3336
    %v3410 = vpack.c.b16 %v3379, %v3378
    %v3411 = vpack.c.b16 %v3381, %v3380
    %v3412 = vpack.c.b16 %v3383, %v3382
    %v3413 = vpack.c.b16 %v3385, %v3384
    %v3414 = vpack.c.b16 %v3387, %v3386
    %v3415 = vpack.c.b16 %v3389, %v3388
    %v3416 = vpack.c.b16 %v3391, %v3390
    %v3417 = vpack.c.b16 %v3393, %v3392
    %v3418 = vpack.c.b16 %v3395, %v3394
    %v3419 = vpack.c.b16 %v3397, %v3396
    %v3420 = vpack.c.b16 %v3399, %v3398
    %v3421 = vpack.c.b16 %v3401, %v3400
    %v3422 = vpack.c.b16 %v3403, %v3402
    %v3423 = vpack.c.b16 %v3405, %v3404
    %v3424 = vpack.c.b16 %v3407, %v3406
    %v3425 = vpack.c.b16 %v3409, %v3408
    %v3428 = vunpack.c.l.b16 %v3337
    %v3429 = vunpack.c.l.b16 %v3338
    %v3430 = vpack.c.b16 %v3429, %v3428
    %v3433 = vsel %vm769, %v3410, 0
    %v3436 = vsel %vm769, %v3411, 0
    %v3439 = vsel %vm769, %v3412, 0
    %v3442 = vsel %vm769, %v3413, 0
    %v3445 = vsel %vm769, %v3414, 0
    %v3448 = vsel %vm769, %v3415, 0
    %v3451 = vsel %vm769, %v3416, 0
    %v3454 = vsel %vm769, %v3417, 0
    %v3457 = vsel %vm769, %v3418, 0
    %v3460 = vsel %vm769, %v3419, 0
    %v3463 = vsel %vm769, %v3420, 0
    %v3466 = vsel %vm769, %v3421, 0
    %v3469 = vsel %vm769, %v3422, 0
    %v3472 = vsel %vm769, %v3423, 0
    %v3475 = vsel %vm769, %v3424, 0
    %v3478 = vsel %vm769, %v3425, 0
    %3480 = vmatprep.subr.bf16.mxu0 0
    %3481 = vmatpush1.bf16.msra.mxu0 %v3430
    %3482 = vmatprep.subr.bf16.mxu0 0
    %3483 = vmatpush1.bf16.msra.mxu0 0
    %3484 = vmatprep.subr.bf16.mxu0 0
    %3485 = vmatpush1.bf16.msra.mxu0 0
    %3486 = vmatprep.subr.bf16.mxu0 0
    %3487 = vmatpush1.bf16.msra.mxu0 0
    %3488 = vmatprep.subr.bf16.mxu0 0
    %3489 = vmatpush1.bf16.msra.mxu0 0
    %3490 = vmatprep.subr.bf16.mxu0 0
    %3491 = vmatpush1.bf16.msra.mxu0 0
    %3492 = vmatprep.subr.bf16.mxu0 0
    %3493 = vmatpush1.bf16.msra.mxu0 0
    %3494 = vmatprep.subr.bf16.mxu0 0
    %3495 = vmatpush1.bf16.msra.mxu0 0
    %3496 = vmatprep.subr.bf16.mxu0 0
    %3497 = vmatpush1.bf16.msra.mxu0 0
    %3498 = vmatprep.subr.bf16.mxu0 0
    %3499 = vmatpush1.bf16.msra.mxu0 0
    %3500 = vmatprep.subr.bf16.mxu0 0
    %3501 = vmatpush1.bf16.msra.mxu0 0
    %3502 = vmatprep.subr.bf16.mxu0 0
    %3503 = vmatpush1.bf16.msra.mxu0 0
    %3504 = vmatprep.subr.bf16.mxu0 0
    %3505 = vmatpush1.bf16.msra.mxu0 0
    %3506 = vmatprep.subr.bf16.mxu0 0
    %3507 = vmatpush1.bf16.msra.mxu0 0
    %3508 = vmatprep.subr.bf16.mxu0 0
    %3509 = vmatpush1.bf16.msra.mxu0 0
    %3510 = vmatprep.subr.bf16.mxu0 0
    %3511 = vmatpush1.bf16.msra.mxu0 0
    %3512 = vmatprep.mubr.bf16.mxu0 0
    %3513 = vmatmul.mubr.bf16.gmra.mrb[0].mxu0 %v3433
    %v3514 = vpop.f32.mrb[0].mxu0
    %v3515 = vadd.f32 %v3344, %v3514
    %v3516 = vpop.f32.mrb[0].mxu0
    %v3517 = vpop.f32.mrb[0].mxu0
    %v3518 = vadd.f32 %v3344, %v3517
    %v3519 = vpop.f32.mrb[0].mxu0
    %3520 = vmatprep.mubr.bf16.mxu0 0
    %3521 = vmatmul.mubr.bf16.gmra.mrb[0].mxu0 %v3436
    %v3522 = vpop.f32.mrb[0].mxu0
    %v3523 = vadd.f32 %v3344, %v3522
    %v3524 = vpop.f32.mrb[0].mxu0
    %v3525 = vpop.f32.mrb[0].mxu0
    %v3526 = vadd.f32 %v3344, %v3525
    %v3527 = vpop.f32.mrb[0].mxu0
    %3528 = vmatprep.mubr.bf16.mxu0 0
    %3529 = vmatmul.mubr.bf16.gmra.mrb[0].mxu0 %v3439
    %v3530 = vpop.f32.mrb[0].mxu0
    %v3531 = vadd.f32 %v3344, %v3530
    %v3532 = vpop.f32.mrb[0].mxu0
    %v3533 = vpop.f32.mrb[0].mxu0
    %v3534 = vadd.f32 %v3344, %v3533
    %v3535 = vpop.f32.mrb[0].mxu0
    %3536 = vmatprep.mubr.bf16.mxu0 0
    %3537 = vmatmul.mubr.bf16.gmra.mrb[0].mxu0 %v3442
    %v3538 = vpop.f32.mrb[0].mxu0
    %v3539 = vadd.f32 %v3344, %v3538
    %v3540 = vpop.f32.mrb[0].mxu0
    %v3541 = vpop.f32.mrb[0].mxu0
    %v3542 = vadd.f32 %v3344, %v3541
    %v3543 = vpop.f32.mrb[0].mxu0
    %3544 = vmatprep.mubr.bf16.mxu0 0
    %3545 = vmatmul.mubr.bf16.gmra.mrb[0].mxu0 %v3445
    %v3546 = vpop.f32.mrb[0].mxu0
    %v3547 = vadd.f32 %v3344, %v3546
    %v3548 = vpop.f32.mrb[0].mxu0
    %v3549 = vpop.f32.mrb[0].mxu0
    %v3550 = vadd.f32 %v3344, %v3549
    %v3551 = vpop.f32.mrb[0].mxu0
    %3552 = vmatprep.mubr.bf16.mxu0 0
    %3553 = vmatmul.mubr.bf16.gmra.mrb[0].mxu0 %v3448
    %v3554 = vpop.f32.mrb[0].mxu0
    %v3555 = vadd.f32 %v3344, %v3554
    %v3556 = vpop.f32.mrb[0].mxu0
    %v3557 = vpop.f32.mrb[0].mxu0
    %v3558 = vadd.f32 %v3344, %v3557
    %v3559 = vpop.f32.mrb[0].mxu0
    %3560 = vmatprep.mubr.bf16.mxu0 0
    %3561 = vmatmul.mubr.bf16.gmra.mrb[0].mxu0 %v3451
    %v3562 = vpop.f32.mrb[0].mxu0
    %v3563 = vadd.f32 %v3344, %v3562
    %v3564 = vpop.f32.mrb[0].mxu0
    %v3565 = vpop.f32.mrb[0].mxu0
    %v3566 = vadd.f32 %v3344, %v3565
    %v3567 = vpop.f32.mrb[0].mxu0
    %3568 = vmatprep.mubr.bf16.mxu0 0
    %3569 = vmatmul.mubr.bf16.gmra.mrb[0].mxu0 %v3454
    %v3570 = vpop.f32.mrb[0].mxu0
    %v3571 = vadd.f32 %v3344, %v3570
    %v3572 = vpop.f32.mrb[0].mxu0
    %v3573 = vpop.f32.mrb[0].mxu0
    %v3574 = vadd.f32 %v3344, %v3573
    %v3575 = vpop.f32.mrb[0].mxu0
    %3576 = vmatprep.mubr.bf16.mxu0 0
    %3577 = vmatmul.mubr.bf16.gmra.mrb[0].mxu0 %v3457
    %v3578 = vpop.f32.mrb[0].mxu0
    %v3579 = vadd.f32 %v3344, %v3578
    %v3580 = vpop.f32.mrb[0].mxu0
    %v3581 = vpop.f32.mrb[0].mxu0
    %v3582 = vadd.f32 %v3344, %v3581
    %v3583 = vpop.f32.mrb[0].mxu0
    %3584 = vmatprep.mubr.bf16.mxu0 0
    %3585 = vmatmul.mubr.bf16.gmra.mrb[0].mxu0 %v3460
    %v3586 = vpop.f32.mrb[0].mxu0
    %v3587 = vadd.f32 %v3344, %v3586
    %v3588 = vpop.f32.mrb[0].mxu0
    %v3589 = vpop.f32.mrb[0].mxu0
    %v3590 = vadd.f32 %v3344, %v3589
    %v3591 = vpop.f32.mrb[0].mxu0
    %3592 = vmatprep.mubr.bf16.mxu0 0
    %3593 = vmatmul.mubr.bf16.gmra.mrb[0].mxu0 %v3463
    %v3594 = vpop.f32.mrb[0].mxu0
    %v3595 = vadd.f32 %v3344, %v3594
    %v3596 = vpop.f32.mrb[0].mxu0
    %v3597 = vpop.f32.mrb[0].mxu0
    %v3598 = vadd.f32 %v3344, %v3597
    %v3599 = vpop.f32.mrb[0].mxu0
    %3600 = vmatprep.mubr.bf16.mxu0 0
    %3601 = vmatmul.mubr.bf16.gmra.mrb[0].mxu0 %v3466
    %v3602 = vpop.f32.mrb[0].mxu0
    %v3603 = vadd.f32 %v3344, %v3602
    %v3604 = vpop.f32.mrb[0].mxu0
    %v3605 = vpop.f32.mrb[0].mxu0
    %v3606 = vadd.f32 %v3344, %v3605
    %v3607 = vpop.f32.mrb[0].mxu0
    %3608 = vmatprep.mubr.bf16.mxu0 0
    %3609 = vmatmul.mubr.bf16.gmra.mrb[0].mxu0 %v3469
    %v3610 = vpop.f32.mrb[0].mxu0
    %v3611 = vadd.f32 %v3344, %v3610
    %v3612 = vpop.f32.mrb[0].mxu0
    %v3613 = vpop.f32.mrb[0].mxu0
    %v3614 = vadd.f32 %v3344, %v3613
    %v3615 = vpop.f32.mrb[0].mxu0
    %3616 = vmatprep.mubr.bf16.mxu0 0
    %3617 = vmatmul.mubr.bf16.gmra.mrb[0].mxu0 %v3472
    %v3618 = vpop.f32.mrb[0].mxu0
    %v3619 = vadd.f32 %v3344, %v3618
    %v3620 = vpop.f32.mrb[0].mxu0
    %v3621 = vpop.f32.mrb[0].mxu0
    %v3622 = vadd.f32 %v3344, %v3621
    %v3623 = vpop.f32.mrb[0].mxu0
    %3624 = vmatprep.mubr.bf16.mxu0 0
    %3625 = vmatmul.mubr.bf16.gmra.mrb[0].mxu0 %v3475
    %v3626 = vpop.f32.mrb[0].mxu0
    %v3627 = vadd.f32 %v3344, %v3626
    %v3628 = vpop.f32.mrb[0].mxu0
    %v3629 = vpop.f32.mrb[0].mxu0
    %v3630 = vadd.f32 %v3344, %v3629
    %v3631 = vpop.f32.mrb[0].mxu0
    %3632 = vmatprep.mubr.bf16.mxu0 0
    %3633 = vmatmul.mubr.bf16.gmra.mrb[0].mxu0 %v3478
    %v3634 = vpop.f32.mrb[0].mxu0
    %v3635 = vadd.f32 %v3344, %v3634
    %v3636 = vpop.f32.mrb[0].mxu0
    %v3637 = vpop.f32.mrb[0].mxu0
    %v3638 = vadd.f32 %v3344, %v3637
    %v3639 = vpop.f32.mrb[0].mxu0
    %3640 = vdwg.mxu0
    %v3641 = vmax.f32 %v3515, 0.0
    %v3642 = vmax.f32 %v3518, 0.0
    %v3643 = vmax.f32 %v3523, 0.0
    %v3644 = vmax.f32 %v3526, 0.0
    %v3645 = vmax.f32 %v3531, 0.0
    %v3646 = vmax.f32 %v3534, 0.0
    %v3647 = vmax.f32 %v3539, 0.0
    %v3648 = vmax.f32 %v3542, 0.0
    %v3649 = vmax.f32 %v3547, 0.0
    %v3650 = vmax.f32 %v3550, 0.0
    %v3651 = vmax.f32 %v3555, 0.0
    %v3652 = vmax.f32 %v3558, 0.0
    %v3653 = vmax.f32 %v3563, 0.0
    %v3654 = vmax.f32 %v3566, 0.0
    %v3655 = vmax.f32 %v3571, 0.0
    %v3656 = vmax.f32 %v3574, 0.0
    %v3657 = vmax.f32 %v3579, 0.0
    %v3658 = vmax.f32 %v3582, 0.0
    %v3659 = vmax.f32 %v3587, 0.0
    %v3660 = vmax.f32 %v3590, 0.0
    %v3661 = vmax.f32 %v3595, 0.0
    %v3662 = vmax.f32 %v3598, 0.0
    %v3663 = vmax.f32 %v3603, 0.0
    %v3664 = vmax.f32 %v3606, 0.0
    %v3665 = vmax.f32 %v3611, 0.0
    %v3666 = vmax.f32 %v3614, 0.0
    %v3667 = vmax.f32 %v3619, 0.0
    %v3668 = vmax.f32 %v3622, 0.0
    %v3669 = vmax.f32 %v3627, 0.0
    %v3670 = vmax.f32 %v3630, 0.0
    %v3671 = vmax.f32 %v3635, 0.0
    %v3672 = vmax.f32 %v3638, 0.0
    %v3673 = vpack.c.bf16 %v3642, %v3641
    %v3674 = vpack.c.bf16 %v3644, %v3643
    %v3675 = vpack.c.bf16 %v3646, %v3645
    %v3676 = vpack.c.bf16 %v3648, %v3647
    %v3677 = vpack.c.bf16 %v3650, %v3649
    %v3678 = vpack.c.bf16 %v3652, %v3651
    %v3679 = vpack.c.bf16 %v3654, %v3653
    %v3680 = vpack.c.bf16 %v3656, %v3655
    %v3681 = vpack.c.bf16 %v3658, %v3657
    %v3682 = vpack.c.bf16 %v3660, %v3659
    %v3683 = vpack.c.bf16 %v3662, %v3661
    %v3684 = vpack.c.bf16 %v3664, %v3663
    %v3685 = vpack.c.bf16 %v3666, %v3665
    %v3686 = vpack.c.bf16 %v3668, %v3667
    %v3687 = vpack.c.bf16 %v3670, %v3669
    %v3688 = vpack.c.bf16 %v3672, %v3671
    %3705 = vrot.lane.b32.xlu0 %v3673, 8
    %v3706 = vpop.permute.xlu0 %3705
    %3707 = vrot.lane.b32.xlu0 %v3674, 8
    %v3708 = vpop.permute.xlu0 %3707
    %3709 = vrot.lane.b32.xlu0 %v3675, 8
    %v3710 = vpop.permute.xlu0 %3709
    %3711 = vrot.lane.b32.xlu0 %v3676, 8
    %v3712 = vpop.permute.xlu0 %3711
    %3713 = vrot.lane.b32.xlu0 %v3677, 8
    %v3714 = vpop.permute.xlu0 %3713
    %3715 = vrot.lane.b32.xlu0 %v3678, 8
    %v3716 = vpop.permute.xlu0 %3715
    %3717 = vrot.lane.b32.xlu0 %v3679, 8
    %v3718 = vpop.permute.xlu0 %3717
    %3719 = vrot.lane.b32.xlu0 %v3680, 8
    %v3720 = vpop.permute.xlu0 %3719
    %3721 = vrot.lane.b32.xlu0 %v3681, 8
    %v3722 = vpop.permute.xlu0 %3721
    %3723 = vrot.lane.b32.xlu0 %v3682, 8
    %v3724 = vpop.permute.xlu0 %3723
    %3725 = vrot.lane.b32.xlu0 %v3683, 8
    %v3726 = vpop.permute.xlu0 %3725
    %3727 = vrot.lane.b32.xlu0 %v3684, 8
    %v3728 = vpop.permute.xlu0 %3727
    %3729 = vrot.lane.b32.xlu0 %v3685, 8
    %v3730 = vpop.permute.xlu0 %3729
    %3731 = vrot.lane.b32.xlu0 %v3686, 8
    %v3732 = vpop.permute.xlu0 %3731
    %3733 = vrot.lane.b32.xlu0 %v3687, 8
    %v3734 = vpop.permute.xlu0 %3733
    %3735 = vrot.lane.b32.xlu0 %v3688, 8
    %v3736 = vpop.permute.xlu0 %3735
    %3753 = vst.msk [vmem:[#allocation2 + $0x8] sm:$0xff] %vm1091, %v3706
    %3754 = vst.msk [vmem:[#allocation2 + $0x10] sm:$0xff] %vm1091, %v3708
    %3755 = vst.msk [vmem:[#allocation2 + $0x18] sm:$0xff] %vm1091, %v3710
    %3756 = vst.msk [vmem:[#allocation2 + $0x20] sm:$0xff] %vm1091, %v3712
    %3757 = vst.msk [vmem:[#allocation2 + $0x28] sm:$0xff] %vm1091, %v3714
    %3758 = vst.msk [vmem:[#allocation2 + $0x30] sm:$0xff] %vm1091, %v3716
    %3759 = vst.msk [vmem:[#allocation2 + $0x38] sm:$0xff] %vm1091, %v3718
    %3760 = vst.msk [vmem:[#allocation2 + $0x40] sm:$0xff] %vm1091, %v3720
    %3761 = vst.msk [vmem:[#allocation2 + $0x48] sm:$0xff] %vm1091, %v3722
    %3762 = vst.msk [vmem:[#allocation2 + $0x50] sm:$0xff] %vm1091, %v3724
    %3763 = vst.msk [vmem:[#allocation2 + $0x58] sm:$0xff] %vm1091, %v3726
    %3764 = vst.msk [vmem:[#allocation2 + $0x60] sm:$0xff] %vm1091, %v3728
    %3765 = vst.msk [vmem:[#allocation2 + $0x68] sm:$0xff] %vm1091, %v3730
    %3766 = vst.msk [vmem:[#allocation2 + $0x70] sm:$0xff] %vm1091, %v3732
    %3767 = vst.msk [vmem:[#allocation2 + $0x78] sm:$0xff] %vm1091, %v3734
    %3768 = vst.msk [vmem:[#allocation2 + $0x80] sm:$0xff] %vm1091, %v3736
    %v3769 = vld [vmem:[#allocation2] sm:$0x80]
    %v3770 = vld [vmem:[#allocation2 + $0x8] sm:$0xff]
    %v3771 = vld [vmem:[#allocation2 + $0x10] sm:$0xff]
    %v3772 = vld [vmem:[#allocation2 + $0x18] sm:$0xff]
    %v3773 = vld [vmem:[#allocation2 + $0x20] sm:$0xff]
    %v3774 = vld [vmem:[#allocation2 + $0x28] sm:$0xff]
    %v3775 = vld [vmem:[#allocation2 + $0x30] sm:$0xff]
    %v3776 = vld [vmem:[#allocation2 + $0x38] sm:$0xff]
    %v3777 = vld [vmem:[#allocation2 + $0x40] sm:$0xff]
    %v3778 = vld [vmem:[#allocation2 + $0x48] sm:$0xff]
    %v3779 = vld [vmem:[#allocation2 + $0x50] sm:$0xff]
    %v3780 = vld [vmem:[#allocation2 + $0x58] sm:$0xff]
    %v3781 = vld [vmem:[#allocation2 + $0x60] sm:$0xff]
    %v3782 = vld [vmem:[#allocation2 + $0x68] sm:$0xff]
    %v3783 = vld [vmem:[#allocation2 + $0x70] sm:$0xff]
    %v3784 = vld [vmem:[#allocation2 + $0x78] sm:$0xff]
    %v3785 = vld [vmem:[#allocation2 + $0x80] sm:$0xff]
    %v3786 = vld [vmem:[#allocation2 + $0x88] sm:$0x1]
    %v3787 = vsel %vm1366, %v3769, 0
    %v3788 = vsel %vm1367, %v3770, 0
    %v3789 = vsel %vm1368, %v3771, 0
    %v3790 = vsel %vm1369, %v3772, 0
    %v3791 = vsel %vm1370, %v3773, 0
    %v3792 = vsel %vm1371, %v3774, 0
    %v3793 = vsel %vm1372, %v3775, 0
    %v3794 = vsel %vm1373, %v3776, 0
    %v3795 = vsel %vm1374, %v3777, 0
    %v3796 = vsel %vm1375, %v3778, 0
    %v3797 = vsel %vm1376, %v3779, 0
    %v3798 = vsel %vm1377, %v3780, 0
    %v3799 = vsel %vm1378, %v3781, 0
    %v3800 = vsel %vm1379, %v3782, 0
    %v3801 = vsel %vm1380, %v3783, 0
    %v3802 = vsel %vm1381, %v3784, 0
    %v3803 = vsel %vm1382, %v3785, 0
    %v3805 = vshrl.u32 %v3787, 16
    %v3807 = vrot.slane %v3805, 7
    %v3809 = vshrl.u32 %v3788, 16
    %v3811 = vrot.slane %v3809, 7
    %v3812 = vshll.u32 %v3788, 16
    %v3814 = vor.u32 %v3811, %v3812
    %v3815 = vsel %vm1400, %v3807, %v3814
    %v3817 = vshrl.u32 %v3789, 16
    %v3819 = vrot.slane %v3817, 7
    %v3820 = vshll.u32 %v3789, 16
    %v3822 = vor.u32 %v3819, %v3820
    %v3823 = vsel %vm1400, %v3811, %v3822
    %v3825 = vshrl.u32 %v3790, 16
    %v3827 = vrot.slane %v3825, 7
    %v3828 = vshll.u32 %v3790, 16
    %v3830 = vor.u32 %v3827, %v3828
    %v3831 = vsel %vm1400, %v3819, %v3830
    %v3833 = vshrl.u32 %v3791, 16
    %v3835 = vrot.slane %v3833, 7
    %v3836 = vshll.u32 %v3791, 16
    %v3838 = vor.u32 %v3835, %v3836
    %v3839 = vsel %vm1400, %v3827, %v3838
    %v3841 = vshrl.u32 %v3792, 16
    %v3843 = vrot.slane %v3841, 7
    %v3844 = vshll.u32 %v3792, 16
    %v3846 = vor.u32 %v3843, %v3844
    %v3847 = vsel %vm1400, %v3835, %v3846
    %v3849 = vshrl.u32 %v3793, 16
    %v3851 = vrot.slane %v3849, 7
    %v3852 = vshll.u32 %v3793, 16
    %v3854 = vor.u32 %v3851, %v3852
    %v3855 = vsel %vm1400, %v3843, %v3854
    %v3857 = vshrl.u32 %v3794, 16
    %v3859 = vrot.slane %v3857, 7
    %v3860 = vshll.u32 %v3794, 16
    %v3862 = vor.u32 %v3859, %v3860
    %v3863 = vsel %vm1400, %v3851, %v3862
    %v3865 = vshrl.u32 %v3795, 16
    %v3867 = vrot.slane %v3865, 7
    %v3868 = vshll.u32 %v3795, 16
    %v3870 = vor.u32 %v3867, %v3868
    %v3871 = vsel %vm1400, %v3859, %v3870
    %v3873 = vshrl.u32 %v3796, 16
    %v3875 = vrot.slane %v3873, 7
    %v3876 = vshll.u32 %v3796, 16
    %v3878 = vor.u32 %v3875, %v3876
    %v3879 = vsel %vm1400, %v3867, %v3878
    %v3881 = vshrl.u32 %v3797, 16
    %v3883 = vrot.slane %v3881, 7
    %v3884 = vshll.u32 %v3797, 16
    %v3886 = vor.u32 %v3883, %v3884
    %v3887 = vsel %vm1400, %v3875, %v3886
    %v3889 = vshrl.u32 %v3798, 16
    %v3891 = vrot.slane %v3889, 7
    %v3892 = vshll.u32 %v3798, 16
    %v3894 = vor.u32 %v3891, %v3892
    %v3895 = vsel %vm1400, %v3883, %v3894
    %v3897 = vshrl.u32 %v3799, 16
    %v3899 = vrot.slane %v3897, 7
    %v3900 = vshll.u32 %v3799, 16
    %v3902 = vor.u32 %v3899, %v3900
    %v3903 = vsel %vm1400, %v3891, %v3902
    %v3905 = vshrl.u32 %v3800, 16
    %v3907 = vrot.slane %v3905, 7
    %v3908 = vshll.u32 %v3800, 16
    %v3910 = vor.u32 %v3907, %v3908
    %v3911 = vsel %vm1400, %v3899, %v3910
    %v3913 = vshrl.u32 %v3801, 16
    %v3915 = vrot.slane %v3913, 7
    %v3916 = vshll.u32 %v3801, 16
    %v3918 = vor.u32 %v3915, %v3916
    %v3919 = vsel %vm1400, %v3907, %v3918
    %v3921 = vshrl.u32 %v3802, 16
    %v3923 = vrot.slane %v3921, 7
    %v3924 = vshll.u32 %v3802, 16
    %v3926 = vor.u32 %v3923, %v3924
    %v3927 = vsel %vm1400, %v3915, %v3926
    %v3929 = vshrl.u32 %v3803, 16
    %v3931 = vrot.slane %v3929, 7
    %v3932 = vshll.u32 %v3803, 16
    %v3934 = vor.u32 %v3931, %v3932
    %v3935 = vsel %vm1400, %v3923, %v3934
    %3936 = vrot.lane.b32.xlu0 %v3815, 120
    %v3937 = vpop.permute.xlu0 %3936
    %3938 = vrot.lane.b32.xlu0 %v3823, 120
    %v3939 = vpop.permute.xlu0 %3938
    %3940 = vrot.lane.b32.xlu0 %v3831, 120
    %v3941 = vpop.permute.xlu0 %3940
    %3942 = vrot.lane.b32.xlu0 %v3839, 120
    %v3943 = vpop.permute.xlu0 %3942
    %3944 = vrot.lane.b32.xlu0 %v3847, 120
    %v3945 = vpop.permute.xlu0 %3944
    %3946 = vrot.lane.b32.xlu0 %v3855, 120
    %v3947 = vpop.permute.xlu0 %3946
    %3948 = vrot.lane.b32.xlu0 %v3863, 120
    %v3949 = vpop.permute.xlu0 %3948
    %3950 = vrot.lane.b32.xlu0 %v3871, 120
    %v3951 = vpop.permute.xlu0 %3950
    %3952 = vrot.lane.b32.xlu0 %v3879, 120
    %v3953 = vpop.permute.xlu0 %3952
    %3954 = vrot.lane.b32.xlu0 %v3887, 120
    %v3955 = vpop.permute.xlu0 %3954
    %3956 = vrot.lane.b32.xlu0 %v3895, 120
    %v3957 = vpop.permute.xlu0 %3956
    %3958 = vrot.lane.b32.xlu0 %v3903, 120
    %v3959 = vpop.permute.xlu0 %3958
    %3960 = vrot.lane.b32.xlu0 %v3911, 120
    %v3961 = vpop.permute.xlu0 %3960
    %3962 = vrot.lane.b32.xlu0 %v3919, 120
    %v3963 = vpop.permute.xlu0 %3962
    %3964 = vrot.lane.b32.xlu0 %v3927, 120
    %v3965 = vpop.permute.xlu0 %3964
    %3966 = vrot.lane.b32.xlu0 %v3935, 120
    %v3967 = vpop.permute.xlu0 %3966
    %3984 = vst.msk [vmem:[#allocation2 + $0x8] sm:$0xff] %vm1581, %v3937
    %3985 = vst.msk [vmem:[#allocation2 + $0x10] sm:$0xff] %vm1581, %v3939
    %3986 = vst.msk [vmem:[#allocation2 + $0x18] sm:$0xff] %vm1581, %v3941
    %3987 = vst.msk [vmem:[#allocation2 + $0x20] sm:$0xff] %vm1581, %v3943
    %3988 = vst.msk [vmem:[#allocation2 + $0x28] sm:$0xff] %vm1581, %v3945
    %3989 = vst.msk [vmem:[#allocation2 + $0x30] sm:$0xff] %vm1581, %v3947
    %3990 = vst.msk [vmem:[#allocation2 + $0x38] sm:$0xff] %vm1581, %v3949
    %3991 = vst.msk [vmem:[#allocation2 + $0x40] sm:$0xff] %vm1581, %v3951
    %3992 = vst.msk [vmem:[#allocation2 + $0x48] sm:$0xff] %vm1581, %v3953
    %3993 = vst.msk [vmem:[#allocation2 + $0x50] sm:$0xff] %vm1581, %v3955
    %3994 = vst.msk [vmem:[#allocation2 + $0x58] sm:$0xff] %vm1581, %v3957
    %3995 = vst.msk [vmem:[#allocation2 + $0x60] sm:$0xff] %vm1581, %v3959
    %3996 = vst.msk [vmem:[#allocation2 + $0x68] sm:$0xff] %vm1581, %v3961
    %3997 = vst.msk [vmem:[#allocation2 + $0x70] sm:$0xff] %vm1581, %v3963
    %3998 = vst.msk [vmem:[#allocation2 + $0x78] sm:$0xff] %vm1581, %v3965
    %3999 = vst.msk [vmem:[#allocation2 + $0x80] sm:$0xff] %vm1581, %v3967
    %v4000 = vsel %vm1837, %v3770, 0
    %v4001 = vsel %vm1838, %v3771, 0
    %v4002 = vsel %vm1839, %v3772, 0
    %v4003 = vsel %vm1840, %v3773, 0
    %v4004 = vsel %vm1841, %v3774, 0
    %v4005 = vsel %vm1842, %v3775, 0
    %v4006 = vsel %vm1843, %v3776, 0
    %v4007 = vsel %vm1844, %v3777, 0
    %v4008 = vsel %vm1845, %v3778, 0
    %v4009 = vsel %vm1846, %v3779, 0
    %v4010 = vsel %vm1847, %v3780, 0
    %v4011 = vsel %vm1848, %v3781, 0
    %v4012 = vsel %vm1849, %v3782, 0
    %v4013 = vsel %vm1850, %v3783, 0
    %v4014 = vsel %vm1851, %v3784, 0
    %v4015 = vsel %vm1852, %v3785, 0
    %v4016 = vsel %vm1853, %v3786, 0
    %v4018 = vshrl.u32 %v4000, 16
    %v4020 = vshll.u32 %v4000, 16
    %v4022 = vrot.slane %v4020, 1
    %v4023 = vor.u32 %v4018, %v4022
    %v4025 = vshll.u32 %v4001, 16
    %v4027 = vrot.slane %v4025, 1
    %v4028 = vsel %vm1238, %v4023, %v4027
    %v4029 = vshrl.u32 %v4001, 16
    %v4031 = vor.u32 %v4029, %v4027
    %v4033 = vshll.u32 %v4002, 16
    %v4035 = vrot.slane %v4033, 1
    %v4036 = vsel %vm1238, %v4031, %v4035
    %v4037 = vshrl.u32 %v4002, 16
    %v4039 = vor.u32 %v4037, %v4035
    %v4041 = vshll.u32 %v4003, 16
    %v4043 = vrot.slane %v4041, 1
    %v4044 = vsel %vm1238, %v4039, %v4043
    %v4045 = vshrl.u32 %v4003, 16
    %v4047 = vor.u32 %v4045, %v4043
    %v4049 = vshll.u32 %v4004, 16
    %v4051 = vrot.slane %v4049, 1
    %v4052 = vsel %vm1238, %v4047, %v4051
    %v4053 = vshrl.u32 %v4004, 16
    %v4055 = vor.u32 %v4053, %v4051
    %v4057 = vshll.u32 %v4005, 16
    %v4059 = vrot.slane %v4057, 1
    %v4060 = vsel %vm1238, %v4055, %v4059
    %v4061 = vshrl.u32 %v4005, 16
    %v4063 = vor.u32 %v4061, %v4059
    %v4065 = vshll.u32 %v4006, 16
    %v4067 = vrot.slane %v4065, 1
    %v4068 = vsel %vm1238, %v4063, %v4067
    %v4069 = vshrl.u32 %v4006, 16
    %v4071 = vor.u32 %v4069, %v4067
    %v4073 = vshll.u32 %v4007, 16
    %v4075 = vrot.slane %v4073, 1
    %v4076 = vsel %vm1238, %v4071, %v4075
    %v4077 = vshrl.u32 %v4007, 16
    %v4079 = vor.u32 %v4077, %v4075
    %v4081 = vshll.u32 %v4008, 16
    %v4083 = vrot.slane %v4081, 1
    %v4084 = vsel %vm1238, %v4079, %v4083
    %v4085 = vshrl.u32 %v4008, 16
    %v4087 = vor.u32 %v4085, %v4083
    %v4089 = vshll.u32 %v4009, 16
    %v4091 = vrot.slane %v4089, 1
    %v4092 = vsel %vm1238, %v4087, %v4091
    %v4093 = vshrl.u32 %v4009, 16
    %v4095 = vor.u32 %v4093, %v4091
    %v4097 = vshll.u32 %v4010, 16
    %v4099 = vrot.slane %v4097, 1
    %v4100 = vsel %vm1238, %v4095, %v4099
    %v4101 = vshrl.u32 %v4010, 16
    %v4103 = vor.u32 %v4101, %v4099
    %v4105 = vshll.u32 %v4011, 16
    %v4107 = vrot.slane %v4105, 1
    %v4108 = vsel %vm1238, %v4103, %v4107
    %v4109 = vshrl.u32 %v4011, 16
    %v4111 = vor.u32 %v4109, %v4107
    %v4113 = vshll.u32 %v4012, 16
    %v4115 = vrot.slane %v4113, 1
    %v4116 = vsel %vm1238, %v4111, %v4115
    %v4117 = vshrl.u32 %v4012, 16
    %v4119 = vor.u32 %v4117, %v4115
    %v4121 = vshll.u32 %v4013, 16
    %v4123 = vrot.slane %v4121, 1
    %v4124 = vsel %vm1238, %v4119, %v4123
    %v4125 = vshrl.u32 %v4013, 16
    %v4127 = vor.u32 %v4125, %v4123
    %v4129 = vshll.u32 %v4014, 16
    %v4131 = vrot.slane %v4129, 1
    %v4132 = vsel %vm1238, %v4127, %v4131
    %v4133 = vshrl.u32 %v4014, 16
    %v4135 = vor.u32 %v4133, %v4131
    %v4137 = vshll.u32 %v4015, 16
    %v4139 = vrot.slane %v4137, 1
    %v4140 = vsel %vm1238, %v4135, %v4139
    %v4141 = vshrl.u32 %v4015, 16
    %v4143 = vor.u32 %v4141, %v4139
    %v4145 = vshll.u32 %v4016, 16
    %v4147 = vrot.slane %v4145, 1
    %v4148 = vsel %vm1238, %v4143, %v4147
    %4149 = vrot.lane.b32.xlu0 %v4028, 8
    %v4150 = vpop.permute.xlu0 %4149
    %4151 = vrot.lane.b32.xlu0 %v4036, 8
    %v4152 = vpop.permute.xlu0 %4151
    %4153 = vrot.lane.b32.xlu0 %v4044, 8
    %v4154 = vpop.permute.xlu0 %4153
    %4155 = vrot.lane.b32.xlu0 %v4052, 8
    %v4156 = vpop.permute.xlu0 %4155
    %4157 = vrot.lane.b32.xlu0 %v4060, 8
    %v4158 = vpop.permute.xlu0 %4157
    %4159 = vrot.lane.b32.xlu0 %v4068, 8
    %v4160 = vpop.permute.xlu0 %4159
    %4161 = vrot.lane.b32.xlu0 %v4076, 8
    %v4162 = vpop.permute.xlu0 %4161
    %4163 = vrot.lane.b32.xlu0 %v4084, 8
    %v4164 = vpop.permute.xlu0 %4163
    %4165 = vrot.lane.b32.xlu0 %v4092, 8
    %v4166 = vpop.permute.xlu0 %4165
    %4167 = vrot.lane.b32.xlu0 %v4100, 8
    %v4168 = vpop.permute.xlu0 %4167
    %4169 = vrot.lane.b32.xlu0 %v4108, 8
    %v4170 = vpop.permute.xlu0 %4169
    %4171 = vrot.lane.b32.xlu0 %v4116, 8
    %v4172 = vpop.permute.xlu0 %4171
    %4173 = vrot.lane.b32.xlu0 %v4124, 8
    %v4174 = vpop.permute.xlu0 %4173
    %4175 = vrot.lane.b32.xlu0 %v4132, 8
    %v4176 = vpop.permute.xlu0 %4175
    %4177 = vrot.lane.b32.xlu0 %v4140, 8
    %v4178 = vpop.permute.xlu0 %4177
    %4179 = vrot.lane.b32.xlu0 %v4148, 8
    %v4180 = vpop.permute.xlu0 %4179
    %4197 = vst.msk [vmem:[#allocation2 + $0x8] sm:$0xff] %vm2051, %v4150
    %4198 = vst.msk [vmem:[#allocation2 + $0x10] sm:$0xff] %vm2051, %v4152
    %4199 = vst.msk [vmem:[#allocation2 + $0x18] sm:$0xff] %vm2051, %v4154
    %4200 = vst.msk [vmem:[#allocation2 + $0x20] sm:$0xff] %vm2051, %v4156
    %4201 = vst.msk [vmem:[#allocation2 + $0x28] sm:$0xff] %vm2051, %v4158
    %4202 = vst.msk [vmem:[#allocation2 + $0x30] sm:$0xff] %vm2051, %v4160
    %4203 = vst.msk [vmem:[#allocation2 + $0x38] sm:$0xff] %vm2051, %v4162
    %4204 = vst.msk [vmem:[#allocation2 + $0x40] sm:$0xff] %vm2051, %v4164
    %4205 = vst.msk [vmem:[#allocation2 + $0x48] sm:$0xff] %vm2051, %v4166
    %4206 = vst.msk [vmem:[#allocation2 + $0x50] sm:$0xff] %vm2051, %v4168
    %4207 = vst.msk [vmem:[#allocation2 + $0x58] sm:$0xff] %vm2051, %v4170
    %4208 = vst.msk [vmem:[#allocation2 + $0x60] sm:$0xff] %vm2051, %v4172
    %4209 = vst.msk [vmem:[#allocation2 + $0x68] sm:$0xff] %vm2051, %v4174
    %4210 = vst.msk [vmem:[#allocation2 + $0x70] sm:$0xff] %vm2051, %v4176
    %4211 = vst.msk [vmem:[#allocation2 + $0x78] sm:$0xff] %vm2051, %v4178
    %4212 = vst.msk [vmem:[#allocation2 + $0x80] sm:$0xff] %vm2051, %v4180
    %v4213 = vld [vmem:[#allocation2] sm:$0xff]
    %v4214 = vld [vmem:[#allocation2 + $0x8] sm:$0xff]
    %v4215 = vld [vmem:[#allocation2 + $0x10] sm:$0xff]
    %v4216 = vld [vmem:[#allocation2 + $0x18] sm:$0xff]
    %v4217 = vld [vmem:[#allocation2 + $0x20] sm:$0xff]
    %v4218 = vld [vmem:[#allocation2 + $0x28] sm:$0xff]
    %v4219 = vld [vmem:[#allocation2 + $0x30] sm:$0xff]
    %v4220 = vld [vmem:[#allocation2 + $0x38] sm:$0xff]
    %v4221 = vld [vmem:[#allocation2 + $0x40] sm:$0xff]
    %v4222 = vld [vmem:[#allocation2 + $0x48] sm:$0xff]
    %v4223 = vld [vmem:[#allocation2 + $0x50] sm:$0xff]
    %v4224 = vld [vmem:[#allocation2 + $0x58] sm:$0xff]
    %v4225 = vld [vmem:[#allocation2 + $0x60] sm:$0xff]
    %v4226 = vld [vmem:[#allocation2 + $0x68] sm:$0xff]
    %v4227 = vld [vmem:[#allocation2 + $0x70] sm:$0xff]
    %v4228 = vld [vmem:[#allocation2 + $0x78] sm:$0xff]
    %v4229 = vld [vmem:[%s3] sm:$0xf]
    %v4230 = vld [vmem:[%s3 + $0x4] sm:$0xf]
    %v4231 = vld [vmem:[%s3 + $0x8] sm:$0xf]
    %v4232 = vld [vmem:[#allocation2 + $0x80] sm:$0xff]
    %v4233 = vld [vmem:[%s2088] sm:$0xf]
    %v4234 = vld [vmem:[%s2088 + $0x4] sm:$0xf]
    %v4235 = vld [vmem:[%s2088 + $0x8] sm:$0xf]
    %v4239 = vunpack.c.l.b16 %v4233
    %v4240 = vunpack.c.l.b16 %v4234
    %v4241 = vunpack.c.l.b16 %v4235
    %v4242 = vpack.c.b16 %v4240, %v4239
    %v4243 = vpack.c.b16 %v4241, %v4241
    %v4246 = vsel %vm639, %v4214, 0
    %v4249 = vsel %vm639, %v4215, 0
    %v4252 = vsel %vm639, %v4216, 0
    %v4255 = vsel %vm639, %v4217, 0
    %v4258 = vsel %vm639, %v4218, 0
    %v4261 = vsel %vm639, %v4219, 0
    %v4264 = vsel %vm639, %v4220, 0
    %v4267 = vsel %vm639, %v4221, 0
    %v4270 = vsel %vm639, %v4222, 0
    %v4273 = vsel %vm639, %v4223, 0
    %v4276 = vsel %vm639, %v4224, 0
    %v4279 = vsel %vm639, %v4225, 0
    %v4282 = vsel %vm639, %v4226, 0
    %v4285 = vsel %vm639, %v4227, 0
    %v4288 = vsel %vm639, %v4228, 0
    %v4291 = vsel %vm639, %v4232, 0
    %v4294 = vsel %vm2149, %v4243, 0
    %4296 = vmatprep.subr.bf16.mxu0 0
    %4297 = vmatpush1.bf16.msra.mxu0 %v4242
    %4298 = vmatprep.subr.bf16.mxu0 0
    %4299 = vmatpush1.bf16.msra.mxu0 %v4294
    %4300 = vmatprep.subr.bf16.mxu0 0
    %4301 = vmatpush1.bf16.msra.mxu0 0
    %4302 = vmatprep.subr.bf16.mxu0 0
    %4303 = vmatpush1.bf16.msra.mxu0 0
    %4304 = vmatprep.subr.bf16.mxu0 0
    %4305 = vmatpush1.bf16.msra.mxu0 0
    %4306 = vmatprep.subr.bf16.mxu0 0
    %4307 = vmatpush1.bf16.msra.mxu0 0
    %4308 = vmatprep.subr.bf16.mxu0 0
    %4309 = vmatpush1.bf16.msra.mxu0 0
    %4310 = vmatprep.subr.bf16.mxu0 0
    %4311 = vmatpush1.bf16.msra.mxu0 0
    %4312 = vmatprep.subr.bf16.mxu0 0
    %4313 = vmatpush1.bf16.msra.mxu0 0
    %4314 = vmatprep.subr.bf16.mxu0 0
    %4315 = vmatpush1.bf16.msra.mxu0 0
    %4316 = vmatprep.subr.bf16.mxu0 0
    %4317 = vmatpush1.bf16.msra.mxu0 0
    %4318 = vmatprep.subr.bf16.mxu0 0
    %4319 = vmatpush1.bf16.msra.mxu0 0
    %4320 = vmatprep.subr.bf16.mxu0 0
    %4321 = vmatpush1.bf16.msra.mxu0 0
    %4322 = vmatprep.subr.bf16.mxu0 0
    %4323 = vmatpush1.bf16.msra.mxu0 0
    %4324 = vmatprep.subr.bf16.mxu0 0
    %4325 = vmatpush1.bf16.msra.mxu0 0
    %4326 = vmatprep.subr.bf16.mxu0 0
    %4327 = vmatpush1.bf16.msra.mxu0 0
    %4328 = vmatprep.mubr.bf16.mxu0 0
    %4329 = vmatmul.mubr.bf16.gmra.mrb[0].mxu0 %v4246
    %v4330 = vpop.f32.mrb[0].mxu0
    %v4331 = vadd.f32 0.0, %v4330
    %v4332 = vpop.f32.mrb[0].mxu0
    %v4333 = vpop.f32.mrb[0].mxu0
    %v4334 = vadd.f32 0.0, %v4333
    %v4335 = vpop.f32.mrb[0].mxu0
    %4336 = vmatprep.mubr.bf16.mxu0 0
    %4337 = vmatmul.mubr.bf16.gmra.mrb[0].mxu0 %v4249
    %v4338 = vpop.f32.mrb[0].mxu0
    %v4339 = vadd.f32 0.0, %v4338
    %v4340 = vpop.f32.mrb[0].mxu0
    %v4341 = vpop.f32.mrb[0].mxu0
    %v4342 = vadd.f32 0.0, %v4341
    %v4343 = vpop.f32.mrb[0].mxu0
    %4344 = vmatprep.mubr.bf16.mxu0 0
    %4345 = vmatmul.mubr.bf16.gmra.mrb[0].mxu0 %v4252
    %v4346 = vpop.f32.mrb[0].mxu0
    %v4347 = vadd.f32 0.0, %v4346
    %v4348 = vpop.f32.mrb[0].mxu0
    %v4349 = vpop.f32.mrb[0].mxu0
    %v4350 = vadd.f32 0.0, %v4349
    %v4351 = vpop.f32.mrb[0].mxu0
    %4352 = vmatprep.mubr.bf16.mxu0 0
    %4353 = vmatmul.mubr.bf16.gmra.mrb[0].mxu0 %v4255
    %v4354 = vpop.f32.mrb[0].mxu0
    %v4355 = vadd.f32 0.0, %v4354
    %v4356 = vpop.f32.mrb[0].mxu0
    %v4357 = vpop.f32.mrb[0].mxu0
    %v4358 = vadd.f32 0.0, %v4357
    %v4359 = vpop.f32.mrb[0].mxu0
    %4360 = vmatprep.mubr.bf16.mxu0 0
    %4361 = vmatmul.mubr.bf16.gmra.mrb[0].mxu0 %v4258
    %v4362 = vpop.f32.mrb[0].mxu0
    %v4363 = vadd.f32 0.0, %v4362
    %v4364 = vpop.f32.mrb[0].mxu0
    %v4365 = vpop.f32.mrb[0].mxu0
    %v4366 = vadd.f32 0.0, %v4365
    %v4367 = vpop.f32.mrb[0].mxu0
    %4368 = vmatprep.mubr.bf16.mxu0 0
    %4369 = vmatmul.mubr.bf16.gmra.mrb[0].mxu0 %v4261
    %v4370 = vpop.f32.mrb[0].mxu0
    %v4371 = vadd.f32 0.0, %v4370
    %v4372 = vpop.f32.mrb[0].mxu0
    %v4373 = vpop.f32.mrb[0].mxu0
    %v4374 = vadd.f32 0.0, %v4373
    %v4375 = vpop.f32.mrb[0].mxu0
    %4376 = vmatprep.mubr.bf16.mxu0 0
    %4377 = vmatmul.mubr.bf16.gmra.mrb[0].mxu0 %v4264
    %v4378 = vpop.f32.mrb[0].mxu0
    %v4379 = vadd.f32 0.0, %v4378
    %v4380 = vpop.f32.mrb[0].mxu0
    %v4381 = vpop.f32.mrb[0].mxu0
    %v4382 = vadd.f32 0.0, %v4381
    %v4383 = vpop.f32.mrb[0].mxu0
    %4384 = vmatprep.mubr.bf16.mxu0 0
    %4385 = vmatmul.mubr.bf16.gmra.mrb[0].mxu0 %v4267
    %v4386 = vpop.f32.mrb[0].mxu0
    %v4387 = vadd.f32 0.0, %v4386
    %v4388 = vpop.f32.mrb[0].mxu0
    %v4389 = vpop.f32.mrb[0].mxu0
    %v4390 = vadd.f32 0.0, %v4389
    %v4391 = vpop.f32.mrb[0].mxu0
    %4392 = vmatprep.mubr.bf16.mxu0 0
    %4393 = vmatmul.mubr.bf16.gmra.mrb[0].mxu0 %v4270
    %v4394 = vpop.f32.mrb[0].mxu0
    %v4395 = vadd.f32 0.0, %v4394
    %v4396 = vpop.f32.mrb[0].mxu0
    %v4397 = vpop.f32.mrb[0].mxu0
    %v4398 = vadd.f32 0.0, %v4397
    %v4399 = vpop.f32.mrb[0].mxu0
    %4400 = vmatprep.mubr.bf16.mxu0 0
    %4401 = vmatmul.mubr.bf16.gmra.mrb[0].mxu0 %v4273
    %v4402 = vpop.f32.mrb[0].mxu0
    %v4403 = vadd.f32 0.0, %v4402
    %v4404 = vpop.f32.mrb[0].mxu0
    %v4405 = vpop.f32.mrb[0].mxu0
    %v4406 = vadd.f32 0.0, %v4405
    %v4407 = vpop.f32.mrb[0].mxu0
    %4408 = vmatprep.mubr.bf16.mxu0 0
    %4409 = vmatmul.mubr.bf16.gmra.mrb[0].mxu0 %v4276
    %v4410 = vpop.f32.mrb[0].mxu0
    %v4411 = vadd.f32 0.0, %v4410
    %v4412 = vpop.f32.mrb[0].mxu0
    %v4413 = vpop.f32.mrb[0].mxu0
    %v4414 = vadd.f32 0.0, %v4413
    %v4415 = vpop.f32.mrb[0].mxu0
    %4416 = vmatprep.mubr.bf16.mxu0 0
    %4417 = vmatmul.mubr.bf16.gmra.mrb[0].mxu0 %v4279
    %v4418 = vpop.f32.mrb[0].mxu0
    %v4419 = vadd.f32 0.0, %v4418
    %v4420 = vpop.f32.mrb[0].mxu0
    %v4421 = vpop.f32.mrb[0].mxu0
    %v4422 = vadd.f32 0.0, %v4421
    %v4423 = vpop.f32.mrb[0].mxu0
    %4424 = vmatprep.mubr.bf16.mxu0 0
    %4425 = vmatmul.mubr.bf16.gmra.mrb[0].mxu0 %v4282
    %v4426 = vpop.f32.mrb[0].mxu0
    %v4427 = vadd.f32 0.0, %v4426
    %v4428 = vpop.f32.mrb[0].mxu0
    %v4429 = vpop.f32.mrb[0].mxu0
    %v4430 = vadd.f32 0.0, %v4429
    %v4431 = vpop.f32.mrb[0].mxu0
    %4432 = vmatprep.mubr.bf16.mxu0 0
    %4433 = vmatmul.mubr.bf16.gmra.mrb[0].mxu0 %v4285
    %v4434 = vpop.f32.mrb[0].mxu0
    %v4435 = vadd.f32 0.0, %v4434
    %v4436 = vpop.f32.mrb[0].mxu0
    %v4437 = vpop.f32.mrb[0].mxu0
    %v4438 = vadd.f32 0.0, %v4437
    %v4439 = vpop.f32.mrb[0].mxu0
    %4440 = vmatprep.mubr.bf16.mxu0 0
    %4441 = vmatmul.mubr.bf16.gmra.mrb[0].mxu0 %v4288
    %v4442 = vpop.f32.mrb[0].mxu0
    %v4443 = vadd.f32 0.0, %v4442
    %v4444 = vpop.f32.mrb[0].mxu0
    %v4445 = vpop.f32.mrb[0].mxu0
    %v4446 = vadd.f32 0.0, %v4445
    %v4447 = vpop.f32.mrb[0].mxu0
    %4448 = vmatprep.mubr.bf16.mxu0 0
    %4449 = vmatmul.mubr.bf16.gmra.mrb[0].mxu0 %v4291
    %v4450 = vpop.f32.mrb[0].mxu0
    %v4451 = vadd.f32 0.0, %v4450
    %v4452 = vpop.f32.mrb[0].mxu0
    %v4453 = vpop.f32.mrb[0].mxu0
    %v4454 = vadd.f32 0.0, %v4453
    %v4455 = vpop.f32.mrb[0].mxu0
    %4456 = vdwg.mxu0
    %v4460 = vunpack.c.l.b16 %v4229
    %v4461 = vunpack.c.l.b16 %v4230
    %v4462 = vunpack.c.l.b16 %v4231
    %v4463 = vpack.c.b16 %v4461, %v4460
    %v4464 = vpack.c.b16 %v4462, %v4462
    %v4467 = vsel %vm639, %v4213, 0
    %v4470 = vsel %vm2149, %v4464, 0
    %4472 = vmatprep.subr.bf16.mxu0 0
    %4473 = vmatpush1.bf16.msra.mxu0 %v4463
    %4474 = vmatprep.subr.bf16.mxu0 0
    %4475 = vmatpush1.bf16.msra.mxu0 %v4470
    %4476 = vmatprep.subr.bf16.mxu0 0
    %4477 = vmatpush1.bf16.msra.mxu0 0
    %4478 = vmatprep.subr.bf16.mxu0 0
    %4479 = vmatpush1.bf16.msra.mxu0 0
    %4480 = vmatprep.subr.bf16.mxu0 0
    %4481 = vmatpush1.bf16.msra.mxu0 0
    %4482 = vmatprep.subr.bf16.mxu0 0
    %4483 = vmatpush1.bf16.msra.mxu0 0
    %4484 = vmatprep.subr.bf16.mxu0 0
    %4485 = vmatpush1.bf16.msra.mxu0 0
    %4486 = vmatprep.subr.bf16.mxu0 0
    %4487 = vmatpush1.bf16.msra.mxu0 0
    %4488 = vmatprep.subr.bf16.mxu0 0
    %4489 = vmatpush1.bf16.msra.mxu0 0
    %4490 = vmatprep.subr.bf16.mxu0 0
    %4491 = vmatpush1.bf16.msra.mxu0 0
    %4492 = vmatprep.subr.bf16.mxu0 0
    %4493 = vmatpush1.bf16.msra.mxu0 0
    %4494 = vmatprep.subr.bf16.mxu0 0
    %4495 = vmatpush1.bf16.msra.mxu0 0
    %4496 = vmatprep.subr.bf16.mxu0 0
    %4497 = vmatpush1.bf16.msra.mxu0 0
    %4498 = vmatprep.subr.bf16.mxu0 0
    %4499 = vmatpush1.bf16.msra.mxu0 0
    %4500 = vmatprep.subr.bf16.mxu0 0
    %4501 = vmatpush1.bf16.msra.mxu0 0
    %4502 = vmatprep.subr.bf16.mxu0 0
    %4503 = vmatpush1.bf16.msra.mxu0 0
    %4504 = vmatprep.mubr.bf16.mxu0 0
    %4505 = vmatmul.mubr.bf16.gmra.mrb[0].mxu0 %v4467
    %v4506 = vpop.f32.mrb[0].mxu0
    %v4507 = vadd.f32 %v4331, %v4506
    %v4508 = vpop.f32.mrb[0].mxu0
    %v4509 = vpop.f32.mrb[0].mxu0
    %v4510 = vadd.f32 %v4334, %v4509
    %v4511 = vpop.f32.mrb[0].mxu0
    %4512 = vmatprep.mubr.bf16.mxu0 0
    %4513 = vmatmul.mubr.bf16.gmra.mrb[0].mxu0 %v4246
    %v4514 = vpop.f32.mrb[0].mxu0
    %v4515 = vadd.f32 %v4339, %v4514
    %v4516 = vpop.f32.mrb[0].mxu0
    %v4517 = vpop.f32.mrb[0].mxu0
    %v4518 = vadd.f32 %v4342, %v4517
    %v4519 = vpop.f32.mrb[0].mxu0
    %4520 = vmatprep.mubr.bf16.mxu0 0
    %4521 = vmatmul.mubr.bf16.gmra.mrb[0].mxu0 %v4249
    %v4522 = vpop.f32.mrb[0].mxu0
    %v4523 = vadd.f32 %v4347, %v4522
    %v4524 = vpop.f32.mrb[0].mxu0
    %v4525 = vpop.f32.mrb[0].mxu0
    %v4526 = vadd.f32 %v4350, %v4525
    %v4527 = vpop.f32.mrb[0].mxu0
    %4528 = vmatprep.mubr.bf16.mxu0 0
    %4529 = vmatmul.mubr.bf16.gmra.mrb[0].mxu0 %v4252
    %v4530 = vpop.f32.mrb[0].mxu0
    %v4531 = vadd.f32 %v4355, %v4530
    %v4532 = vpop.f32.mrb[0].mxu0
    %v4533 = vpop.f32.mrb[0].mxu0
    %v4534 = vadd.f32 %v4358, %v4533
    %v4535 = vpop.f32.mrb[0].mxu0
    %4536 = vmatprep.mubr.bf16.mxu0 0
    %4537 = vmatmul.mubr.bf16.gmra.mrb[0].mxu0 %v4255
    %v4538 = vpop.f32.mrb[0].mxu0
    %v4539 = vadd.f32 %v4363, %v4538
    %v4540 = vpop.f32.mrb[0].mxu0
    %v4541 = vpop.f32.mrb[0].mxu0
    %v4542 = vadd.f32 %v4366, %v4541
    %v4543 = vpop.f32.mrb[0].mxu0
    %4544 = vmatprep.mubr.bf16.mxu0 0
    %4545 = vmatmul.mubr.bf16.gmra.mrb[0].mxu0 %v4258
    %v4546 = vpop.f32.mrb[0].mxu0
    %v4547 = vadd.f32 %v4371, %v4546
    %v4548 = vpop.f32.mrb[0].mxu0
    %v4549 = vpop.f32.mrb[0].mxu0
    %v4550 = vadd.f32 %v4374, %v4549
    %v4551 = vpop.f32.mrb[0].mxu0
    %4552 = vmatprep.mubr.bf16.mxu0 0
    %4553 = vmatmul.mubr.bf16.gmra.mrb[0].mxu0 %v4261
    %v4554 = vpop.f32.mrb[0].mxu0
    %v4555 = vadd.f32 %v4379, %v4554
    %v4556 = vpop.f32.mrb[0].mxu0
    %v4557 = vpop.f32.mrb[0].mxu0
    %v4558 = vadd.f32 %v4382, %v4557
    %v4559 = vpop.f32.mrb[0].mxu0
    %4560 = vmatprep.mubr.bf16.mxu0 0
    %4561 = vmatmul.mubr.bf16.gmra.mrb[0].mxu0 %v4264
    %v4562 = vpop.f32.mrb[0].mxu0
    %v4563 = vadd.f32 %v4387, %v4562
    %v4564 = vpop.f32.mrb[0].mxu0
    %v4565 = vpop.f32.mrb[0].mxu0
    %v4566 = vadd.f32 %v4390, %v4565
    %v4567 = vpop.f32.mrb[0].mxu0
    %4568 = vmatprep.mubr.bf16.mxu0 0
    %4569 = vmatmul.mubr.bf16.gmra.mrb[0].mxu0 %v4267
    %v4570 = vpop.f32.mrb[0].mxu0
    %v4571 = vadd.f32 %v4395, %v4570
    %v4572 = vpop.f32.mrb[0].mxu0
    %v4573 = vpop.f32.mrb[0].mxu0
    %v4574 = vadd.f32 %v4398, %v4573
    %v4575 = vpop.f32.mrb[0].mxu0
    %4576 = vmatprep.mubr.bf16.mxu0 0
    %4577 = vmatmul.mubr.bf16.gmra.mrb[0].mxu0 %v4270
    %v4578 = vpop.f32.mrb[0].mxu0
    %v4579 = vadd.f32 %v4403, %v4578
    %v4580 = vpop.f32.mrb[0].mxu0
    %v4581 = vpop.f32.mrb[0].mxu0
    %v4582 = vadd.f32 %v4406, %v4581
    %v4583 = vpop.f32.mrb[0].mxu0
    %4584 = vmatprep.mubr.bf16.mxu0 0
    %4585 = vmatmul.mubr.bf16.gmra.mrb[0].mxu0 %v4273
    %v4586 = vpop.f32.mrb[0].mxu0
    %v4587 = vadd.f32 %v4411, %v4586
    %v4588 = vpop.f32.mrb[0].mxu0
    %v4589 = vpop.f32.mrb[0].mxu0
    %v4590 = vadd.f32 %v4414, %v4589
    %v4591 = vpop.f32.mrb[0].mxu0
    %4592 = vmatprep.mubr.bf16.mxu0 0
    %4593 = vmatmul.mubr.bf16.gmra.mrb[0].mxu0 %v4276
    %v4594 = vpop.f32.mrb[0].mxu0
    %v4595 = vadd.f32 %v4419, %v4594
    %v4596 = vpop.f32.mrb[0].mxu0
    %v4597 = vpop.f32.mrb[0].mxu0
    %v4598 = vadd.f32 %v4422, %v4597
    %v4599 = vpop.f32.mrb[0].mxu0
    %4600 = vmatprep.mubr.bf16.mxu0 0
    %4601 = vmatmul.mubr.bf16.gmra.mrb[0].mxu0 %v4279
    %v4602 = vpop.f32.mrb[0].mxu0
    %v4603 = vadd.f32 %v4427, %v4602
    %v4604 = vpop.f32.mrb[0].mxu0
    %v4605 = vpop.f32.mrb[0].mxu0
    %v4606 = vadd.f32 %v4430, %v4605
    %v4607 = vpop.f32.mrb[0].mxu0
    %4608 = vmatprep.mubr.bf16.mxu0 0
    %4609 = vmatmul.mubr.bf16.gmra.mrb[0].mxu0 %v4282
    %v4610 = vpop.f32.mrb[0].mxu0
    %v4611 = vadd.f32 %v4435, %v4610
    %v4612 = vpop.f32.mrb[0].mxu0
    %v4613 = vpop.f32.mrb[0].mxu0
    %v4614 = vadd.f32 %v4438, %v4613
    %v4615 = vpop.f32.mrb[0].mxu0
    %4616 = vmatprep.mubr.bf16.mxu0 0
    %4617 = vmatmul.mubr.bf16.gmra.mrb[0].mxu0 %v4285
    %v4618 = vpop.f32.mrb[0].mxu0
    %v4619 = vadd.f32 %v4443, %v4618
    %v4620 = vpop.f32.mrb[0].mxu0
    %v4621 = vpop.f32.mrb[0].mxu0
    %v4622 = vadd.f32 %v4446, %v4621
    %v4623 = vpop.f32.mrb[0].mxu0
    %4624 = vmatprep.mubr.bf16.mxu0 0
    %4625 = vmatmul.mubr.bf16.gmra.mrb[0].mxu0 %v4288
    %v4626 = vpop.f32.mrb[0].mxu0
    %v4627 = vadd.f32 %v4451, %v4626
    %v4628 = vpop.f32.mrb[0].mxu0
    %v4629 = vpop.f32.mrb[0].mxu0
    %v4630 = vadd.f32 %v4454, %v4629
    %v4631 = vpop.f32.mrb[0].mxu0
    %4632 = vdwg.mxu0
    %v4633 = vld [vmem:[#allocation2 + $0x10] sm:$0xff]
    %v4634 = vld [vmem:[#allocation2 + $0x18] sm:$0xff]
    %v4635 = vld [vmem:[#allocation2 + $0x20] sm:$0xff]
    %v4636 = vld [vmem:[#allocation2 + $0x28] sm:$0xff]
    %v4637 = vld [vmem:[#allocation2 + $0x30] sm:$0xff]
    %v4638 = vld [vmem:[#allocation2 + $0x38] sm:$0xff]
    %v4639 = vld [vmem:[#allocation2 + $0x40] sm:$0xff]
    %v4640 = vld [vmem:[#allocation2 + $0x48] sm:$0xff]
    %v4641 = vld [vmem:[#allocation2 + $0x50] sm:$0xff]
    %v4642 = vld [vmem:[#allocation2 + $0x58] sm:$0xff]
    %v4643 = vld [vmem:[#allocation2 + $0x60] sm:$0xff]
    %v4644 = vld [vmem:[#allocation2 + $0x68] sm:$0xff]
    %v4645 = vld [vmem:[#allocation2 + $0x70] sm:$0xff]
    %v4646 = vld [vmem:[#allocation2 + $0x78] sm:$0xff]
    %v4647 = vld [vmem:[#allocation2 + $0x80] sm:$0xff]
    %v4648 = vld [vmem:[#allocation2 + $0x88] sm:$0xff]
    %v4649 = vld [vmem:[%s2506] sm:$0xf]
    %v4650 = vld [vmem:[%s2506 + $0x4] sm:$0xf]
    %v4651 = vld [vmem:[%s2506 + $0x8] sm:$0xf]
    %v4655 = vunpack.c.l.b16 %v4649
    %v4656 = vunpack.c.l.b16 %v4650
    %v4657 = vunpack.c.l.b16 %v4651
    %v4658 = vpack.c.b16 %v4656, %v4655
    %v4659 = vpack.c.b16 %v4657, %v4657
    %v4662 = vsel %vm639, %v4633, 0
    %v4665 = vsel %vm639, %v4634, 0
    %v4668 = vsel %vm639, %v4635, 0
    %v4671 = vsel %vm639, %v4636, 0
    %v4674 = vsel %vm639, %v4637, 0
    %v4677 = vsel %vm639, %v4638, 0
    %v4680 = vsel %vm639, %v4639, 0
    %v4683 = vsel %vm639, %v4640, 0
    %v4686 = vsel %vm639, %v4641, 0
    %v4689 = vsel %vm639, %v4642, 0
    %v4692 = vsel %vm639, %v4643, 0
    %v4695 = vsel %vm639, %v4644, 0
    %v4698 = vsel %vm639, %v4645, 0
    %v4701 = vsel %vm639, %v4646, 0
    %v4704 = vsel %vm639, %v4647, 0
    %v4707 = vsel %vm639, %v4648, 0
    %v4710 = vsel %vm2149, %v4659, 0
    %4712 = vmatprep.subr.bf16.mxu0 0
    %4713 = vmatpush1.bf16.msra.mxu0 %v4658
    %4714 = vmatprep.subr.bf16.mxu0 0
    %4715 = vmatpush1.bf16.msra.mxu0 %v4710
    %4716 = vmatprep.subr.bf16.mxu0 0
    %4717 = vmatpush1.bf16.msra.mxu0 0
    %4718 = vmatprep.subr.bf16.mxu0 0
    %4719 = vmatpush1.bf16.msra.mxu0 0
    %4720 = vmatprep.subr.bf16.mxu0 0
    %4721 = vmatpush1.bf16.msra.mxu0 0
    %4722 = vmatprep.subr.bf16.mxu0 0
    %4723 = vmatpush1.bf16.msra.mxu0 0
    %4724 = vmatprep.subr.bf16.mxu0 0
    %4725 = vmatpush1.bf16.msra.mxu0 0
    %4726 = vmatprep.subr.bf16.mxu0 0
    %4727 = vmatpush1.bf16.msra.mxu0 0
    %4728 = vmatprep.subr.bf16.mxu0 0
    %4729 = vmatpush1.bf16.msra.mxu0 0
    %4730 = vmatprep.subr.bf16.mxu0 0
    %4731 = vmatpush1.bf16.msra.mxu0 0
    %4732 = vmatprep.subr.bf16.mxu0 0
    %4733 = vmatpush1.bf16.msra.mxu0 0
    %4734 = vmatprep.subr.bf16.mxu0 0
    %4735 = vmatpush1.bf16.msra.mxu0 0
    %4736 = vmatprep.subr.bf16.mxu0 0
    %4737 = vmatpush1.bf16.msra.mxu0 0
    %4738 = vmatprep.subr.bf16.mxu0 0
    %4739 = vmatpush1.bf16.msra.mxu0 0
    %4740 = vmatprep.subr.bf16.mxu0 0
    %4741 = vmatpush1.bf16.msra.mxu0 0
    %4742 = vmatprep.subr.bf16.mxu0 0
    %4743 = vmatpush1.bf16.msra.mxu0 0
    %4744 = vmatprep.mubr.bf16.mxu0 0
    %4745 = vmatmul.mubr.bf16.gmra.mrb[0].mxu0 %v4662
    %v4746 = vpop.f32.mrb[0].mxu0
    %v4747 = vadd.f32 0.0, %v4746
    %v4748 = vpop.f32.mrb[0].mxu0
    %v4749 = vpop.f32.mrb[0].mxu0
    %v4750 = vadd.f32 0.0, %v4749
    %v4751 = vpop.f32.mrb[0].mxu0
    %4752 = vmatprep.mubr.bf16.mxu0 0
    %4753 = vmatmul.mubr.bf16.gmra.mrb[0].mxu0 %v4665
    %v4754 = vpop.f32.mrb[0].mxu0
    %v4755 = vadd.f32 0.0, %v4754
    %v4756 = vpop.f32.mrb[0].mxu0
    %v4757 = vpop.f32.mrb[0].mxu0
    %v4758 = vadd.f32 0.0, %v4757
    %v4759 = vpop.f32.mrb[0].mxu0
    %4760 = vmatprep.mubr.bf16.mxu0 0
    %4761 = vmatmul.mubr.bf16.gmra.mrb[0].mxu0 %v4668
    %v4762 = vpop.f32.mrb[0].mxu0
    %v4763 = vadd.f32 0.0, %v4762
    %v4764 = vpop.f32.mrb[0].mxu0
    %v4765 = vpop.f32.mrb[0].mxu0
    %v4766 = vadd.f32 0.0, %v4765
    %v4767 = vpop.f32.mrb[0].mxu0
    %4768 = vmatprep.mubr.bf16.mxu0 0
    %4769 = vmatmul.mubr.bf16.gmra.mrb[0].mxu0 %v4671
    %v4770 = vpop.f32.mrb[0].mxu0
    %v4771 = vadd.f32 0.0, %v4770
    %v4772 = vpop.f32.mrb[0].mxu0
    %v4773 = vpop.f32.mrb[0].mxu0
    %v4774 = vadd.f32 0.0, %v4773
    %v4775 = vpop.f32.mrb[0].mxu0
    %4776 = vmatprep.mubr.bf16.mxu0 0
    %4777 = vmatmul.mubr.bf16.gmra.mrb[0].mxu0 %v4674
    %v4778 = vpop.f32.mrb[0].mxu0
    %v4779 = vadd.f32 0.0, %v4778
    %v4780 = vpop.f32.mrb[0].mxu0
    %v4781 = vpop.f32.mrb[0].mxu0
    %v4782 = vadd.f32 0.0, %v4781
    %v4783 = vpop.f32.mrb[0].mxu0
    %4784 = vmatprep.mubr.bf16.mxu0 0
    %4785 = vmatmul.mubr.bf16.gmra.mrb[0].mxu0 %v4677
    %v4786 = vpop.f32.mrb[0].mxu0
    %v4787 = vadd.f32 0.0, %v4786
    %v4788 = vpop.f32.mrb[0].mxu0
    %v4789 = vpop.f32.mrb[0].mxu0
    %v4790 = vadd.f32 0.0, %v4789
    %v4791 = vpop.f32.mrb[0].mxu0
    %4792 = vmatprep.mubr.bf16.mxu0 0
    %4793 = vmatmul.mubr.bf16.gmra.mrb[0].mxu0 %v4680
    %v4794 = vpop.f32.mrb[0].mxu0
    %v4795 = vadd.f32 0.0, %v4794
    %v4796 = vpop.f32.mrb[0].mxu0
    %v4797 = vpop.f32.mrb[0].mxu0
    %v4798 = vadd.f32 0.0, %v4797
    %v4799 = vpop.f32.mrb[0].mxu0
    %4800 = vmatprep.mubr.bf16.mxu0 0
    %4801 = vmatmul.mubr.bf16.gmra.mrb[0].mxu0 %v4683
    %v4802 = vpop.f32.mrb[0].mxu0
    %v4803 = vadd.f32 0.0, %v4802
    %v4804 = vpop.f32.mrb[0].mxu0
    %v4805 = vpop.f32.mrb[0].mxu0
    %v4806 = vadd.f32 0.0, %v4805
    %v4807 = vpop.f32.mrb[0].mxu0
    %4808 = vmatprep.mubr.bf16.mxu0 0
    %4809 = vmatmul.mubr.bf16.gmra.mrb[0].mxu0 %v4686
    %v4810 = vpop.f32.mrb[0].mxu0
    %v4811 = vadd.f32 0.0, %v4810
    %v4812 = vpop.f32.mrb[0].mxu0
    %v4813 = vpop.f32.mrb[0].mxu0
    %v4814 = vadd.f32 0.0, %v4813
    %v4815 = vpop.f32.mrb[0].mxu0
    %4816 = vmatprep.mubr.bf16.mxu0 0
    %4817 = vmatmul.mubr.bf16.gmra.mrb[0].mxu0 %v4689
    %v4818 = vpop.f32.mrb[0].mxu0
    %v4819 = vadd.f32 0.0, %v4818
    %v4820 = vpop.f32.mrb[0].mxu0
    %v4821 = vpop.f32.mrb[0].mxu0
    %v4822 = vadd.f32 0.0, %v4821
    %v4823 = vpop.f32.mrb[0].mxu0
    %4824 = vmatprep.mubr.bf16.mxu0 0
    %4825 = vmatmul.mubr.bf16.gmra.mrb[0].mxu0 %v4692
    %v4826 = vpop.f32.mrb[0].mxu0
    %v4827 = vadd.f32 0.0, %v4826
    %v4828 = vpop.f32.mrb[0].mxu0
    %v4829 = vpop.f32.mrb[0].mxu0
    %v4830 = vadd.f32 0.0, %v4829
    %v4831 = vpop.f32.mrb[0].mxu0
    %4832 = vmatprep.mubr.bf16.mxu0 0
    %4833 = vmatmul.mubr.bf16.gmra.mrb[0].mxu0 %v4695
    %v4834 = vpop.f32.mrb[0].mxu0
    %v4835 = vadd.f32 0.0, %v4834
    %v4836 = vpop.f32.mrb[0].mxu0
    %v4837 = vpop.f32.mrb[0].mxu0
    %v4838 = vadd.f32 0.0, %v4837
    %v4839 = vpop.f32.mrb[0].mxu0
    %4840 = vmatprep.mubr.bf16.mxu0 0
    %4841 = vmatmul.mubr.bf16.gmra.mrb[0].mxu0 %v4698
    %v4842 = vpop.f32.mrb[0].mxu0
    %v4843 = vadd.f32 0.0, %v4842
    %v4844 = vpop.f32.mrb[0].mxu0
    %v4845 = vpop.f32.mrb[0].mxu0
    %v4846 = vadd.f32 0.0, %v4845
    %v4847 = vpop.f32.mrb[0].mxu0
    %4848 = vmatprep.mubr.bf16.mxu0 0
    %4849 = vmatmul.mubr.bf16.gmra.mrb[0].mxu0 %v4701
    %v4850 = vpop.f32.mrb[0].mxu0
    %v4851 = vadd.f32 0.0, %v4850
    %v4852 = vpop.f32.mrb[0].mxu0
    %v4853 = vpop.f32.mrb[0].mxu0
    %v4854 = vadd.f32 0.0, %v4853
    %v4855 = vpop.f32.mrb[0].mxu0
    %4856 = vmatprep.mubr.bf16.mxu0 0
    %4857 = vmatmul.mubr.bf16.gmra.mrb[0].mxu0 %v4704
    %v4858 = vpop.f32.mrb[0].mxu0
    %v4859 = vadd.f32 0.0, %v4858
    %v4860 = vpop.f32.mrb[0].mxu0
    %v4861 = vpop.f32.mrb[0].mxu0
    %v4862 = vadd.f32 0.0, %v4861
    %v4863 = vpop.f32.mrb[0].mxu0
    %4864 = vmatprep.mubr.bf16.mxu0 0
    %4865 = vmatmul.mubr.bf16.gmra.mrb[0].mxu0 %v4707
    %v4866 = vpop.f32.mrb[0].mxu0
    %v4867 = vadd.f32 0.0, %v4866
    %v4868 = vpop.f32.mrb[0].mxu0
    %v4869 = vpop.f32.mrb[0].mxu0
    %v4870 = vadd.f32 0.0, %v4869
    %v4871 = vpop.f32.mrb[0].mxu0
    %4872 = vdwg.mxu0
    %v4873 = vadd.f32 %v4507, %v4747
    %v4874 = vadd.f32 %v4510, %v4750
    %v4875 = vadd.f32 %v4515, %v4755
    %v4876 = vadd.f32 %v4518, %v4758
    %v4877 = vadd.f32 %v4523, %v4763
    %v4878 = vadd.f32 %v4526, %v4766
    %v4879 = vadd.f32 %v4531, %v4771
    %v4880 = vadd.f32 %v4534, %v4774
    %v4881 = vadd.f32 %v4539, %v4779
    %v4882 = vadd.f32 %v4542, %v4782
    %v4883 = vadd.f32 %v4547, %v4787
    %v4884 = vadd.f32 %v4550, %v4790
    %v4885 = vadd.f32 %v4555, %v4795
    %v4886 = vadd.f32 %v4558, %v4798
    %v4887 = vadd.f32 %v4563, %v4803
    %v4888 = vadd.f32 %v4566, %v4806
    %v4889 = vadd.f32 %v4571, %v4811
    %v4890 = vadd.f32 %v4574, %v4814
    %v4891 = vadd.f32 %v4579, %v4819
    %v4892 = vadd.f32 %v4582, %v4822
    %v4893 = vadd.f32 %v4587, %v4827
    %v4894 = vadd.f32 %v4590, %v4830
    %v4895 = vadd.f32 %v4595, %v4835
    %v4896 = vadd.f32 %v4598, %v4838
    %v4897 = vadd.f32 %v4603, %v4843
    %v4898 = vadd.f32 %v4606, %v4846
    %v4899 = vadd.f32 %v4611, %v4851
    %v4900 = vadd.f32 %v4614, %v4854
    %v4901 = vadd.f32 %v4619, %v4859
    %v4902 = vadd.f32 %v4622, %v4862
    %v4903 = vadd.f32 %v4627, %v4867
    %v4904 = vadd.f32 %v4630, %v4870
    %v4905 = vld [vmem:[%s4] sm:$0x1]
    %v4907 = vlaneseq
    %v4908 = vshrl.u32 %v4907, 7
    %v4909 = vsub.s32 0, %v4908
    %v4910 = vrot.slane %v4905, %v4909
    %v4912 = vadd.f32 %v4873, %v4910
    %v4913 = vadd.f32 %v4874, %v4910
    %v4914 = vadd.f32 %v4875, %v4910
    %v4915 = vadd.f32 %v4876, %v4910
    %v4916 = vadd.f32 %v4877, %v4910
    %v4917 = vadd.f32 %v4878, %v4910
    %v4918 = vadd.f32 %v4879, %v4910
    %v4919 = vadd.f32 %v4880, %v4910
    %v4920 = vadd.f32 %v4881, %v4910
    %v4921 = vadd.f32 %v4882, %v4910
    %v4922 = vadd.f32 %v4883, %v4910
    %v4923 = vadd.f32 %v4884, %v4910
    %v4924 = vadd.f32 %v4885, %v4910
    %v4925 = vadd.f32 %v4886, %v4910
    %v4926 = vadd.f32 %v4887, %v4910
    %v4927 = vadd.f32 %v4888, %v4910
    %v4928 = vadd.f32 %v4889, %v4910
    %v4929 = vadd.f32 %v4890, %v4910
    %v4930 = vadd.f32 %v4891, %v4910
    %v4931 = vadd.f32 %v4892, %v4910
    %v4932 = vadd.f32 %v4893, %v4910
    %v4933 = vadd.f32 %v4894, %v4910
    %v4934 = vadd.f32 %v4895, %v4910
    %v4935 = vadd.f32 %v4896, %v4910
    %v4936 = vadd.f32 %v4897, %v4910
    %v4937 = vadd.f32 %v4898, %v4910
    %v4938 = vadd.f32 %v4899, %v4910
    %v4939 = vadd.f32 %v4900, %v4910
    %v4940 = vadd.f32 %v4901, %v4910
    %v4941 = vadd.f32 %v4902, %v4910
    %v4942 = vadd.f32 %v4903, %v4910
    %v4943 = vadd.f32 %v4904, %v4910
    %v4944 = vmax.f32 %v4912, 0.0
    %v4945 = vmax.f32 %v4913, 0.0
    %v4946 = vmax.f32 %v4914, 0.0
    %v4947 = vmax.f32 %v4915, 0.0
    %v4948 = vmax.f32 %v4916, 0.0
    %v4949 = vmax.f32 %v4917, 0.0
    %v4950 = vmax.f32 %v4918, 0.0
    %v4951 = vmax.f32 %v4919, 0.0
    %v4952 = vmax.f32 %v4920, 0.0
    %v4953 = vmax.f32 %v4921, 0.0
    %v4954 = vmax.f32 %v4922, 0.0
    %v4955 = vmax.f32 %v4923, 0.0
    %v4956 = vmax.f32 %v4924, 0.0
    %v4957 = vmax.f32 %v4925, 0.0
    %v4958 = vmax.f32 %v4926, 0.0
    %v4959 = vmax.f32 %v4927, 0.0
    %v4960 = vmax.f32 %v4928, 0.0
    %v4961 = vmax.f32 %v4929, 0.0
    %v4962 = vmax.f32 %v4930, 0.0
    %v4963 = vmax.f32 %v4931, 0.0
    %v4964 = vmax.f32 %v4932, 0.0
    %v4965 = vmax.f32 %v4933, 0.0
    %v4966 = vmax.f32 %v4934, 0.0
    %v4967 = vmax.f32 %v4935, 0.0
    %v4968 = vmax.f32 %v4936, 0.0
    %v4969 = vmax.f32 %v4937, 0.0
    %v4970 = vmax.f32 %v4938, 0.0
    %v4971 = vmax.f32 %v4939, 0.0
    %v4972 = vmax.f32 %v4940, 0.0
    %v4973 = vmax.f32 %v4941, 0.0
    %v4974 = vmax.f32 %v4942, 0.0
    %v4975 = vmax.f32 %v4943, 0.0
    %4976 = vst.msk [vmem:[#allocation3] sm:$0xff] %vm1581, %v4944
    %4977 = vst.msk [vmem:[#allocation3 + $0x8] sm:$0xff] %vm1581, %v4945
    %4978 = vst.msk [vmem:[#allocation3 + $0x10] sm:$0xff] %vm1581, %v4946
    %4979 = vst.msk [vmem:[#allocation3 + $0x18] sm:$0xff] %vm1581, %v4947
    %4980 = vst.msk [vmem:[#allocation3 + $0x20] sm:$0xff] %vm1581, %v4948
    %4981 = vst.msk [vmem:[#allocation3 + $0x28] sm:$0xff] %vm1581, %v4949
    %4982 = vst.msk [vmem:[#allocation3 + $0x30] sm:$0xff] %vm1581, %v4950
    %4983 = vst.msk [vmem:[#allocation3 + $0x38] sm:$0xff] %vm1581, %v4951
    %4984 = vst.msk [vmem:[#allocation3 + $0x40] sm:$0xff] %vm1581, %v4952
    %4985 = vst.msk [vmem:[#allocation3 + $0x48] sm:$0xff] %vm1581, %v4953
    %4986 = vst.msk [vmem:[#allocation3 + $0x50] sm:$0xff] %vm1581, %v4954
    %4987 = vst.msk [vmem:[#allocation3 + $0x58] sm:$0xff] %vm1581, %v4955
    %4988 = vst.msk [vmem:[#allocation3 + $0x60] sm:$0xff] %vm1581, %v4956
    %4989 = vst.msk [vmem:[#allocation3 + $0x68] sm:$0xff] %vm1581, %v4957
    %4990 = vst.msk [vmem:[#allocation3 + $0x70] sm:$0xff] %vm1581, %v4958
    %4991 = vst.msk [vmem:[#allocation3 + $0x78] sm:$0xff] %vm1581, %v4959
    %4992 = vst.msk [vmem:[#allocation3 + $0x80] sm:$0xff] %vm1581, %v4960
    %4993 = vst.msk [vmem:[#allocation3 + $0x88] sm:$0xff] %vm1581, %v4961
    %4994 = vst.msk [vmem:[#allocation3 + $0x90] sm:$0xff] %vm1581, %v4962
    %4995 = vst.msk [vmem:[#allocation3 + $0x98] sm:$0xff] %vm1581, %v4963
    %4996 = vst.msk [vmem:[#allocation3 + $0xa0] sm:$0xff] %vm1581, %v4964
    %4997 = vst.msk [vmem:[#allocation3 + $0xa8] sm:$0xff] %vm1581, %v4965
    %4998 = vst.msk [vmem:[#allocation3 + $0xb0] sm:$0xff] %vm1581, %v4966
    %4999 = vst.msk [vmem:[#allocation3 + $0xb8] sm:$0xff] %vm1581, %v4967
    %5000 = vst.msk [vmem:[#allocation3 + $0xc0] sm:$0xff] %vm1581, %v4968
    %5001 = vst.msk [vmem:[#allocation3 + $0xc8] sm:$0xff] %vm1581, %v4969
    %5002 = vst.msk [vmem:[#allocation3 + $0xd0] sm:$0xff] %vm1581, %v4970
    %5003 = vst.msk [vmem:[#allocation3 + $0xd8] sm:$0xff] %vm1581, %v4971
    %5004 = vst.msk [vmem:[#allocation3 + $0xe0] sm:$0xff] %vm1581, %v4972
    %5005 = vst.msk [vmem:[#allocation3 + $0xe8] sm:$0xff] %vm1581, %v4973
    %5006 = vst.msk [vmem:[#allocation3 + $0xf0] sm:$0xff] %vm1581, %v4974
    %5007 = vst.msk [vmem:[#allocation3 + $0xf8] sm:$0xff] %vm1581, %v4975
    %v5008 = vunpack.c.l.bf16 %v3305
    %v5009 = vunpack.c.l.bf16 %v3306
    %v5010 = vunpack.c.l.bf16 %v3307
    %v5011 = vunpack.c.l.bf16 %v3308
    %v5012 = vunpack.c.l.bf16 %v3309
    %v5013 = vunpack.c.l.bf16 %v3310
    %v5014 = vunpack.c.l.bf16 %v3311
    %v5015 = vunpack.c.l.bf16 %v3312
    %v5016 = vunpack.c.l.bf16 %v3313
    %v5017 = vunpack.c.l.bf16 %v3314
    %v5018 = vunpack.c.l.bf16 %v3315
    %v5019 = vunpack.c.l.bf16 %v3316
    %v5020 = vunpack.c.l.bf16 %v3317
    %v5021 = vunpack.c.l.bf16 %v3318
    %v5022 = vunpack.c.l.bf16 %v3319
    %v5023 = vunpack.c.l.bf16 %v3320
    %v5024 = vunpack.c.l.bf16 %v3321
    %v5025 = vunpack.c.l.bf16 %v3322
    %v5026 = vunpack.c.l.bf16 %v3323
    %v5027 = vunpack.c.l.bf16 %v3324
    %v5028 = vunpack.c.l.bf16 %v3325
    %v5029 = vunpack.c.l.bf16 %v3326
    %v5030 = vunpack.c.l.bf16 %v3327
    %v5031 = vunpack.c.l.bf16 %v3328
    %v5032 = vunpack.c.l.bf16 %v3329
    %v5033 = vunpack.c.l.bf16 %v3330
    %v5034 = vunpack.c.l.bf16 %v3331
    %v5035 = vunpack.c.l.bf16 %v3332
    %v5036 = vunpack.c.l.bf16 %v3333
    %v5037 = vunpack.c.l.bf16 %v3334
    %v5038 = vunpack.c.l.bf16 %v3335
    %v5039 = vunpack.c.l.bf16 %v3336
    %5072 = vrot.lane.b32.xlu0 %v5008, 8
    %v5073 = vpop.permute.xlu0 %5072
    %5074 = vrot.lane.b32.xlu0 %v5009, 8
    %v5075 = vpop.permute.xlu0 %5074
    %5076 = vrot.lane.b32.xlu0 %v5010, 8
    %v5077 = vpop.permute.xlu0 %5076
    %5078 = vrot.lane.b32.xlu0 %v5011, 8
    %v5079 = vpop.permute.xlu0 %5078
    %5080 = vrot.lane.b32.xlu0 %v5012, 8
    %v5081 = vpop.permute.xlu0 %5080
    %5082 = vrot.lane.b32.xlu0 %v5013, 8
    %v5083 = vpop.permute.xlu0 %5082
    %5084 = vrot.lane.b32.xlu0 %v5014, 8
    %v5085 = vpop.permute.xlu0 %5084
    %5086 = vrot.lane.b32.xlu0 %v5015, 8
    %v5087 = vpop.permute.xlu0 %5086
    %5088 = vrot.lane.b32.xlu0 %v5016, 8
    %v5089 = vpop.permute.xlu0 %5088
    %5090 = vrot.lane.b32.xlu0 %v5017, 8
    %v5091 = vpop.permute.xlu0 %5090
    %5092 = vrot.lane.b32.xlu0 %v5018, 8
    %v5093 = vpop.permute.xlu0 %5092
    %5094 = vrot.lane.b32.xlu0 %v5019, 8
    %v5095 = vpop.permute.xlu0 %5094
    %5096 = vrot.lane.b32.xlu0 %v5020, 8
    %v5097 = vpop.permute.xlu0 %5096
    %5098 = vrot.lane.b32.xlu0 %v5021, 8
    %v5099 = vpop.permute.xlu0 %5098
    %5100 = vrot.lane.b32.xlu0 %v5022, 8
    %v5101 = vpop.permute.xlu0 %5100
    %5102 = vrot.lane.b32.xlu0 %v5023, 8
    %v5103 = vpop.permute.xlu0 %5102
    %5104 = vrot.lane.b32.xlu0 %v5024, 8
    %v5105 = vpop.permute.xlu0 %5104
    %5106 = vrot.lane.b32.xlu0 %v5025, 8
    %v5107 = vpop.permute.xlu0 %5106
    %5108 = vrot.lane.b32.xlu0 %v5026, 8
    %v5109 = vpop.permute.xlu0 %5108
    %5110 = vrot.lane.b32.xlu0 %v5027, 8
    %v5111 = vpop.permute.xlu0 %5110
    %5112 = vrot.lane.b32.xlu0 %v5028, 8
    %v5113 = vpop.permute.xlu0 %5112
    %5114 = vrot.lane.b32.xlu0 %v5029, 8
    %v5115 = vpop.permute.xlu0 %5114
    %5116 = vrot.lane.b32.xlu0 %v5030, 8
    %v5117 = vpop.permute.xlu0 %5116
    %5118 = vrot.lane.b32.xlu0 %v5031, 8
    %v5119 = vpop.permute.xlu0 %5118
    %5120 = vrot.lane.b32.xlu0 %v5032, 8
    %v5121 = vpop.permute.xlu0 %5120
    %5122 = vrot.lane.b32.xlu0 %v5033, 8
    %v5123 = vpop.permute.xlu0 %5122
    %5124 = vrot.lane.b32.xlu0 %v5034, 8
    %v5125 = vpop.permute.xlu0 %5124
    %5126 = vrot.lane.b32.xlu0 %v5035, 8
    %v5127 = vpop.permute.xlu0 %5126
    %5128 = vrot.lane.b32.xlu0 %v5036, 8
    %v5129 = vpop.permute.xlu0 %5128
    %5130 = vrot.lane.b32.xlu0 %v5037, 8
    %v5131 = vpop.permute.xlu0 %5130
    %5132 = vrot.lane.b32.xlu0 %v5038, 8
    %v5133 = vpop.permute.xlu0 %5132
    %5134 = vrot.lane.b32.xlu0 %v5039, 8
    %v5135 = vpop.permute.xlu0 %5134
    %5168 = vst.msk [vmem:[#allocation3] sm:$0xff] %vm3026, %v5073
    %5169 = vst.msk [vmem:[#allocation3 + $0x8] sm:$0xff] %vm3026, %v5075
    %5170 = vst.msk [vmem:[#allocation3 + $0x10] sm:$0xff] %vm3026, %v5077
    %5171 = vst.msk [vmem:[#allocation3 + $0x18] sm:$0xff] %vm3026, %v5079
    %5172 = vst.msk [vmem:[#allocation3 + $0x20] sm:$0xff] %vm3026, %v5081
    %5173 = vst.msk [vmem:[#allocation3 + $0x28] sm:$0xff] %vm3026, %v5083
    %5174 = vst.msk [vmem:[#allocation3 + $0x30] sm:$0xff] %vm3026, %v5085
    %5175 = vst.msk [vmem:[#allocation3 + $0x38] sm:$0xff] %vm3026, %v5087
    %5176 = vst.msk [vmem:[#allocation3 + $0x40] sm:$0xff] %vm3026, %v5089
    %5177 = vst.msk [vmem:[#allocation3 + $0x48] sm:$0xff] %vm3026, %v5091
    %5178 = vst.msk [vmem:[#allocation3 + $0x50] sm:$0xff] %vm3026, %v5093
    %5179 = vst.msk [vmem:[#allocation3 + $0x58] sm:$0xff] %vm3026, %v5095
    %5180 = vst.msk [vmem:[#allocation3 + $0x60] sm:$0xff] %vm3026, %v5097
    %5181 = vst.msk [vmem:[#allocation3 + $0x68] sm:$0xff] %vm3026, %v5099
    %5182 = vst.msk [vmem:[#allocation3 + $0x70] sm:$0xff] %vm3026, %v5101
    %5183 = vst.msk [vmem:[#allocation3 + $0x78] sm:$0xff] %vm3026, %v5103
    %5184 = vst.msk [vmem:[#allocation3 + $0x80] sm:$0xff] %vm3026, %v5105
    %5185 = vst.msk [vmem:[#allocation3 + $0x88] sm:$0xff] %vm3026, %v5107
    %5186 = vst.msk [vmem:[#allocation3 + $0x90] sm:$0xff] %vm3026, %v5109
    %5187 = vst.msk [vmem:[#allocation3 + $0x98] sm:$0xff] %vm3026, %v5111
    %5188 = vst.msk [vmem:[#allocation3 + $0xa0] sm:$0xff] %vm3026, %v5113
    %5189 = vst.msk [vmem:[#allocation3 + $0xa8] sm:$0xff] %vm3026, %v5115
    %5190 = vst.msk [vmem:[#allocation3 + $0xb0] sm:$0xff] %vm3026, %v5117
    %5191 = vst.msk [vmem:[#allocation3 + $0xb8] sm:$0xff] %vm3026, %v5119
    %5192 = vst.msk [vmem:[#allocation3 + $0xc0] sm:$0xff] %vm3026, %v5121
    %5193 = vst.msk [vmem:[#allocation3 + $0xc8] sm:$0xff] %vm3026, %v5123
    %5194 = vst.msk [vmem:[#allocation3 + $0xd0] sm:$0xff] %vm3026, %v5125
    %5195 = vst.msk [vmem:[#allocation3 + $0xd8] sm:$0xff] %vm3026, %v5127
    %5196 = vst.msk [vmem:[#allocation3 + $0xe0] sm:$0xff] %vm3026, %v5129
    %5197 = vst.msk [vmem:[#allocation3 + $0xe8] sm:$0xff] %vm3026, %v5131
    %5198 = vst.msk [vmem:[#allocation3 + $0xf0] sm:$0xff] %vm3026, %v5133
    %5199 = vst.msk [vmem:[#allocation3 + $0xf8] sm:$0xff] %vm3026, %v5135
    %v5200 = vld [vmem:[#allocation3] ss:$2 sm:$0xff]
    %v5201 = vadd.f32 %v5200, 0.0
    %v5202 = vld [vmem:[%s3061] ss:$2 sm:$0xff]
    %v5203 = vadd.f32 %v5201, %v5202
    %v5204 = vld [vmem:[%s3064] ss:$2 sm:$0xff]
    %v5205 = vadd.f32 %v5203, %v5204
    %v5206 = vld [vmem:[%s3067] ss:$2 sm:$0xff]
    %v5207 = vadd.f32 %v5205, %v5206
    %v5208 = vpack.c.bf16 %v5207, %v5207
    %5209 = vst.msk [vmem:[#allocation4] sm:$0xf] %vm3071, %v5208
    %v5210 = vld [vmem:[%s3073] ss:$2 sm:$0xff]
    %v5211 = vadd.f32 %v5210, 0.0
    %v5212 = vld [vmem:[%s3076] ss:$2 sm:$0xff]
    %v5213 = vadd.f32 %v5211, %v5212
    %v5214 = vld [vmem:[%s3079] ss:$2 sm:$0xff]
    %v5215 = vadd.f32 %v5213, %v5214
    %v5216 = vld [vmem:[%s3082] ss:$2 sm:$0xff]
    %v5217 = vadd.f32 %v5215, %v5216
    %v5218 = vpack.c.bf16 %v5217, %v5217
    %v5220 = vrot.slane %v5218, 4
    %5222 = vst.msk [vmem:[#allocation4] sm:$0xf0] %vm3089, %v5220
    %v5223 = vld [vmem:[%s3091] ss:$2 sm:$0xff]
    %v5224 = vadd.f32 %v5223, 0.0
    %v5225 = vld [vmem:[%s3094] ss:$2 sm:$0xff]
    %v5226 = vadd.f32 %v5224, %v5225
    %v5227 = vld [vmem:[%s3097] ss:$2 sm:$0xff]
    %v5228 = vadd.f32 %v5226, %v5227
    %v5229 = vld [vmem:[%s3100] ss:$2 sm:$0xff]
    %v5230 = vadd.f32 %v5228, %v5229
    %v5231 = vpack.c.bf16 %v5230, %v5230
    %5232 = vst.msk [vmem:[#allocation4 + $0x8] sm:$0xf] %vm3071, %v5231
    %v5233 = vld [vmem:[%s3105] ss:$2 sm:$0xff]
    %v5234 = vadd.f32 %v5233, 0.0
    %v5235 = vld [vmem:[%s3108] ss:$2 sm:$0xff]
    %v5236 = vadd.f32 %v5234, %v5235
    %v5237 = vld [vmem:[%s3111] ss:$2 sm:$0xff]
    %v5238 = vadd.f32 %v5236, %v5237
    %v5239 = vld [vmem:[%s3114] ss:$2 sm:$0xff]
    %v5240 = vadd.f32 %v5238, %v5239
    %v5241 = vpack.c.bf16 %v5240, %v5240
    %v5243 = vrot.slane %v5241, 4
    %5245 = vst.msk [vmem:[#allocation4 + $0x8] sm:$0xf0] %vm3089, %v5243
    %v5246 = vld [vmem:[%s3122] ss:$2 sm:$0xff]
    %v5247 = vadd.f32 %v5246, 0.0
    %v5248 = vld [vmem:[%s3125] ss:$2 sm:$0xff]
    %v5249 = vadd.f32 %v5247, %v5248
    %v5250 = vld [vmem:[%s3128] ss:$2 sm:$0xff]
    %v5251 = vadd.f32 %v5249, %v5250
    %v5252 = vld [vmem:[%s3131] ss:$2 sm:$0xff]
    %v5253 = vadd.f32 %v5251, %v5252
    %v5254 = vpack.c.bf16 %v5253, %v5253
    %5255 = vst.msk [vmem:[#allocation4 + $0x10] sm:$0xf] %vm3071, %v5254
    %v5256 = vld [vmem:[%s3136] ss:$2 sm:$0xff]
    %v5257 = vadd.f32 %v5256, 0.0
    %v5258 = vld [vmem:[%s3139] ss:$2 sm:$0xff]
    %v5259 = vadd.f32 %v5257, %v5258
    %v5260 = vld [vmem:[%s3142] ss:$2 sm:$0xff]
    %v5261 = vadd.f32 %v5259, %v5260
    %v5262 = vld [vmem:[%s3145] ss:$2 sm:$0xff]
    %v5263 = vadd.f32 %v5261, %v5262
    %v5264 = vpack.c.bf16 %v5263, %v5263
    %v5266 = vrot.slane %v5264, 4
    %5268 = vst.msk [vmem:[#allocation4 + $0x10] sm:$0xf0] %vm3089, %v5266
    %v5269 = vld [vmem:[%s3153] ss:$2 sm:$0xff]
    %v5270 = vadd.f32 %v5269, 0.0
    %v5271 = vld [vmem:[%s3156] ss:$2 sm:$0xff]
    %v5272 = vadd.f32 %v5270, %v5271
    %v5273 = vld [vmem:[%s3159] ss:$2 sm:$0xff]
    %v5274 = vadd.f32 %v5272, %v5273
    %v5275 = vld [vmem:[%s3162] ss:$2 sm:$0xff]
    %v5276 = vadd.f32 %v5274, %v5275
    %v5277 = vpack.c.bf16 %v5276, %v5276
    %5278 = vst.msk [vmem:[#allocation4 + $0x18] sm:$0xf] %vm3071, %v5277
    %v5279 = vld [vmem:[%s3167] ss:$2 sm:$0xff]
    %v5280 = vadd.f32 %v5279, 0.0
    %v5281 = vld [vmem:[%s3170] ss:$2 sm:$0xff]
    %v5282 = vadd.f32 %v5280, %v5281
    %v5283 = vld [vmem:[%s3173] ss:$2 sm:$0xff]
    %v5284 = vadd.f32 %v5282, %v5283
    %v5285 = vld [vmem:[%s3176] ss:$2 sm:$0xff]
    %v5286 = vadd.f32 %v5284, %v5285
    %v5287 = vpack.c.bf16 %v5286, %v5286
    %v5289 = vrot.slane %v5287, 4
    %5291 = vst.msk [vmem:[#allocation4 + $0x18] sm:$0xf0] %vm3089, %v5289
    %v5292 = vld [vmem:[#allocation4] sm:$0xff]
    %v5293 = vld [vmem:[#allocation4 + $0x8] sm:$0xff]
    %v5294 = vld [vmem:[#allocation4 + $0x10] sm:$0xff]
    %v5295 = vld [vmem:[#allocation4 + $0x18] sm:$0xff]
    %v5296 = vld [vmem:[%s5] sm:$0xf]
    %v5297 = vld [vmem:[%s5 + $0x4] sm:$0xf]
    %v5298 = vld [vmem:[%s5 + $0x8] sm:$0xf]
    %v5299 = vld [vmem:[%s6] sm:$0x1]
    %v5301 = vlaneseq
    %v5302 = vshrl.u32 %v5301, 7
    %v5303 = vsub.s32 0, %v5302
    %v5304 = vrot.slane %v5299, %v5303
    %v5309 = vunpack.c.l.b16 %v5296
    %v5310 = vunpack.c.l.b16 %v5297
    %v5311 = vunpack.c.l.b16 %v5298
    %v5312 = vpack.c.b16 %v5310, %v5309
    %v5313 = vpack.c.b16 %v5311, %v5311
    %v5316 = vsel %vm639, %v5292, 0
    %v5319 = vsel %vm639, %v5293, 0
    %v5322 = vsel %vm639, %v5294, 0
    %v5325 = vsel %vm639, %v5295, 0
    %v5328 = vsel %vm2149, %v5313, 0
    %5330 = vmatprep.subr.bf16.mxu0 0
    %5331 = vmatpush1.bf16.msra.mxu0 %v5312
    %5332 = vmatprep.subr.bf16.mxu0 0
    %5333 = vmatpush1.bf16.msra.mxu0 %v5328
    %5334 = vmatprep.subr.bf16.mxu0 0
    %5335 = vmatpush1.bf16.msra.mxu0 0
    %5336 = vmatprep.subr.bf16.mxu0 0
    %5337 = vmatpush1.bf16.msra.mxu0 0
    %5338 = vmatprep.subr.bf16.mxu0 0
    %5339 = vmatpush1.bf16.msra.mxu0 0
    %5340 = vmatprep.subr.bf16.mxu0 0
    %5341 = vmatpush1.bf16.msra.mxu0 0
    %5342 = vmatprep.subr.bf16.mxu0 0
    %5343 = vmatpush1.bf16.msra.mxu0 0
    %5344 = vmatprep.subr.bf16.mxu0 0
    %5345 = vmatpush1.bf16.msra.mxu0 0
    %5346 = vmatprep.subr.bf16.mxu0 0
    %5347 = vmatpush1.bf16.msra.mxu0 0
    %5348 = vmatprep.subr.bf16.mxu0 0
    %5349 = vmatpush1.bf16.msra.mxu0 0
    %5350 = vmatprep.subr.bf16.mxu0 0
    %5351 = vmatpush1.bf16.msra.mxu0 0
    %5352 = vmatprep.subr.bf16.mxu0 0
    %5353 = vmatpush1.bf16.msra.mxu0 0
    %5354 = vmatprep.subr.bf16.mxu0 0
    %5355 = vmatpush1.bf16.msra.mxu0 0
    %5356 = vmatprep.subr.bf16.mxu0 0
    %5357 = vmatpush1.bf16.msra.mxu0 0
    %5358 = vmatprep.subr.bf16.mxu0 0
    %5359 = vmatpush1.bf16.msra.mxu0 0
    %5360 = vmatprep.subr.bf16.mxu0 0
    %5361 = vmatpush1.bf16.msra.mxu0 0
    %5362 = vmatprep.mubr.bf16.mxu0 0
    %5363 = vmatmul.mubr.bf16.gmra.mrb[0].mxu0 %v5316
    %v5364 = vpop.f32.mrb[0].mxu0
    %v5365 = vadd.f32 %v5304, %v5364
    %v5366 = vpop.f32.mrb[0].mxu0
    %v5367 = vpop.f32.mrb[0].mxu0
    %v5368 = vadd.f32 %v5304, %v5367
    %v5369 = vpop.f32.mrb[0].mxu0
    %5370 = vmatprep.mubr.bf16.mxu0 0
    %5371 = vmatmul.mubr.bf16.gmra.mrb[0].mxu0 %v5319
    %v5372 = vpop.f32.mrb[0].mxu0
    %v5373 = vadd.f32 %v5304, %v5372
    %v5374 = vpop.f32.mrb[0].mxu0
    %v5375 = vpop.f32.mrb[0].mxu0
    %v5376 = vadd.f32 %v5304, %v5375
    %v5377 = vpop.f32.mrb[0].mxu0
    %5378 = vmatprep.mubr.bf16.mxu0 0
    %5379 = vmatmul.mubr.bf16.gmra.mrb[0].mxu0 %v5322
    %v5380 = vpop.f32.mrb[0].mxu0
    %v5381 = vadd.f32 %v5304, %v5380
    %v5382 = vpop.f32.mrb[0].mxu0
    %v5383 = vpop.f32.mrb[0].mxu0
    %v5384 = vadd.f32 %v5304, %v5383
    %v5385 = vpop.f32.mrb[0].mxu0
    %5386 = vmatprep.mubr.bf16.mxu0 0
    %5387 = vmatmul.mubr.bf16.gmra.mrb[0].mxu0 %v5325
    %v5388 = vpop.f32.mrb[0].mxu0
    %v5389 = vadd.f32 %v5304, %v5388
    %v5390 = vpop.f32.mrb[0].mxu0
    %v5391 = vpop.f32.mrb[0].mxu0
    %v5392 = vadd.f32 %v5304, %v5391
    %v5393 = vpop.f32.mrb[0].mxu0
    %5394 = vdwg.mxu0
    %v5395 = vmax.f32 %v5365, 0.0
    %v5396 = vmax.f32 %v5368, 0.0
    %v5397 = vmax.f32 %v5373, 0.0
    %v5398 = vmax.f32 %v5376, 0.0
    %v5399 = vmax.f32 %v5381, 0.0
    %v5400 = vmax.f32 %v5384, 0.0
    %v5401 = vmax.f32 %v5389, 0.0
    %v5402 = vmax.f32 %v5392, 0.0
    %s5403 = scalar_lea.vmem [#allocation5], 64
    %5404 = vst.msk [vmem:[%s5403] sm:$0xff] %vm3295, %v5395
    %5405 = vst.msk [vmem:[%s5403 + $0x8] sm:$0xff] %vm3295, %v5396
    %5406 = vst.msk [vmem:[%s5403 + $0x10] sm:$0xff] %vm3295, %v5397
    %5407 = vst.msk [vmem:[%s5403 + $0x18] sm:$0xff] %vm3295, %v5398
    %5408 = vst.msk [vmem:[%s5403 + $0x20] sm:$0xff] %vm3295, %v5399
    %5409 = vst.msk [vmem:[%s5403 + $0x28] sm:$0xff] %vm3295, %v5400
    %5410 = vst.msk [vmem:[%s5403 + $0x30] sm:$0xff] %vm3295, %v5401
    %5411 = vst.msk [vmem:[%s5403 + $0x38] sm:$0xff] %vm3295, %v5402
    // Predicated region
    $region30: #{bottleneck_forward.1} parent=1 // pred_check
      _
    $region31: #{bottleneck_forward.1} parent=1 // pred_check_branch
      %5413 = sbr.rel (0) target = $region33
    $region32: #{bottleneck_forward.1} parent=1 // pred_region
      %s5415 = ssub.s32 2048, 2048
      %5416 = vsyncadd [#allocation6], %s5415
      %s5417 = sshll.u32 [#allocation5], 4
      %s5418 = int_to_ptr.vmem [resolvable:$true] %s5417
      %5423 = dma.vmem_to_hbm [thread:$0]  %s5418, 2048, %s7, [#allocation6], 128, 128, 8
    $region33: #{bottleneck_forward.1} parent=1 // pred_fallthru
      _
    // Predicated region
    $region34: #{bottleneck_forward.1} parent=1 // pred_check
      _
    $region35: #{bottleneck_forward.1} parent=1 // pred_check_branch
      %5425 = sbr.rel (0) target = $region37
    $region36: #{bottleneck_forward.1} parent=1 // pred_region
      %5426 = dma.done [#allocation6], 2048
    $region37: #{bottleneck_forward.1} parent=1 // pred_fallthru
      _
    %5427 = vsyncpa [#allocation6], 1

</llo_original>
